<compile_context>
chip_gen: v5e
topology: v5e:2x2
jax: 0.10.0
libtpu: 0.0.40
codegen_flags: <defaults>
</compile_context>

<pallas_src>
import jax
import jax.numpy as jnp
from jax.experimental import pallas as pl
from jax.experimental.pallas import tpu as pltpu

EMBEDDING_SIZE = 32
H1, H2, H3 = 1024, 512, 256
OUT_PAD = 128                                # fc4 output padded 1 -> 128 lanes
DROP_RATE = 0.3
LEAK = 0.2
_DROP_THRESH = int(DROP_RATE * (1 << 24))    # keep iff 24-bit hash >= thresh
_DROP_SCALE = 1.0 / (1.0 - DROP_RATE)


def _keep_mask(shape, row_off, seed, salt):
    """Counter-based hash PRNG -> boolean keep mask with prob (1 - DROP_RATE)."""
    r = jax.lax.broadcasted_iota(jnp.int32, shape, 0) + row_off
    c = jax.lax.broadcasted_iota(jnp.int32, shape, 1)
    x = r * jnp.int32(-1640531527)              # 0x9E3779B9
    x = x ^ (c * jnp.int32(-862048943))         # 0xCC9E2D51
    x = x + seed * jnp.int32(19349663) + jnp.int32(salt)
    # murmur3 fmix32 finalizer
    x = x ^ jax.lax.shift_right_logical(x, 16)
    x = x * jnp.int32(-2048144789)              # 0x85EBCA6B
    x = x ^ jax.lax.shift_right_logical(x, 13)
    x = x * jnp.int32(-1028477387)              # 0xC2B2AE35
    x = x ^ jax.lax.shift_right_logical(x, 16)
    u24 = jax.lax.shift_right_logical(x, 8)     # uniform in [0, 2^24)
    return u24 >= jnp.int32(_DROP_THRESH)


def _mlp_kernel(seed_ref, x_ref, w1_ref, b1_ref, w2_ref, b2_ref,
                w3_ref, b3_ref, w4_ref, b4_ref, o_ref):
    seed = seed_ref[0]
    tb = x_ref.shape[0]
    row_off = pl.program_id(0) * tb             # global row offset of this tile

    def leaky(h):
        return jnp.maximum(h, LEAK * h)

    def dropout(h, salt):
        # TODO(synk): dropout is always active (training mode), matching
        # F.dropout(p=0.3) default; mask comes from the hash PRNG, not torch RNG.
        keep = _keep_mask(h.shape, row_off, seed, salt)
        return jnp.where(keep, h * _DROP_SCALE, 0.0)

    h = jnp.dot(x_ref[...], w1_ref[...],
                preferred_element_type=jnp.float32) + b1_ref[...]
    h = dropout(leaky(h), 1)
    h = jnp.dot(h.astype(jnp.bfloat16), w2_ref[...],
                preferred_element_type=jnp.float32) + b2_ref[...]
    h = dropout(leaky(h), 2)
    h = jnp.dot(h.astype(jnp.bfloat16), w3_ref[...],
                preferred_element_type=jnp.float32) + b3_ref[...]
    h = dropout(leaky(h), 3)
    h = jnp.dot(h.astype(jnp.bfloat16), w4_ref[...],
                preferred_element_type=jnp.float32) + b4_ref[...]
    o_ref[...] = h


def init_params(key, embedding_size=EMBEDDING_SIZE):
    """PyTorch-style init; weights stored pre-padded, layout (in, out), bf16."""
    ks = jax.random.split(key, 9)
    d_in = 784 + embedding_size
    d_pad = 128 * pl.cdiv(d_in, 128)            # 896 for E=32

    def lin(kw, kb, fan_in, fan_out, pad_in=None, pad_out=None):
        bound = 1.0 / (fan_in ** 0.5)
        w = jax.random.uniform(kw, (fan_in, fan_out), jnp.float32, -bound, bound)
        b = jax.random.uniform(kb, (1, fan_out), jnp.float32, -bound, bound)
        pi = pad_in or fan_in
        po = pad_out or fan_out
        wp = jnp.zeros((pi, po), jnp.float32).at[:fan_in, :fan_out].set(w)
        bp = jnp.zeros((1, po), jnp.float32).at[:, :fan_out].set(b)
        return wp.astype(jnp.bfloat16), bp      # weights bf16, biases f32

    emb = jax.random.normal(ks[0], (10, embedding_size), jnp.float32)
    w1, b1 = lin(ks[1], ks[2], d_in, H1, pad_in=d_pad)
    w2, b2 = lin(ks[3], ks[4], H1, H2)
    w3, b3 = lin(ks[5], ks[6], H2, H3)
    w4, b4 = lin(ks[7], ks[8], H3, 1, pad_out=OUT_PAD)
    return dict(emb=emb, w1=w1, b1=b1, w2=w2, b2=b2,
                w3=w3, b3=b3, w4=w4, b4=b4)


@jax.jit
def discriminator_forward(params, x, y, seed):
    # --- glue: embedding lookup + concat (cheap data-dependent gather) ---
    emb = jnp.take(params["emb"], y, axis=0)            # (B, E)
    cat = jnp.concatenate([x, emb], axis=1)             # (B, 784+E)
    B, D = cat.shape
    Dp = params["w1"].shape[0]                          # 896, pre-padded

    # --- batch tiling: one tile at small B, 256-row tiles for large B ---
    if B <= 256:
        TB = 8 * pl.cdiv(B, 8)
    else:
        TB = 256
    Bp = TB * pl.cdiv(B, TB)
    x_pad = jnp.zeros((Bp, Dp), jnp.bfloat16).at[:B, :D].set(
        cat.astype(jnp.bfloat16))

    seed_arr = jnp.asarray(seed, jnp.int32).reshape((1,))

    out = pl.pallas_call(
        _mlp_kernel,
        out_shape=jax.ShapeDtypeStruct((Bp, OUT_PAD), jnp.float32),
        grid=(Bp // TB,),
        in_specs=[
            pl.BlockSpec(memory_space=pltpu.MemorySpace.SMEM),   # seed scalar
            pl.BlockSpec((TB, Dp), lambda i: (i, 0)),            # x tile
            pl.BlockSpec((Dp, H1), lambda i: (0, 0)),            # w1 (resident)
            pl.BlockSpec((1, H1), lambda i: (0, 0)),             # b1
            pl.BlockSpec((H1, H2), lambda i: (0, 0)),            # w2
            pl.BlockSpec((1, H2), lambda i: (0, 0)),             # b2
            pl.BlockSpec((H2, H3), lambda i: (0, 0)),            # w3
            pl.BlockSpec((1, H3), lambda i: (0, 0)),             # b3
            pl.BlockSpec((H3, OUT_PAD), lambda i: (0, 0)),       # w4 (padded)
            pl.BlockSpec((1, OUT_PAD), lambda i: (0, 0)),        # b4 (padded)
        ],
        out_specs=pl.BlockSpec((TB, OUT_PAD), lambda i: (i, 0)),
        compiler_params=pltpu.CompilerParams(
            dimension_semantics=("parallel",),
            vmem_limit_bytes=32 << 20,
        ),
    )(seed_arr, x_pad, params["w1"], params["b1"], params["w2"], params["b2"],
      params["w3"], params["b3"], params["w4"], params["b4"])

    return out[:B, :1]                                   # (B, 1)


if __name__ == "__main__":
    key = jax.random.PRNGKey(0)
    kp, kx, ky = jax.random.split(key, 3)

    B = 4
    params = init_params(kp)
    x = jax.random.normal(kx, (B, 784), jnp.float32)
    y = jax.random.randint(ky, (B,), 0, 10, jnp.int32)

    out = discriminator_forward(params, x, y, 1234)
    out = jax.block_until_ready(out)
    assert out.shape == (B, 1), out.shape
    assert bool(jnp.all(jnp.isfinite(out)))
    print("KERNEL_OK")
</pallas_src>

<mosaic_0001>
module attributes {stable_mosaic.version = 11 : i64} {
  func.func @_mlp_kernel(%arg0: i32, %arg1: memref<1xi32, #tpu.memory_space<smem>>, %arg2: memref<8x896xbf16, #tpu.memory_space<vmem>>, %arg3: memref<896x1024xbf16, #tpu.memory_space<vmem>>, %arg4: memref<1x1024xf32, #tpu.memory_space<vmem>>, %arg5: memref<1024x512xbf16, #tpu.memory_space<vmem>>, %arg6: memref<1x512xf32, #tpu.memory_space<vmem>>, %arg7: memref<512x256xbf16, #tpu.memory_space<vmem>>, %arg8: memref<1x256xf32, #tpu.memory_space<vmem>>, %arg9: memref<256x128xbf16, #tpu.memory_space<vmem>>, %arg10: memref<1x128xf32, #tpu.memory_space<vmem>>, %arg11: memref<8x128xf32, #tpu.memory_space<vmem>>) attributes {dimension_semantics = [#tpu.dimension_semantics<parallel>], iteration_bounds = array<i64: 1>, scalar_prefetch = 0 : i64, scratch_operands = 0 : i64, tpu.core_type = #tpu.core_type<tc>, window_params = [{transform_indices = @transform_0, window_bounds = array<i64: 1>}, {transform_indices = @transform_1, window_bounds = array<i64: 8, 896>}, {pipeline_mode = #tpu.pipeline_mode<synchronous>, transform_indices = @transform_2, window_bounds = array<i64: 896, 1024>}, {pipeline_mode = #tpu.pipeline_mode<synchronous>, transform_indices = @transform_3, window_bounds = array<i64: 1, 1024>}, {pipeline_mode = #tpu.pipeline_mode<synchronous>, transform_indices = @transform_4, window_bounds = array<i64: 1024, 512>}, {pipeline_mode = #tpu.pipeline_mode<synchronous>, transform_indices = @transform_5, window_bounds = array<i64: 1, 512>}, {pipeline_mode = #tpu.pipeline_mode<synchronous>, transform_indices = @transform_6, window_bounds = array<i64: 512, 256>}, {pipeline_mode = #tpu.pipeline_mode<synchronous>, transform_indices = @transform_7, window_bounds = array<i64: 1, 256>}, {pipeline_mode = #tpu.pipeline_mode<synchronous>, transform_indices = @transform_8, window_bounds = array<i64: 256, 128>}, {pipeline_mode = #tpu.pipeline_mode<synchronous>, transform_indices = @transform_9, window_bounds = array<i64: 1, 128>}, {transform_indices = @transform_10, window_bounds = array<i64: 8, 128>}]} {
    %c0 = arith.constant 0 : index
    %0 = memref.load %arg1[%c0] : memref<1xi32, #tpu.memory_space<smem>>
    %c8_i32 = arith.constant 8 : i32
    %1 = arith.muli %arg0, %c8_i32 : i32
    %c0_0 = arith.constant 0 : index
    %c0_1 = arith.constant 0 : index
    %2 = vector.load %arg2[%c0_0, %c0_1] : memref<8x896xbf16, #tpu.memory_space<vmem>>, vector<8x896xbf16>
    %c0_2 = arith.constant 0 : index
    %c0_3 = arith.constant 0 : index
    %3 = vector.load %arg3[%c0_2, %c0_3] : memref<896x1024xbf16, #tpu.memory_space<vmem>>, vector<896x1024xbf16>
    %cst = arith.constant dense<0.000000e+00> : vector<8x1024xf32>
    %4 = tpu.matmul %2, %3, %cst {dimension_numbers = #tpu.dot_dimension_numbers<[1], [0], [0], [1], [0, 0, 1, 1], [], []>} : vector<8x896xbf16>, vector<896x1024xbf16>, vector<8x1024xf32> -> vector<8x1024xf32>
    %c0_4 = arith.constant 0 : index
    %c0_5 = arith.constant 0 : index
    %5 = vector.load %arg4[%c0_4, %c0_5] : memref<1x1024xf32, #tpu.memory_space<vmem>>, vector<1x1024xf32>
    %6 = vector.broadcast %5 : vector<1x1024xf32> to vector<8x1024xf32>
    %7 = arith.addf %4, %6 : vector<8x1024xf32>
    %cst_6 = arith.constant 2.000000e-01 : f32
    %8 = vector.broadcast %cst_6 : f32 to vector<8x1024xf32>
    %9 = arith.mulf %8, %7 : vector<8x1024xf32>
    %10 = arith.maximumf %7, %9 : vector<8x1024xf32>
    %11 = tpu.iota {dimensions = array<i32: 0>} : vector<8x1024xi32>
    %12 = vector.broadcast %1 : i32 to vector<8x1024xi32>
    %13 = arith.addi %11, %12 : vector<8x1024xi32>
    %14 = tpu.iota {dimensions = array<i32: 1>} : vector<8x1024xi32>
    %c-1640531527_i32 = arith.constant -1640531527 : i32
    %15 = vector.broadcast %c-1640531527_i32 : i32 to vector<8x1024xi32>
    %16 = arith.muli %13, %15 : vector<8x1024xi32>
    %c-862048943_i32 = arith.constant -862048943 : i32
    %17 = vector.broadcast %c-862048943_i32 : i32 to vector<8x1024xi32>
    %18 = arith.muli %14, %17 : vector<8x1024xi32>
    %19 = arith.xori %16, %18 : vector<8x1024xi32>
    %c19349663_i32 = arith.constant 19349663 : i32
    %20 = arith.muli %0, %c19349663_i32 : i32
    %21 = vector.broadcast %20 : i32 to vector<8x1024xi32>
    %22 = arith.addi %19, %21 : vector<8x1024xi32>
    %c1_i32 = arith.constant 1 : i32
    %23 = vector.broadcast %c1_i32 : i32 to vector<8x1024xi32>
    %24 = arith.addi %22, %23 : vector<8x1024xi32>
    %c16_i32 = arith.constant 16 : i32
    %25 = vector.broadcast %c16_i32 : i32 to vector<8x1024xi32>
    %26 = arith.shrui %24, %25 : vector<8x1024xi32>
    %27 = arith.xori %24, %26 : vector<8x1024xi32>
    %c-2048144789_i32 = arith.constant -2048144789 : i32
    %28 = vector.broadcast %c-2048144789_i32 : i32 to vector<8x1024xi32>
    %29 = arith.muli %27, %28 : vector<8x1024xi32>
    %c13_i32 = arith.constant 13 : i32
    %30 = vector.broadcast %c13_i32 : i32 to vector<8x1024xi32>
    %31 = arith.shrui %29, %30 : vector<8x1024xi32>
    %32 = arith.xori %29, %31 : vector<8x1024xi32>
    %c-1028477387_i32 = arith.constant -1028477387 : i32
    %33 = vector.broadcast %c-1028477387_i32 : i32 to vector<8x1024xi32>
    %34 = arith.muli %32, %33 : vector<8x1024xi32>
    %c16_i32_7 = arith.constant 16 : i32
    %35 = vector.broadcast %c16_i32_7 : i32 to vector<8x1024xi32>
    %36 = arith.shrui %34, %35 : vector<8x1024xi32>
    %37 = arith.xori %34, %36 : vector<8x1024xi32>
    %c8_i32_8 = arith.constant 8 : i32
    %38 = vector.broadcast %c8_i32_8 : i32 to vector<8x1024xi32>
    %39 = arith.shrui %37, %38 : vector<8x1024xi32>
    %c5033164_i32 = arith.constant 5033164 : i32
    %40 = vector.broadcast %c5033164_i32 : i32 to vector<8x1024xi32>
    %41 = arith.cmpi sge, %39, %40 : vector<8x1024xi32>
    %cst_9 = arith.constant 1.42857146 : f32
    %42 = vector.broadcast %cst_9 : f32 to vector<8x1024xf32>
    %43 = arith.mulf %10, %42 : vector<8x1024xf32>
    %cst_10 = arith.constant 0.000000e+00 : f32
    %44 = vector.broadcast %cst_10 : f32 to vector<8x1024xf32>
    %45 = arith.select %41, %43, %44 : vector<8x1024xi1>, vector<8x1024xf32>
    %46 = arith.truncf %45 : vector<8x1024xf32> to vector<8x1024xbf16>
    %c0_11 = arith.constant 0 : index
    %c0_12 = arith.constant 0 : index
    %47 = vector.load %arg5[%c0_11, %c0_12] : memref<1024x512xbf16, #tpu.memory_space<vmem>>, vector<1024x512xbf16>
    %cst_13 = arith.constant dense<0.000000e+00> : vector<8x512xf32>
    %48 = tpu.matmul %46, %47, %cst_13 {dimension_numbers = #tpu.dot_dimension_numbers<[1], [0], [0], [1], [0, 0, 1, 1], [], []>} : vector<8x1024xbf16>, vector<1024x512xbf16>, vector<8x512xf32> -> vector<8x512xf32>
    %c0_14 = arith.constant 0 : index
    %c0_15 = arith.constant 0 : index
    %49 = vector.load %arg6[%c0_14, %c0_15] : memref<1x512xf32, #tpu.memory_space<vmem>>, vector<1x512xf32>
    %50 = vector.broadcast %49 : vector<1x512xf32> to vector<8x512xf32>
    %51 = arith.addf %48, %50 : vector<8x512xf32>
    %cst_16 = arith.constant 2.000000e-01 : f32
    %52 = vector.broadcast %cst_16 : f32 to vector<8x512xf32>
    %53 = arith.mulf %52, %51 : vector<8x512xf32>
    %54 = arith.maximumf %51, %53 : vector<8x512xf32>
    %55 = tpu.iota {dimensions = array<i32: 0>} : vector<8x512xi32>
    %56 = vector.broadcast %1 : i32 to vector<8x512xi32>
    %57 = arith.addi %55, %56 : vector<8x512xi32>
    %58 = tpu.iota {dimensions = array<i32: 1>} : vector<8x512xi32>
    %c-1640531527_i32_17 = arith.constant -1640531527 : i32
    %59 = vector.broadcast %c-1640531527_i32_17 : i32 to vector<8x512xi32>
    %60 = arith.muli %57, %59 : vector<8x512xi32>
    %c-862048943_i32_18 = arith.constant -862048943 : i32
    %61 = vector.broadcast %c-862048943_i32_18 : i32 to vector<8x512xi32>
    %62 = arith.muli %58, %61 : vector<8x512xi32>
    %63 = arith.xori %60, %62 : vector<8x512xi32>
    %c19349663_i32_19 = arith.constant 19349663 : i32
    %64 = arith.muli %0, %c19349663_i32_19 : i32
    %65 = vector.broadcast %64 : i32 to vector<8x512xi32>
    %66 = arith.addi %63, %65 : vector<8x512xi32>
    %c2_i32 = arith.constant 2 : i32
    %67 = vector.broadcast %c2_i32 : i32 to vector<8x512xi32>
    %68 = arith.addi %66, %67 : vector<8x512xi32>
    %c16_i32_20 = arith.constant 16 : i32
    %69 = vector.broadcast %c16_i32_20 : i32 to vector<8x512xi32>
    %70 = arith.shrui %68, %69 : vector<8x512xi32>
    %71 = arith.xori %68, %70 : vector<8x512xi32>
    %c-2048144789_i32_21 = arith.constant -2048144789 : i32
    %72 = vector.broadcast %c-2048144789_i32_21 : i32 to vector<8x512xi32>
    %73 = arith.muli %71, %72 : vector<8x512xi32>
    %c13_i32_22 = arith.constant 13 : i32
    %74 = vector.broadcast %c13_i32_22 : i32 to vector<8x512xi32>
    %75 = arith.shrui %73, %74 : vector<8x512xi32>
    %76 = arith.xori %73, %75 : vector<8x512xi32>
    %c-1028477387_i32_23 = arith.constant -1028477387 : i32
    %77 = vector.broadcast %c-1028477387_i32_23 : i32 to vector<8x512xi32>
    %78 = arith.muli %76, %77 : vector<8x512xi32>
    %c16_i32_24 = arith.constant 16 : i32
    %79 = vector.broadcast %c16_i32_24 : i32 to vector<8x512xi32>
    %80 = arith.shrui %78, %79 : vector<8x512xi32>
    %81 = arith.xori %78, %80 : vector<8x512xi32>
    %c8_i32_25 = arith.constant 8 : i32
    %82 = vector.broadcast %c8_i32_25 : i32 to vector<8x512xi32>
    %83 = arith.shrui %81, %82 : vector<8x512xi32>
    %c5033164_i32_26 = arith.constant 5033164 : i32
    %84 = vector.broadcast %c5033164_i32_26 : i32 to vector<8x512xi32>
    %85 = arith.cmpi sge, %83, %84 : vector<8x512xi32>
    %cst_27 = arith.constant 1.42857146 : f32
    %86 = vector.broadcast %cst_27 : f32 to vector<8x512xf32>
    %87 = arith.mulf %54, %86 : vector<8x512xf32>
    %cst_28 = arith.constant 0.000000e+00 : f32
    %88 = vector.broadcast %cst_28 : f32 to vector<8x512xf32>
    %89 = arith.select %85, %87, %88 : vector<8x512xi1>, vector<8x512xf32>
    %90 = arith.truncf %89 : vector<8x512xf32> to vector<8x512xbf16>
    %c0_29 = arith.constant 0 : index
    %c0_30 = arith.constant 0 : index
    %91 = vector.load %arg7[%c0_29, %c0_30] : memref<512x256xbf16, #tpu.memory_space<vmem>>, vector<512x256xbf16>
    %cst_31 = arith.constant dense<0.000000e+00> : vector<8x256xf32>
    %92 = tpu.matmul %90, %91, %cst_31 {dimension_numbers = #tpu.dot_dimension_numbers<[1], [0], [0], [1], [0, 0, 1, 1], [], []>} : vector<8x512xbf16>, vector<512x256xbf16>, vector<8x256xf32> -> vector<8x256xf32>
    %c0_32 = arith.constant 0 : index
    %c0_33 = arith.constant 0 : index
    %93 = vector.load %arg8[%c0_32, %c0_33] : memref<1x256xf32, #tpu.memory_space<vmem>>, vector<1x256xf32>
    %94 = vector.broadcast %93 : vector<1x256xf32> to vector<8x256xf32>
    %95 = arith.addf %92, %94 : vector<8x256xf32>
    %cst_34 = arith.constant 2.000000e-01 : f32
    %96 = vector.broadcast %cst_34 : f32 to vector<8x256xf32>
    %97 = arith.mulf %96, %95 : vector<8x256xf32>
    %98 = arith.maximumf %95, %97 : vector<8x256xf32>
    %99 = tpu.iota {dimensions = array<i32: 0>} : vector<8x256xi32>
    %100 = vector.broadcast %1 : i32 to vector<8x256xi32>
    %101 = arith.addi %99, %100 : vector<8x256xi32>
    %102 = tpu.iota {dimensions = array<i32: 1>} : vector<8x256xi32>
    %c-1640531527_i32_35 = arith.constant -1640531527 : i32
    %103 = vector.broadcast %c-1640531527_i32_35 : i32 to vector<8x256xi32>
    %104 = arith.muli %101, %103 : vector<8x256xi32>
    %c-862048943_i32_36 = arith.constant -862048943 : i32
    %105 = vector.broadcast %c-862048943_i32_36 : i32 to vector<8x256xi32>
    %106 = arith.muli %102, %105 : vector<8x256xi32>
    %107 = arith.xori %104, %106 : vector<8x256xi32>
    %c19349663_i32_37 = arith.constant 19349663 : i32
    %108 = arith.muli %0, %c19349663_i32_37 : i32
    %109 = vector.broadcast %108 : i32 to vector<8x256xi32>
    %110 = arith.addi %107, %109 : vector<8x256xi32>
    %c3_i32 = arith.constant 3 : i32
    %111 = vector.broadcast %c3_i32 : i32 to vector<8x256xi32>
    %112 = arith.addi %110, %111 : vector<8x256xi32>
    %c16_i32_38 = arith.constant 16 : i32
    %113 = vector.broadcast %c16_i32_38 : i32 to vector<8x256xi32>
    %114 = arith.shrui %112, %113 : vector<8x256xi32>
    %115 = arith.xori %112, %114 : vector<8x256xi32>
    %c-2048144789_i32_39 = arith.constant -2048144789 : i32
    %116 = vector.broadcast %c-2048144789_i32_39 : i32 to vector<8x256xi32>
    %117 = arith.muli %115, %116 : vector<8x256xi32>
    %c13_i32_40 = arith.constant 13 : i32
    %118 = vector.broadcast %c13_i32_40 : i32 to vector<8x256xi32>
    %119 = arith.shrui %117, %118 : vector<8x256xi32>
    %120 = arith.xori %117, %119 : vector<8x256xi32>
    %c-1028477387_i32_41 = arith.constant -1028477387 : i32
    %121 = vector.broadcast %c-1028477387_i32_41 : i32 to vector<8x256xi32>
    %122 = arith.muli %120, %121 : vector<8x256xi32>
    %c16_i32_42 = arith.constant 16 : i32
    %123 = vector.broadcast %c16_i32_42 : i32 to vector<8x256xi32>
    %124 = arith.shrui %122, %123 : vector<8x256xi32>
    %125 = arith.xori %122, %124 : vector<8x256xi32>
    %c8_i32_43 = arith.constant 8 : i32
    %126 = vector.broadcast %c8_i32_43 : i32 to vector<8x256xi32>
    %127 = arith.shrui %125, %126 : vector<8x256xi32>
    %c5033164_i32_44 = arith.constant 5033164 : i32
    %128 = vector.broadcast %c5033164_i32_44 : i32 to vector<8x256xi32>
    %129 = arith.cmpi sge, %127, %128 : vector<8x256xi32>
    %cst_45 = arith.constant 1.42857146 : f32
    %130 = vector.broadcast %cst_45 : f32 to vector<8x256xf32>
    %131 = arith.mulf %98, %130 : vector<8x256xf32>
    %cst_46 = arith.constant 0.000000e+00 : f32
    %132 = vector.broadcast %cst_46 : f32 to vector<8x256xf32>
    %133 = arith.select %129, %131, %132 : vector<8x256xi1>, vector<8x256xf32>
    %134 = arith.truncf %133 : vector<8x256xf32> to vector<8x256xbf16>
    %c0_47 = arith.constant 0 : index
    %c0_48 = arith.constant 0 : index
    %135 = vector.load %arg9[%c0_47, %c0_48] : memref<256x128xbf16, #tpu.memory_space<vmem>>, vector<256x128xbf16>
    %cst_49 = arith.constant dense<0.000000e+00> : vector<8x128xf32>
    %136 = tpu.matmul %134, %135, %cst_49 {dimension_numbers = #tpu.dot_dimension_numbers<[1], [0], [0], [1], [0, 0, 1, 1], [], []>} : vector<8x256xbf16>, vector<256x128xbf16>, vector<8x128xf32> -> vector<8x128xf32>
    %c0_50 = arith.constant 0 : index
    %c0_51 = arith.constant 0 : index
    %137 = vector.load %arg10[%c0_50, %c0_51] : memref<1x128xf32, #tpu.memory_space<vmem>>, vector<1x128xf32>
    %138 = vector.broadcast %137 : vector<1x128xf32> to vector<8x128xf32>
    %139 = arith.addf %136, %138 : vector<8x128xf32>
    %c0_52 = arith.constant 0 : index
    %c0_53 = arith.constant 0 : index
    %140 = vector.load %arg11[%c0_52, %c0_53] : memref<8x128xf32, #tpu.memory_space<vmem>>, vector<8x128xf32>
    tpu.vector_store %arg11[%c0_52, %c0_53], %139 {strides = array<i32>} : memref<8x128xf32, #tpu.memory_space<vmem>>, vector<8x128xf32>,
    return
  }
  func.func @transform_0(%arg0: i32) -> i32 {
    %c0_i32 = arith.constant 0 : i32
    %c0_i32_0 = arith.constant 0 : i32
    return %c0_i32 : i32
  }
  func.func @transform_1(%arg0: i32) -> (i32, i32) {
    %c0_i32 = arith.constant 0 : i32
    %c0_i32_0 = arith.constant 0 : i32
    return %arg0, %c0_i32 : i32, i32
  }
  func.func @transform_2(%arg0: i32) -> (i32, i32) {
    %c0_i32 = arith.constant 0 : i32
    %c0_i32_0 = arith.constant 0 : i32
    %c0_i32_1 = arith.constant 0 : i32
    return %c0_i32, %c0_i32_0 : i32, i32
  }
  func.func @transform_3(%arg0: i32) -> (i32, i32) {
    %c0_i32 = arith.constant 0 : i32
    %c0_i32_0 = arith.constant 0 : i32
    %c0_i32_1 = arith.constant 0 : i32
    return %c0_i32, %c0_i32_0 : i32, i32
  }
  func.func @transform_4(%arg0: i32) -> (i32, i32) {
    %c0_i32 = arith.constant 0 : i32
    %c0_i32_0 = arith.constant 0 : i32
    %c0_i32_1 = arith.constant 0 : i32
    return %c0_i32, %c0_i32_0 : i32, i32
  }
  func.func @transform_5(%arg0: i32) -> (i32, i32) {
    %c0_i32 = arith.constant 0 : i32
    %c0_i32_0 = arith.constant 0 : i32
    %c0_i32_1 = arith.constant 0 : i32
    return %c0_i32, %c0_i32_0 : i32, i32
  }
  func.func @transform_6(%arg0: i32) -> (i32, i32) {
    %c0_i32 = arith.constant 0 : i32
    %c0_i32_0 = arith.constant 0 : i32
    %c0_i32_1 = arith.constant 0 : i32
    return %c0_i32, %c0_i32_0 : i32, i32
  }
  func.func @transform_7(%arg0: i32) -> (i32, i32) {
    %c0_i32 = arith.constant 0 : i32
    %c0_i32_0 = arith.constant 0 : i32
    %c0_i32_1 = arith.constant 0 : i32
    return %c0_i32, %c0_i32_0 : i32, i32
  }
  func.func @transform_8(%arg0: i32) -> (i32, i32) {
    %c0_i32 = arith.constant 0 : i32
    %c0_i32_0 = arith.constant 0 : i32
    %c0_i32_1 = arith.constant 0 : i32
    return %c0_i32, %c0_i32_0 : i32, i32
  }
  func.func @transform_9(%arg0: i32) -> (i32, i32) {
    %c0_i32 = arith.constant 0 : i32
    %c0_i32_0 = arith.constant 0 : i32
    %c0_i32_1 = arith.constant 0 : i32
    return %c0_i32, %c0_i32_0 : i32, i32
  }
  func.func @transform_10(%arg0: i32) -> (i32, i32) {
    %c0_i32 = arith.constant 0 : i32
    %c0_i32_0 = arith.constant 0 : i32
    return %arg0, %c0_i32 : i32, i32
  }
}

</mosaic_0001>

<llo_original>
// kernel: discriminator_forward.1
$region0: #{discriminator_forward.1}
  #allocation0 [shape = 'u32[]', space=smem, size = 0x4, offset = 0x4, fixed_abs, tag = 'smem constant byte address 0x4 - core index']
  #allocation1 [shape = 'u32[72,128]{1,0:T(1,128)}', space=vmem, size = 0x9000, scoped, tag = 'internal scratch']
  #allocation2 [shape = 's32[1]{0:T(128)S(6)}', space=smem, size = 0x200, scoped, tag = 'scoped memory for discriminator_forward.1']
  %s0 = inlined_call_operand.<no memory space> [shape: s32[1], index: 0, kind: input, shape index: {}]
  %s1 = inlined_call_operand.vmem [shape: bf16[8,896], index: 1, kind: input, shape index: {}]
  %s2 = inlined_call_operand.hbm [shape: bf16[896,1024], index: 2, kind: input, shape index: {}]
  %s3 = inlined_call_operand.hbm [shape: f32[1,1024], index: 3, kind: input, shape index: {}]
  %s4 = inlined_call_operand.hbm [shape: bf16[1024,512], index: 4, kind: input, shape index: {}]
  %s5 = inlined_call_operand.hbm [shape: f32[1,512], index: 5, kind: input, shape index: {}]
  %s6 = inlined_call_operand.hbm [shape: bf16[512,256], index: 6, kind: input, shape index: {}]
  %s7 = inlined_call_operand.hbm [shape: f32[1,256], index: 7, kind: input, shape index: {}]
  %s8 = inlined_call_operand.hbm [shape: bf16[256,128], index: 8, kind: input, shape index: {}]
  %s9 = inlined_call_operand.hbm [shape: f32[1,128], index: 9, kind: input, shape index: {}]
  %s10 = inlined_call_operand.vmem [shape: f32[8,128], index: 10, kind: output, shape index: {}]
  %s11 = sld [smem:[#allocation0]]
  $region82: #{discriminator_forward.1} parent=0
    _
  %s13 = ssub.s32 1, %s11
  %s14 = scalar_select 0, %s13, %s11
  %15 = sst [smem:[#allocation2]] %s0
  $region1: #{discriminator_forward.1} parent=0
    #allocation3 [shape = 'u8[1835008]{0}', space=vmem, size = 0x1c0000, scoped, tag = 'input window, operand 2, single buffered']
    #allocation4 [shape = 's32[1]{0}', space=sflag, size = 0x4, scoped, tag = 'scoped memory for discriminator_forward.1']
    #allocation5 [shape = 'u8[4096]{0}', space=vmem, size = 0x1000, scoped, tag = 'input window, operand 3, single buffered']
    #allocation6 [shape = 's32[1]{0}', space=sflag, size = 0x4, scoped, tag = 'scoped memory for discriminator_forward.1']
    #allocation7 [shape = 'u8[1048576]{0}', space=vmem, size = 0x100000, scoped, tag = 'input window, operand 4, single buffered']
    #allocation8 [shape = 'u8[2048]{0}', space=vmem, size = 0x800, scoped, tag = 'input window, operand 5, single buffered']
    #allocation9 [shape = 's32[1]{0}', space=sflag, size = 0x4, scoped, tag = 'scoped memory for discriminator_forward.1']
    #allocation10 [shape = 'u8[262144]{0}', space=vmem, size = 0x40000, scoped, tag = 'input window, operand 6, single buffered']
    #allocation11 [shape = 'u8[1024]{0}', space=vmem, size = 0x400, scoped, tag = 'input window, operand 7, single buffered']
    #allocation12 [shape = 's32[1]{0}', space=sflag, size = 0x4, scoped, tag = 'scoped memory for discriminator_forward.1']
    #allocation13 [shape = 'u8[65536]{0}', space=vmem, size = 0x10000, scoped, tag = 'input window, operand 8, single buffered']
    #allocation14 [shape = 'u8[512]{0}', space=vmem, size = 0x400, scoped, tag = 'input window, operand 9, single buffered']
    #allocation15 [shape = 's32[1]{0}', space=sflag, size = 0x4, scoped, tag = 'scoped memory for discriminator_forward.1']
    %16 = vsyncpa [#allocation4], 0
    %17 = vsyncpa [#allocation6], 0
    %18 = vsyncpa [#allocation9], 0
    %19 = vsyncpa [#allocation12], 0
    %20 = vsyncpa [#allocation15], 0
    // Predicated region
    $region2: #{discriminator_forward.1} parent=1 // pred_check
      _
    $region3: #{discriminator_forward.1} parent=1 // pred_check_branch
      %22 = sbr.rel (0) target = $region5
    $region4: #{discriminator_forward.1} parent=1 // pred_region
      _
    $region5: #{discriminator_forward.1} parent=1 // pred_fallthru
      _
    // Predicated region
    $region6: #{discriminator_forward.1} parent=1 // pred_check
      _
    $region7: #{discriminator_forward.1} parent=1 // pred_check_branch
      %24 = sbr.rel (0) target = $region9
    $region8: #{discriminator_forward.1} parent=1 // pred_region
      _
    $region9: #{discriminator_forward.1} parent=1 // pred_fallthru
      _
    // Predicated region
    $region10: #{discriminator_forward.1} parent=1 // pred_check
      _
    $region11: #{discriminator_forward.1} parent=1 // pred_check_branch
      %26 = sbr.rel (0) target = $region13
    $region12: #{discriminator_forward.1} parent=1 // pred_region
      %28 = vsyncadd [#allocation4], 0
      %s29 = sshll.u32 %s2, 4
      %s30 = int_to_ptr.hbm [resolvable:$true] %s29
      %s31 = sshll.u32 [#allocation3], 4
      %s32 = int_to_ptr.vmem [resolvable:$true] %s31
      %37 = dma.hbm_to_vmem [thread:$0]  %s30, 57344, %s32, [#allocation4], 512, 512, 32
    $region13: #{discriminator_forward.1} parent=1 // pred_fallthru
      _
    // Predicated region
    $region14: #{discriminator_forward.1} parent=1 // pred_check
      _
    $region15: #{discriminator_forward.1} parent=1 // pred_check_branch
      %39 = sbr.rel (0) target = $region17
    $region16: #{discriminator_forward.1} parent=1 // pred_region
      %41 = vsyncadd [#allocation6], 0
      %s43 = sshll.u32 %s3, 4
      %s44 = int_to_ptr.hbm [resolvable:$true] %s43
      %s45 = sshll.u32 [#allocation5], 4
      %s46 = int_to_ptr.vmem [resolvable:$true] %s45
      %48 = dma.hbm_to_vmem [thread:$0]  %s44, 128, %s46, [#allocation6]
    $region17: #{discriminator_forward.1} parent=1 // pred_fallthru
      _
    // Predicated region
    $region18: #{discriminator_forward.1} parent=1 // pred_check
      _
    $region19: #{discriminator_forward.1} parent=1 // pred_check_branch
      %50 = sbr.rel (0) target = $region21
    $region20: #{discriminator_forward.1} parent=1 // pred_region
      %52 = vsyncadd [#allocation6], 0
      %s53 = sshll.u32 %s4, 4
      %s54 = int_to_ptr.hbm [resolvable:$true] %s53
      %s55 = sshll.u32 [#allocation7], 4
      %s56 = int_to_ptr.vmem [resolvable:$true] %s55
      %61 = dma.hbm_to_vmem [thread:$0]  %s54, 32768, %s56, [#allocation6], 256, 256, 16
    $region21: #{discriminator_forward.1} parent=1 // pred_fallthru
      _
    // Predicated region
    $region22: #{discriminator_forward.1} parent=1 // pred_check
      _
    $region23: #{discriminator_forward.1} parent=1 // pred_check_branch
      %63 = sbr.rel (0) target = $region25
    $region24: #{discriminator_forward.1} parent=1 // pred_region
      %65 = vsyncadd [#allocation9], 0
      %s67 = sshll.u32 %s5, 4
      %s68 = int_to_ptr.hbm [resolvable:$true] %s67
      %s69 = sshll.u32 [#allocation8], 4
      %s70 = int_to_ptr.vmem [resolvable:$true] %s69
      %72 = dma.hbm_to_vmem [thread:$0]  %s68, 64, %s70, [#allocation9]
    $region25: #{discriminator_forward.1} parent=1 // pred_fallthru
      _
    // Predicated region
    $region26: #{discriminator_forward.1} parent=1 // pred_check
      _
    $region27: #{discriminator_forward.1} parent=1 // pred_check_branch
      %74 = sbr.rel (0) target = $region29
    $region28: #{discriminator_forward.1} parent=1 // pred_region
      %76 = vsyncadd [#allocation9], 0
      %s77 = sshll.u32 %s6, 4
      %s78 = int_to_ptr.hbm [resolvable:$true] %s77
      %s79 = sshll.u32 [#allocation10], 4
      %s80 = int_to_ptr.vmem [resolvable:$true] %s79
      %85 = dma.hbm_to_vmem [thread:$0]  %s78, 8192, %s80, [#allocation9], 128, 128, 8
    $region29: #{discriminator_forward.1} parent=1 // pred_fallthru
      _
    // Predicated region
    $region30: #{discriminator_forward.1} parent=1 // pred_check
      _
    $region31: #{discriminator_forward.1} parent=1 // pred_check_branch
      %87 = sbr.rel (0) target = $region33
    $region32: #{discriminator_forward.1} parent=1 // pred_region
      %89 = vsyncadd [#allocation12], 0
      %s91 = sshll.u32 %s7, 4
      %s92 = int_to_ptr.hbm [resolvable:$true] %s91
      %s93 = sshll.u32 [#allocation11], 4
      %s94 = int_to_ptr.vmem [resolvable:$true] %s93
      %96 = dma.hbm_to_vmem [thread:$0]  %s92, 32, %s94, [#allocation12]
    $region33: #{discriminator_forward.1} parent=1 // pred_fallthru
      _
    // Predicated region
    $region34: #{discriminator_forward.1} parent=1 // pred_check
      _
    $region35: #{discriminator_forward.1} parent=1 // pred_check_branch
      %98 = sbr.rel (0) target = $region37
    $region36: #{discriminator_forward.1} parent=1 // pred_region
      %100 = vsyncadd [#allocation12], 0
      %s101 = sshll.u32 %s8, 4
      %s102 = int_to_ptr.hbm [resolvable:$true] %s101
      %s103 = sshll.u32 [#allocation13], 4
      %s104 = int_to_ptr.vmem [resolvable:$true] %s103
      %109 = dma.hbm_to_vmem [thread:$0]  %s102, 2048, %s104, [#allocation12], 64, 64, 4
    $region37: #{discriminator_forward.1} parent=1 // pred_fallthru
      _
    // Predicated region
    $region38: #{discriminator_forward.1} parent=1 // pred_check
      _
    $region39: #{discriminator_forward.1} parent=1 // pred_check_branch
      %111 = sbr.rel (0) target = $region41
    $region40: #{discriminator_forward.1} parent=1 // pred_region
      %113 = vsyncadd [#allocation15], 0
      %s115 = sshll.u32 %s9, 4
      %s116 = int_to_ptr.hbm [resolvable:$true] %s115
      %s117 = sshll.u32 [#allocation14], 4
      %s118 = int_to_ptr.vmem [resolvable:$true] %s117
      %120 = dma.hbm_to_vmem [thread:$0]  %s116, 16, %s118, [#allocation15]
    $region41: #{discriminator_forward.1} parent=1 // pred_fallthru
      _
    // Predicated region
    $region42: #{discriminator_forward.1} parent=1 // pred_check
      _
    $region43: #{discriminator_forward.1} parent=1 // pred_check_branch
      %122 = sbr.rel (0) target = $region45
    $region44: #{discriminator_forward.1} parent=1 // pred_region
      %124 = dma.done [#allocation4], 57344
    $region45: #{discriminator_forward.1} parent=1 // pred_fallthru
      _
    // Predicated region
    $region46: #{discriminator_forward.1} parent=1 // pred_check
      _
    $region47: #{discriminator_forward.1} parent=1 // pred_check_branch
      %126 = sbr.rel (0) target = $region49
    $region48: #{discriminator_forward.1} parent=1 // pred_region
      %128 = dma.done [#allocation6], 128
    $region49: #{discriminator_forward.1} parent=1 // pred_fallthru
      _
    // Predicated region
    $region50: #{discriminator_forward.1} parent=1 // pred_check
      _
    $region51: #{discriminator_forward.1} parent=1 // pred_check_branch
      %130 = sbr.rel (0) target = $region53
    $region52: #{discriminator_forward.1} parent=1 // pred_region
      %132 = dma.done [#allocation6], 32768
    $region53: #{discriminator_forward.1} parent=1 // pred_fallthru
      _
    // Predicated region
    $region54: #{discriminator_forward.1} parent=1 // pred_check
      _
    $region55: #{discriminator_forward.1} parent=1 // pred_check_branch
      %134 = sbr.rel (0) target = $region57
    $region56: #{discriminator_forward.1} parent=1 // pred_region
      %136 = dma.done [#allocation9], 64
    $region57: #{discriminator_forward.1} parent=1 // pred_fallthru
      _
    // Predicated region
    $region58: #{discriminator_forward.1} parent=1 // pred_check
      _
    $region59: #{discriminator_forward.1} parent=1 // pred_check_branch
      %138 = sbr.rel (0) target = $region61
    $region60: #{discriminator_forward.1} parent=1 // pred_region
      %140 = dma.done [#allocation9], 8192
    $region61: #{discriminator_forward.1} parent=1 // pred_fallthru
      _
    // Predicated region
    $region62: #{discriminator_forward.1} parent=1 // pred_check
      _
    $region63: #{discriminator_forward.1} parent=1 // pred_check_branch
      %142 = sbr.rel (0) target = $region65
    $region64: #{discriminator_forward.1} parent=1 // pred_region
      %144 = dma.done [#allocation12], 32
    $region65: #{discriminator_forward.1} parent=1 // pred_fallthru
      _
    // Predicated region
    $region66: #{discriminator_forward.1} parent=1 // pred_check
      _
    $region67: #{discriminator_forward.1} parent=1 // pred_check_branch
      %146 = sbr.rel (0) target = $region69
    $region68: #{discriminator_forward.1} parent=1 // pred_region
      %148 = dma.done [#allocation12], 2048
    $region69: #{discriminator_forward.1} parent=1 // pred_fallthru
      _
    // Predicated region
    $region70: #{discriminator_forward.1} parent=1 // pred_check
      _
    $region71: #{discriminator_forward.1} parent=1 // pred_check_branch
      %150 = sbr.rel (0) target = $region73
    $region72: #{discriminator_forward.1} parent=1 // pred_region
      %152 = dma.done [#allocation15], 16
    $region73: #{discriminator_forward.1} parent=1 // pred_fallthru
      _
    %s153 = sld [smem:[#allocation2]]
    %s154 = smul.u32 0, 8
    %v155 = vld [vmem:[%s1] sm:$0xff]
    %v156 = vld [vmem:[%s1 + $0x8] sm:$0xff]
    %v157 = vld [vmem:[%s1 + $0x10] sm:$0xff]
    %v158 = vld [vmem:[%s1 + $0x18] sm:$0xf]
    %v159 = vld [vmem:[#allocation3] sm:$0xff]
    %v160 = vld [vmem:[#allocation3 + $0x8] sm:$0xff]
    %v161 = vld [vmem:[#allocation3 + $0x10] sm:$0xff]
    %v162 = vld [vmem:[#allocation3 + $0x18] sm:$0xff]
    %v163 = vld [vmem:[#allocation3 + $0x20] sm:$0xff]
    %v164 = vld [vmem:[#allocation3 + $0x28] sm:$0xff]
    %v165 = vld [vmem:[#allocation3 + $0x30] sm:$0xff]
    %v166 = vld [vmem:[#allocation3 + $0x38] sm:$0xff]
    %v167 = vld [vmem:[#allocation3 + $0x40] sm:$0xff]
    %v168 = vld [vmem:[#allocation3 + $0x48] sm:$0xff]
    %v169 = vld [vmem:[#allocation3 + $0x50] sm:$0xff]
    %v170 = vld [vmem:[#allocation3 + $0x58] sm:$0xff]
    %v171 = vld [vmem:[#allocation3 + $0x60] sm:$0xff]
    %v172 = vld [vmem:[#allocation3 + $0x68] sm:$0xff]
    %v173 = vld [vmem:[#allocation3 + $0x70] sm:$0xff]
    %v174 = vld [vmem:[#allocation3 + $0x78] sm:$0xff]
    %v175 = vld [vmem:[#allocation3 + $0x80] sm:$0xff]
    %v176 = vld [vmem:[#allocation3 + $0x88] sm:$0xff]
    %v177 = vld [vmem:[#allocation3 + $0x90] sm:$0xff]
    %v178 = vld [vmem:[#allocation3 + $0x98] sm:$0xff]
    %v179 = vld [vmem:[#allocation3 + $0xa0] sm:$0xff]
    %v180 = vld [vmem:[#allocation3 + $0xa8] sm:$0xff]
    %v181 = vld [vmem:[#allocation3 + $0xb0] sm:$0xff]
    %v182 = vld [vmem:[#allocation3 + $0xb8] sm:$0xff]
    %v183 = vld [vmem:[#allocation3 + $0xc0] sm:$0xff]
    %v184 = vld [vmem:[#allocation3 + $0xc8] sm:$0xff]
    %v185 = vld [vmem:[#allocation3 + $0xd0] sm:$0xff]
    %v186 = vld [vmem:[#allocation3 + $0xd8] sm:$0xff]
    %v187 = vld [vmem:[#allocation3 + $0xe0] sm:$0xff]
    %v188 = vld [vmem:[#allocation3 + $0xe8] sm:$0xff]
    %v189 = vld [vmem:[#allocation3 + $0xf0] sm:$0xff]
    %v190 = vld [vmem:[#allocation3 + $0xf8] sm:$0xff]
    %v191 = vld [vmem:[#allocation3 + $0x100] sm:$0xff]
    %v192 = vld [vmem:[#allocation3 + $0x108] sm:$0xff]
    %v193 = vld [vmem:[#allocation3 + $0x110] sm:$0xff]
    %v194 = vld [vmem:[#allocation3 + $0x118] sm:$0xff]
    %v195 = vld [vmem:[#allocation3 + $0x120] sm:$0xff]
    %v196 = vld [vmem:[#allocation3 + $0x128] sm:$0xff]
    %v197 = vld [vmem:[#allocation3 + $0x130] sm:$0xff]
    %v198 = vld [vmem:[#allocation3 + $0x138] sm:$0xff]
    %v199 = vld [vmem:[#allocation3 + $0x140] sm:$0xff]
    %v200 = vld [vmem:[#allocation3 + $0x148] sm:$0xff]
    %v201 = vld [vmem:[#allocation3 + $0x150] sm:$0xff]
    %v202 = vld [vmem:[#allocation3 + $0x158] sm:$0xff]
    %v203 = vld [vmem:[#allocation3 + $0x160] sm:$0xff]
    %v204 = vld [vmem:[#allocation3 + $0x168] sm:$0xff]
    %v205 = vld [vmem:[#allocation3 + $0x170] sm:$0xff]
    %v206 = vld [vmem:[#allocation3 + $0x178] sm:$0xff]
    %v207 = vld [vmem:[#allocation3 + $0x180] sm:$0xff]
    %v208 = vld [vmem:[#allocation3 + $0x188] sm:$0xff]
    %v209 = vld [vmem:[#allocation3 + $0x190] sm:$0xff]
    %v210 = vld [vmem:[#allocation3 + $0x198] sm:$0xff]
    %v211 = vld [vmem:[#allocation3 + $0x1a0] sm:$0xff]
    %v212 = vld [vmem:[#allocation3 + $0x1a8] sm:$0xff]
    %v213 = vld [vmem:[#allocation3 + $0x1b0] sm:$0xff]
    %v214 = vld [vmem:[#allocation3 + $0x1b8] sm:$0xff]
    %v215 = vld [vmem:[#allocation3 + $0x1c0] sm:$0xff]
    %v216 = vld [vmem:[#allocation3 + $0x1c8] sm:$0xff]
    %v217 = vld [vmem:[#allocation3 + $0x1d0] sm:$0xff]
    %v218 = vld [vmem:[#allocation3 + $0x1d8] sm:$0xff]
    %v219 = vld [vmem:[#allocation3 + $0x1e0] sm:$0xff]
    %v220 = vld [vmem:[#allocation3 + $0x1e8] sm:$0xff]
    %v221 = vld [vmem:[#allocation3 + $0x1f0] sm:$0xff]
    %v222 = vld [vmem:[#allocation3 + $0x1f8] sm:$0xff]
    %v223 = vld [vmem:[#allocation3 + $0x200] sm:$0xff]
    %v224 = vld [vmem:[#allocation3 + $0x208] sm:$0xff]
    %v225 = vld [vmem:[#allocation3 + $0x210] sm:$0xff]
    %v226 = vld [vmem:[#allocation3 + $0x218] sm:$0xff]
    %v227 = vld [vmem:[#allocation3 + $0x220] sm:$0xff]
    %v228 = vld [vmem:[#allocation3 + $0x228] sm:$0xff]
    %v229 = vld [vmem:[#allocation3 + $0x230] sm:$0xff]
    %v230 = vld [vmem:[#allocation3 + $0x238] sm:$0xff]
    %v231 = vld [vmem:[#allocation3 + $0x240] sm:$0xff]
    %v232 = vld [vmem:[#allocation3 + $0x248] sm:$0xff]
    %v233 = vld [vmem:[#allocation3 + $0x250] sm:$0xff]
    %v234 = vld [vmem:[#allocation3 + $0x258] sm:$0xff]
    %v235 = vld [vmem:[#allocation3 + $0x260] sm:$0xff]
    %v236 = vld [vmem:[#allocation3 + $0x268] sm:$0xff]
    %v237 = vld [vmem:[#allocation3 + $0x270] sm:$0xff]
    %v238 = vld [vmem:[#allocation3 + $0x278] sm:$0xff]
    %v239 = vld [vmem:[#allocation3 + $0x280] sm:$0xff]
    %v240 = vld [vmem:[#allocation3 + $0x288] sm:$0xff]
    %v241 = vld [vmem:[#allocation3 + $0x290] sm:$0xff]
    %v242 = vld [vmem:[#allocation3 + $0x298] sm:$0xff]
    %v243 = vld [vmem:[#allocation3 + $0x2a0] sm:$0xff]
    %v244 = vld [vmem:[#allocation3 + $0x2a8] sm:$0xff]
    %v245 = vld [vmem:[#allocation3 + $0x2b0] sm:$0xff]
    %v246 = vld [vmem:[#allocation3 + $0x2b8] sm:$0xff]
    %v247 = vld [vmem:[#allocation3 + $0x2c0] sm:$0xff]
    %v248 = vld [vmem:[#allocation3 + $0x2c8] sm:$0xff]
    %v249 = vld [vmem:[#allocation3 + $0x2d0] sm:$0xff]
    %v250 = vld [vmem:[#allocation3 + $0x2d8] sm:$0xff]
    %v251 = vld [vmem:[#allocation3 + $0x2e0] sm:$0xff]
    %v252 = vld [vmem:[#allocation3 + $0x2e8] sm:$0xff]
    %v253 = vld [vmem:[#allocation3 + $0x2f0] sm:$0xff]
    %v254 = vld [vmem:[#allocation3 + $0x2f8] sm:$0xff]
    %v255 = vld [vmem:[#allocation3 + $0x300] sm:$0xff]
    %v256 = vld [vmem:[#allocation3 + $0x308] sm:$0xff]
    %v257 = vld [vmem:[#allocation3 + $0x310] sm:$0xff]
    %v258 = vld [vmem:[#allocation3 + $0x318] sm:$0xff]
    %v259 = vld [vmem:[#allocation3 + $0x320] sm:$0xff]
    %v260 = vld [vmem:[#allocation3 + $0x328] sm:$0xff]
    %v261 = vld [vmem:[#allocation3 + $0x330] sm:$0xff]
    %v262 = vld [vmem:[#allocation3 + $0x338] sm:$0xff]
    %v263 = vld [vmem:[#allocation3 + $0x340] sm:$0xff]
    %v264 = vld [vmem:[#allocation3 + $0x348] sm:$0xff]
    %v265 = vld [vmem:[#allocation3 + $0x350] sm:$0xff]
    %v266 = vld [vmem:[#allocation3 + $0x358] sm:$0xff]
    %v267 = vld [vmem:[#allocation3 + $0x360] sm:$0xff]
    %v268 = vld [vmem:[#allocation3 + $0x368] sm:$0xff]
    %v269 = vld [vmem:[#allocation3 + $0x370] sm:$0xff]
    %v270 = vld [vmem:[#allocation3 + $0x378] sm:$0xff]
    %v271 = vld [vmem:[#allocation3 + $0x380] sm:$0xff]
    %v272 = vld [vmem:[#allocation3 + $0x388] sm:$0xff]
    %v273 = vld [vmem:[#allocation3 + $0x390] sm:$0xff]
    %v274 = vld [vmem:[#allocation3 + $0x398] sm:$0xff]
    %v275 = vld [vmem:[#allocation3 + $0x3a0] sm:$0xff]
    %v276 = vld [vmem:[#allocation3 + $0x3a8] sm:$0xff]
    %v277 = vld [vmem:[#allocation3 + $0x3b0] sm:$0xff]
    %v278 = vld [vmem:[#allocation3 + $0x3b8] sm:$0xff]
    %v279 = vld [vmem:[#allocation3 + $0x3c0] sm:$0xff]
    %v280 = vld [vmem:[#allocation3 + $0x3c8] sm:$0xff]
    %v281 = vld [vmem:[#allocation3 + $0x3d0] sm:$0xff]
    %v282 = vld [vmem:[#allocation3 + $0x3d8] sm:$0xff]
    %v283 = vld [vmem:[#allocation3 + $0x3e0] sm:$0xff]
    %v284 = vld [vmem:[#allocation3 + $0x3e8] sm:$0xff]
    %v285 = vld [vmem:[#allocation3 + $0x3f0] sm:$0xff]
    %v286 = vld [vmem:[#allocation3 + $0x3f8] sm:$0xff]
    %v287 = vld [vmem:[#allocation3 + $0x400] sm:$0xff]
    %v288 = vld [vmem:[#allocation3 + $0x408] sm:$0xff]
    %v289 = vld [vmem:[#allocation3 + $0x410] sm:$0xff]
    %v290 = vld [vmem:[#allocation3 + $0x418] sm:$0xff]
    %v291 = vld [vmem:[#allocation3 + $0x420] sm:$0xff]
    %v292 = vld [vmem:[#allocation3 + $0x428] sm:$0xff]
    %v293 = vld [vmem:[#allocation3 + $0x430] sm:$0xff]
    %v294 = vld [vmem:[#allocation3 + $0x438] sm:$0xff]
    %v295 = vld [vmem:[#allocation3 + $0x440] sm:$0xff]
    %v296 = vld [vmem:[#allocation3 + $0x448] sm:$0xff]
    %v297 = vld [vmem:[#allocation3 + $0x450] sm:$0xff]
    %v298 = vld [vmem:[#allocation3 + $0x458] sm:$0xff]
    %v299 = vld [vmem:[#allocation3 + $0x460] sm:$0xff]
    %v300 = vld [vmem:[#allocation3 + $0x468] sm:$0xff]
    %v301 = vld [vmem:[#allocation3 + $0x470] sm:$0xff]
    %v302 = vld [vmem:[#allocation3 + $0x478] sm:$0xff]
    %v303 = vld [vmem:[#allocation3 + $0x480] sm:$0xff]
    %v304 = vld [vmem:[#allocation3 + $0x488] sm:$0xff]
    %v305 = vld [vmem:[#allocation3 + $0x490] sm:$0xff]
    %v306 = vld [vmem:[#allocation3 + $0x498] sm:$0xff]
    %v307 = vld [vmem:[#allocation3 + $0x4a0] sm:$0xff]
    %v308 = vld [vmem:[#allocation3 + $0x4a8] sm:$0xff]
    %v309 = vld [vmem:[#allocation3 + $0x4b0] sm:$0xff]
    %v310 = vld [vmem:[#allocation3 + $0x4b8] sm:$0xff]
    %v311 = vld [vmem:[#allocation3 + $0x4c0] sm:$0xff]
    %v312 = vld [vmem:[#allocation3 + $0x4c8] sm:$0xff]
    %v313 = vld [vmem:[#allocation3 + $0x4d0] sm:$0xff]
    %v314 = vld [vmem:[#allocation3 + $0x4d8] sm:$0xff]
    %v315 = vld [vmem:[#allocation3 + $0x4e0] sm:$0xff]
    %v316 = vld [vmem:[#allocation3 + $0x4e8] sm:$0xff]
    %v317 = vld [vmem:[#allocation3 + $0x4f0] sm:$0xff]
    %v318 = vld [vmem:[#allocation3 + $0x4f8] sm:$0xff]
    %v319 = vld [vmem:[#allocation3 + $0x500] sm:$0xff]
    %v320 = vld [vmem:[#allocation3 + $0x508] sm:$0xff]
    %v321 = vld [vmem:[#allocation3 + $0x510] sm:$0xff]
    %v322 = vld [vmem:[#allocation3 + $0x518] sm:$0xff]
    %v323 = vld [vmem:[#allocation3 + $0x520] sm:$0xff]
    %v324 = vld [vmem:[#allocation3 + $0x528] sm:$0xff]
    %v325 = vld [vmem:[#allocation3 + $0x530] sm:$0xff]
    %v326 = vld [vmem:[#allocation3 + $0x538] sm:$0xff]
    %v327 = vld [vmem:[#allocation3 + $0x540] sm:$0xff]
    %v328 = vld [vmem:[#allocation3 + $0x548] sm:$0xff]
    %v329 = vld [vmem:[#allocation3 + $0x550] sm:$0xff]
    %v330 = vld [vmem:[#allocation3 + $0x558] sm:$0xff]
    %v331 = vld [vmem:[#allocation3 + $0x560] sm:$0xff]
    %v332 = vld [vmem:[#allocation3 + $0x568] sm:$0xff]
    %v333 = vld [vmem:[#allocation3 + $0x570] sm:$0xff]
    %v334 = vld [vmem:[#allocation3 + $0x578] sm:$0xff]
    %v335 = vld [vmem:[#allocation3 + $0x580] sm:$0xff]
    %v336 = vld [vmem:[#allocation3 + $0x588] sm:$0xff]
    %v337 = vld [vmem:[#allocation3 + $0x590] sm:$0xff]
    %v338 = vld [vmem:[#allocation3 + $0x598] sm:$0xff]
    %v339 = vld [vmem:[#allocation3 + $0x5a0] sm:$0xff]
    %v340 = vld [vmem:[#allocation3 + $0x5a8] sm:$0xff]
    %v341 = vld [vmem:[#allocation3 + $0x5b0] sm:$0xff]
    %v342 = vld [vmem:[#allocation3 + $0x5b8] sm:$0xff]
    %v343 = vld [vmem:[#allocation3 + $0x5c0] sm:$0xff]
    %v344 = vld [vmem:[#allocation3 + $0x5c8] sm:$0xff]
    %v345 = vld [vmem:[#allocation3 + $0x5d0] sm:$0xff]
    %v346 = vld [vmem:[#allocation3 + $0x5d8] sm:$0xff]
    %v347 = vld [vmem:[#allocation3 + $0x5e0] sm:$0xff]
    %v348 = vld [vmem:[#allocation3 + $0x5e8] sm:$0xff]
    %v349 = vld [vmem:[#allocation3 + $0x5f0] sm:$0xff]
    %v350 = vld [vmem:[#allocation3 + $0x5f8] sm:$0xff]
    %v351 = vld [vmem:[#allocation3 + $0x600] sm:$0xff]
    %v352 = vld [vmem:[#allocation3 + $0x608] sm:$0xff]
    %v353 = vld [vmem:[#allocation3 + $0x610] sm:$0xff]
    %v354 = vld [vmem:[#allocation3 + $0x618] sm:$0xff]
    %v355 = vld [vmem:[#allocation3 + $0x620] sm:$0xff]
    %v356 = vld [vmem:[#allocation3 + $0x628] sm:$0xff]
    %v357 = vld [vmem:[#allocation3 + $0x630] sm:$0xff]
    %v358 = vld [vmem:[#allocation3 + $0x638] sm:$0xff]
    %v359 = vld [vmem:[#allocation3 + $0x640] sm:$0xff]
    %v360 = vld [vmem:[#allocation3 + $0x648] sm:$0xff]
    %v361 = vld [vmem:[#allocation3 + $0x650] sm:$0xff]
    %v362 = vld [vmem:[#allocation3 + $0x658] sm:$0xff]
    %v363 = vld [vmem:[#allocation3 + $0x660] sm:$0xff]
    %v364 = vld [vmem:[#allocation3 + $0x668] sm:$0xff]
    %v365 = vld [vmem:[#allocation3 + $0x670] sm:$0xff]
    %v366 = vld [vmem:[#allocation3 + $0x678] sm:$0xff]
    %v367 = vld [vmem:[#allocation3 + $0x680] sm:$0xff]
    %v368 = vld [vmem:[#allocation3 + $0x688] sm:$0xff]
    %v369 = vld [vmem:[#allocation3 + $0x690] sm:$0xff]
    %v370 = vld [vmem:[#allocation3 + $0x698] sm:$0xff]
    %v371 = vld [vmem:[#allocation3 + $0x6a0] sm:$0xff]
    %v372 = vld [vmem:[#allocation3 + $0x6a8] sm:$0xff]
    %v373 = vld [vmem:[#allocation3 + $0x6b0] sm:$0xff]
    %v374 = vld [vmem:[#allocation3 + $0x6b8] sm:$0xff]
    %v375 = vld [vmem:[#allocation3 + $0x6c0] sm:$0xff]
    %v376 = vld [vmem:[#allocation3 + $0x6c8] sm:$0xff]
    %v377 = vld [vmem:[#allocation3 + $0x6d0] sm:$0xff]
    %v378 = vld [vmem:[#allocation3 + $0x6d8] sm:$0xff]
    %v379 = vld [vmem:[#allocation3 + $0x6e0] sm:$0xff]
    %v380 = vld [vmem:[#allocation3 + $0x6e8] sm:$0xff]
    %v381 = vld [vmem:[#allocation3 + $0x6f0] sm:$0xff]
    %v382 = vld [vmem:[#allocation3 + $0x6f8] sm:$0xff]
    %v383 = vld [vmem:[#allocation3 + $0x700] sm:$0xff]
    %v384 = vld [vmem:[#allocation3 + $0x708] sm:$0xff]
    %v385 = vld [vmem:[#allocation3 + $0x710] sm:$0xff]
    %v386 = vld [vmem:[#allocation3 + $0x718] sm:$0xff]
    %v387 = vld [vmem:[#allocation3 + $0x720] sm:$0xff]
    %v388 = vld [vmem:[#allocation3 + $0x728] sm:$0xff]
    %v389 = vld [vmem:[#allocation3 + $0x730] sm:$0xff]
    %v390 = vld [vmem:[#allocation3 + $0x738] sm:$0xff]
    %v391 = vld [vmem:[#allocation3 + $0x740] sm:$0xff]
    %v392 = vld [vmem:[#allocation3 + $0x748] sm:$0xff]
    %v393 = vld [vmem:[#allocation3 + $0x750] sm:$0xff]
    %v394 = vld [vmem:[#allocation3 + $0x758] sm:$0xff]
    %v395 = vld [vmem:[#allocation3 + $0x760] sm:$0xff]
    %v396 = vld [vmem:[#allocation3 + $0x768] sm:$0xff]
    %v397 = vld [vmem:[#allocation3 + $0x770] sm:$0xff]
    %v398 = vld [vmem:[#allocation3 + $0x778] sm:$0xff]
    %v399 = vld [vmem:[#allocation3 + $0x780] sm:$0xff]
    %v400 = vld [vmem:[#allocation3 + $0x788] sm:$0xff]
    %v401 = vld [vmem:[#allocation3 + $0x790] sm:$0xff]
    %v402 = vld [vmem:[#allocation3 + $0x798] sm:$0xff]
    %v403 = vld [vmem:[#allocation3 + $0x7a0] sm:$0xff]
    %v404 = vld [vmem:[#allocation3 + $0x7a8] sm:$0xff]
    %v405 = vld [vmem:[#allocation3 + $0x7b0] sm:$0xff]
    %v406 = vld [vmem:[#allocation3 + $0x7b8] sm:$0xff]
    %v407 = vld [vmem:[#allocation3 + $0x7c0] sm:$0xff]
    %v408 = vld [vmem:[#allocation3 + $0x7c8] sm:$0xff]
    %v409 = vld [vmem:[#allocation3 + $0x7d0] sm:$0xff]
    %v410 = vld [vmem:[#allocation3 + $0x7d8] sm:$0xff]
    %v411 = vld [vmem:[#allocation3 + $0x7e0] sm:$0xff]
    %v412 = vld [vmem:[#allocation3 + $0x7e8] sm:$0xff]
    %v413 = vld [vmem:[#allocation3 + $0x7f0] sm:$0xff]
    %v414 = vld [vmem:[#allocation3 + $0x7f8] sm:$0xff]
    %v415 = vld [vmem:[#allocation3 + $0x800] sm:$0xff]
    %v416 = vld [vmem:[#allocation3 + $0x808] sm:$0xff]
    %v417 = vld [vmem:[#allocation3 + $0x810] sm:$0xff]
    %v418 = vld [vmem:[#allocation3 + $0x818] sm:$0xff]
    %v419 = vld [vmem:[#allocation3 + $0x820] sm:$0xff]
    %v420 = vld [vmem:[#allocation3 + $0x828] sm:$0xff]
    %v421 = vld [vmem:[#allocation3 + $0x830] sm:$0xff]
    %v422 = vld [vmem:[#allocation3 + $0x838] sm:$0xff]
    %v423 = vld [vmem:[#allocation3 + $0x840] sm:$0xff]
    %v424 = vld [vmem:[#allocation3 + $0x848] sm:$0xff]
    %v425 = vld [vmem:[#allocation3 + $0x850] sm:$0xff]
    %v426 = vld [vmem:[#allocation3 + $0x858] sm:$0xff]
    %v427 = vld [vmem:[#allocation3 + $0x860] sm:$0xff]
    %v428 = vld [vmem:[#allocation3 + $0x868] sm:$0xff]
    %v429 = vld [vmem:[#allocation3 + $0x870] sm:$0xff]
    %v430 = vld [vmem:[#allocation3 + $0x878] sm:$0xff]
    %v431 = vld [vmem:[#allocation3 + $0x880] sm:$0xff]
    %v432 = vld [vmem:[#allocation3 + $0x888] sm:$0xff]
    %v433 = vld [vmem:[#allocation3 + $0x890] sm:$0xff]
    %v434 = vld [vmem:[#allocation3 + $0x898] sm:$0xff]
    %v435 = vld [vmem:[#allocation3 + $0x8a0] sm:$0xff]
    %v436 = vld [vmem:[#allocation3 + $0x8a8] sm:$0xff]
    %v437 = vld [vmem:[#allocation3 + $0x8b0] sm:$0xff]
    %v438 = vld [vmem:[#allocation3 + $0x8b8] sm:$0xff]
    %v439 = vld [vmem:[#allocation3 + $0x8c0] sm:$0xff]
    %v440 = vld [vmem:[#allocation3 + $0x8c8] sm:$0xff]
    %v441 = vld [vmem:[#allocation3 + $0x8d0] sm:$0xff]
    %v442 = vld [vmem:[#allocation3 + $0x8d8] sm:$0xff]
    %v443 = vld [vmem:[#allocation3 + $0x8e0] sm:$0xff]
    %v444 = vld [vmem:[#allocation3 + $0x8e8] sm:$0xff]
    %v445 = vld [vmem:[#allocation3 + $0x8f0] sm:$0xff]
    %v446 = vld [vmem:[#allocation3 + $0x8f8] sm:$0xff]
    %v447 = vld [vmem:[#allocation3 + $0x900] sm:$0xff]
    %v448 = vld [vmem:[#allocation3 + $0x908] sm:$0xff]
    %v449 = vld [vmem:[#allocation3 + $0x910] sm:$0xff]
    %v450 = vld [vmem:[#allocation3 + $0x918] sm:$0xff]
    %v451 = vld [vmem:[#allocation3 + $0x920] sm:$0xff]
    %v452 = vld [vmem:[#allocation3 + $0x928] sm:$0xff]
    %v453 = vld [vmem:[#allocation3 + $0x930] sm:$0xff]
    %v454 = vld [vmem:[#allocation3 + $0x938] sm:$0xff]
    %v455 = vld [vmem:[#allocation3 + $0x940] sm:$0xff]
    %v456 = vld [vmem:[#allocation3 + $0x948] sm:$0xff]
    %v457 = vld [vmem:[#allocation3 + $0x950] sm:$0xff]
    %v458 = vld [vmem:[#allocation3 + $0x958] sm:$0xff]
    %v459 = vld [vmem:[#allocation3 + $0x960] sm:$0xff]
    %v460 = vld [vmem:[#allocation3 + $0x968] sm:$0xff]
    %v461 = vld [vmem:[#allocation3 + $0x970] sm:$0xff]
    %v462 = vld [vmem:[#allocation3 + $0x978] sm:$0xff]
    %v463 = vld [vmem:[#allocation3 + $0x980] sm:$0xff]
    %v464 = vld [vmem:[#allocation3 + $0x988] sm:$0xff]
    %v465 = vld [vmem:[#allocation3 + $0x990] sm:$0xff]
    %v466 = vld [vmem:[#allocation3 + $0x998] sm:$0xff]
    %v467 = vld [vmem:[#allocation3 + $0x9a0] sm:$0xff]
    %v468 = vld [vmem:[#allocation3 + $0x9a8] sm:$0xff]
    %v469 = vld [vmem:[#allocation3 + $0x9b0] sm:$0xff]
    %v470 = vld [vmem:[#allocation3 + $0x9b8] sm:$0xff]
    %v471 = vld [vmem:[#allocation3 + $0x9c0] sm:$0xff]
    %v472 = vld [vmem:[#allocation3 + $0x9c8] sm:$0xff]
    %v473 = vld [vmem:[#allocation3 + $0x9d0] sm:$0xff]
    %v474 = vld [vmem:[#allocation3 + $0x9d8] sm:$0xff]
    %v475 = vld [vmem:[#allocation3 + $0x9e0] sm:$0xff]
    %v476 = vld [vmem:[#allocation3 + $0x9e8] sm:$0xff]
    %v477 = vld [vmem:[#allocation3 + $0x9f0] sm:$0xff]
    %v478 = vld [vmem:[#allocation3 + $0x9f8] sm:$0xff]
    %v479 = vld [vmem:[#allocation3 + $0xa00] sm:$0xff]
    %v480 = vld [vmem:[#allocation3 + $0xa08] sm:$0xff]
    %v481 = vld [vmem:[#allocation3 + $0xa10] sm:$0xff]
    %v482 = vld [vmem:[#allocation3 + $0xa18] sm:$0xff]
    %v483 = vld [vmem:[#allocation3 + $0xa20] sm:$0xff]
    %v484 = vld [vmem:[#allocation3 + $0xa28] sm:$0xff]
    %v485 = vld [vmem:[#allocation3 + $0xa30] sm:$0xff]
    %v486 = vld [vmem:[#allocation3 + $0xa38] sm:$0xff]
    %v487 = vld [vmem:[#allocation3 + $0xa40] sm:$0xff]
    %v488 = vld [vmem:[#allocation3 + $0xa48] sm:$0xff]
    %v489 = vld [vmem:[#allocation3 + $0xa50] sm:$0xff]
    %v490 = vld [vmem:[#allocation3 + $0xa58] sm:$0xff]
    %v491 = vld [vmem:[#allocation3 + $0xa60] sm:$0xff]
    %v492 = vld [vmem:[#allocation3 + $0xa68] sm:$0xff]
    %v493 = vld [vmem:[#allocation3 + $0xa70] sm:$0xff]
    %v494 = vld [vmem:[#allocation3 + $0xa78] sm:$0xff]
    %v495 = vld [vmem:[#allocation3 + $0xa80] sm:$0xff]
    %v496 = vld [vmem:[#allocation3 + $0xa88] sm:$0xff]
    %v497 = vld [vmem:[#allocation3 + $0xa90] sm:$0xff]
    %v498 = vld [vmem:[#allocation3 + $0xa98] sm:$0xff]
    %v499 = vld [vmem:[#allocation3 + $0xaa0] sm:$0xff]
    %v500 = vld [vmem:[#allocation3 + $0xaa8] sm:$0xff]
    %v501 = vld [vmem:[#allocation3 + $0xab0] sm:$0xff]
    %v502 = vld [vmem:[#allocation3 + $0xab8] sm:$0xff]
    %v503 = vld [vmem:[#allocation3 + $0xac0] sm:$0xff]
    %v504 = vld [vmem:[#allocation3 + $0xac8] sm:$0xff]
    %v505 = vld [vmem:[#allocation3 + $0xad0] sm:$0xff]
    %v506 = vld [vmem:[#allocation3 + $0xad8] sm:$0xff]
    %v507 = vld [vmem:[#allocation3 + $0xae0] sm:$0xff]
    %v508 = vld [vmem:[#allocation3 + $0xae8] sm:$0xff]
    %v509 = vld [vmem:[#allocation3 + $0xaf0] sm:$0xff]
    %v510 = vld [vmem:[#allocation3 + $0xaf8] sm:$0xff]
    %v511 = vld [vmem:[#allocation3 + $0xb00] sm:$0xff]
    %v512 = vld [vmem:[#allocation3 + $0xb08] sm:$0xff]
    %v513 = vld [vmem:[#allocation3 + $0xb10] sm:$0xff]
    %v514 = vld [vmem:[#allocation3 + $0xb18] sm:$0xff]
    %v515 = vld [vmem:[#allocation3 + $0xb20] sm:$0xff]
    %v516 = vld [vmem:[#allocation3 + $0xb28] sm:$0xff]
    %v517 = vld [vmem:[#allocation3 + $0xb30] sm:$0xff]
    %v518 = vld [vmem:[#allocation3 + $0xb38] sm:$0xff]
    %v519 = vld [vmem:[#allocation3 + $0xb40] sm:$0xff]
    %v520 = vld [vmem:[#allocation3 + $0xb48] sm:$0xff]
    %v521 = vld [vmem:[#allocation3 + $0xb50] sm:$0xff]
    %v522 = vld [vmem:[#allocation3 + $0xb58] sm:$0xff]
    %v523 = vld [vmem:[#allocation3 + $0xb60] sm:$0xff]
    %v524 = vld [vmem:[#allocation3 + $0xb68] sm:$0xff]
    %v525 = vld [vmem:[#allocation3 + $0xb70] sm:$0xff]
    %v526 = vld [vmem:[#allocation3 + $0xb78] sm:$0xff]
    %v527 = vld [vmem:[#allocation3 + $0xb80] sm:$0xff]
    %v528 = vld [vmem:[#allocation3 + $0xb88] sm:$0xff]
    %v529 = vld [vmem:[#allocation3 + $0xb90] sm:$0xff]
    %v530 = vld [vmem:[#allocation3 + $0xb98] sm:$0xff]
    %v531 = vld [vmem:[#allocation3 + $0xba0] sm:$0xff]
    %v532 = vld [vmem:[#allocation3 + $0xba8] sm:$0xff]
    %v533 = vld [vmem:[#allocation3 + $0xbb0] sm:$0xff]
    %v534 = vld [vmem:[#allocation3 + $0xbb8] sm:$0xff]
    %v535 = vld [vmem:[#allocation3 + $0xbc0] sm:$0xff]
    %v536 = vld [vmem:[#allocation3 + $0xbc8] sm:$0xff]
    %v537 = vld [vmem:[#allocation3 + $0xbd0] sm:$0xff]
    %v538 = vld [vmem:[#allocation3 + $0xbd8] sm:$0xff]
    %v539 = vld [vmem:[#allocation3 + $0xbe0] sm:$0xff]
    %v540 = vld [vmem:[#allocation3 + $0xbe8] sm:$0xff]
    %v541 = vld [vmem:[#allocation3 + $0xbf0] sm:$0xff]
    %v542 = vld [vmem:[#allocation3 + $0xbf8] sm:$0xff]
    %v543 = vld [vmem:[#allocation3 + $0xc00] sm:$0xff]
    %v544 = vld [vmem:[#allocation3 + $0xc08] sm:$0xff]
    %v545 = vld [vmem:[#allocation3 + $0xc10] sm:$0xff]
    %v546 = vld [vmem:[#allocation3 + $0xc18] sm:$0xff]
    %v547 = vld [vmem:[#allocation3 + $0xc20] sm:$0xff]
    %v548 = vld [vmem:[#allocation3 + $0xc28] sm:$0xff]
    %v549 = vld [vmem:[#allocation3 + $0xc30] sm:$0xff]
    %v550 = vld [vmem:[#allocation3 + $0xc38] sm:$0xff]
    %v551 = vld [vmem:[#allocation3 + $0xc40] sm:$0xff]
    %v552 = vld [vmem:[#allocation3 + $0xc48] sm:$0xff]
    %v553 = vld [vmem:[#allocation3 + $0xc50] sm:$0xff]
    %v554 = vld [vmem:[#allocation3 + $0xc58] sm:$0xff]
    %v555 = vld [vmem:[#allocation3 + $0xc60] sm:$0xff]
    %v556 = vld [vmem:[#allocation3 + $0xc68] sm:$0xff]
    %v557 = vld [vmem:[#allocation3 + $0xc70] sm:$0xff]
    %v558 = vld [vmem:[#allocation3 + $0xc78] sm:$0xff]
    %v559 = vld [vmem:[#allocation3 + $0xc80] sm:$0xff]
    %v560 = vld [vmem:[#allocation3 + $0xc88] sm:$0xff]
    %v561 = vld [vmem:[#allocation3 + $0xc90] sm:$0xff]
    %v562 = vld [vmem:[#allocation3 + $0xc98] sm:$0xff]
    %v563 = vld [vmem:[#allocation3 + $0xca0] sm:$0xff]
    %v564 = vld [vmem:[#allocation3 + $0xca8] sm:$0xff]
    %v565 = vld [vmem:[#allocation3 + $0xcb0] sm:$0xff]
    %v566 = vld [vmem:[#allocation3 + $0xcb8] sm:$0xff]
    %v567 = vld [vmem:[#allocation3 + $0xcc0] sm:$0xff]
    %v568 = vld [vmem:[#allocation3 + $0xcc8] sm:$0xff]
    %v569 = vld [vmem:[#allocation3 + $0xcd0] sm:$0xff]
    %v570 = vld [vmem:[#allocation3 + $0xcd8] sm:$0xff]
    %v571 = vld [vmem:[#allocation3 + $0xce0] sm:$0xff]
    %v572 = vld [vmem:[#allocation3 + $0xce8] sm:$0xff]
    %v573 = vld [vmem:[#allocation3 + $0xcf0] sm:$0xff]
    %v574 = vld [vmem:[#allocation3 + $0xcf8] sm:$0xff]
    %v575 = vld [vmem:[#allocation3 + $0xd00] sm:$0xff]
    %v576 = vld [vmem:[#allocation3 + $0xd08] sm:$0xff]
    %v577 = vld [vmem:[#allocation3 + $0xd10] sm:$0xff]
    %v578 = vld [vmem:[#allocation3 + $0xd18] sm:$0xff]
    %v579 = vld [vmem:[#allocation3 + $0xd20] sm:$0xff]
    %v580 = vld [vmem:[#allocation3 + $0xd28] sm:$0xff]
    %v581 = vld [vmem:[#allocation3 + $0xd30] sm:$0xff]
    %v582 = vld [vmem:[#allocation3 + $0xd38] sm:$0xff]
    %v583 = vld [vmem:[#allocation3 + $0xd40] sm:$0xff]
    %v584 = vld [vmem:[#allocation3 + $0xd48] sm:$0xff]
    %v585 = vld [vmem:[#allocation3 + $0xd50] sm:$0xff]
    %v586 = vld [vmem:[#allocation3 + $0xd58] sm:$0xff]
    %v587 = vld [vmem:[#allocation3 + $0xd60] sm:$0xff]
    %v588 = vld [vmem:[#allocation3 + $0xd68] sm:$0xff]
    %v589 = vld [vmem:[#allocation3 + $0xd70] sm:$0xff]
    %v590 = vld [vmem:[#allocation3 + $0xd78] sm:$0xff]
    %v591 = vld [vmem:[#allocation3 + $0xd80] sm:$0xff]
    %v592 = vld [vmem:[#allocation3 + $0xd88] sm:$0xff]
    %v593 = vld [vmem:[#allocation3 + $0xd90] sm:$0xff]
    %v594 = vld [vmem:[#allocation3 + $0xd98] sm:$0xff]
    %v595 = vld [vmem:[#allocation3 + $0xda0] sm:$0xff]
    %v596 = vld [vmem:[#allocation3 + $0xda8] sm:$0xff]
    %v597 = vld [vmem:[#allocation3 + $0xdb0] sm:$0xff]
    %v598 = vld [vmem:[#allocation3 + $0xdb8] sm:$0xff]
    %v599 = vld [vmem:[#allocation3 + $0xdc0] sm:$0xff]
    %v600 = vld [vmem:[#allocation3 + $0xdc8] sm:$0xff]
    %v601 = vld [vmem:[#allocation3 + $0xdd0] sm:$0xff]
    %v602 = vld [vmem:[#allocation3 + $0xdd8] sm:$0xff]
    %v603 = vld [vmem:[#allocation3 + $0xde0] sm:$0xff]
    %v604 = vld [vmem:[#allocation3 + $0xde8] sm:$0xff]
    %v605 = vld [vmem:[#allocation3 + $0xdf0] sm:$0xff]
    %v606 = vld [vmem:[#allocation3 + $0xdf8] sm:$0xff]
    %v607 = vld [vmem:[#allocation5] sm:$0xff]
    %v609 = vperm.slane %v607, 0
    %v610 = vperm.slane %v607, 1
    %v611 = vperm.slane %v607, 2
    %v612 = vperm.slane %v607, 3
    %v613 = vperm.slane %v607, 4
    %v614 = vperm.slane %v607, 5
    %v615 = vperm.slane %v607, 6
    %v616 = vperm.slane %v607, 7
    %v629 = vunpack.c.l.b16 %v155
    %v630 = vunpack.c.h.b16 %v155
    %v631 = vunpack.c.l.b16 %v156
    %v632 = vunpack.c.h.b16 %v156
    %v633 = vunpack.c.l.b16 %v157
    %v634 = vunpack.c.h.b16 %v157
    %v635 = vunpack.c.l.b16 %v158
    %v636 = vpack.c.b16 %v629, %v629
    %v637 = vpack.c.b16 %v630, %v630
    %v638 = vpack.c.b16 %v631, %v631
    %v639 = vpack.c.b16 %v632, %v632
    %v640 = vpack.c.b16 %v633, %v633
    %v641 = vpack.c.b16 %v634, %v634
    %v642 = vpack.c.b16 %v635, %v635
    %v1098 = vunpack.c.l.b16 %v159
    %v1099 = vunpack.c.h.b16 %v159
    %v1100 = vunpack.c.l.b16 %v160
    %v1101 = vunpack.c.h.b16 %v160
    %v1102 = vunpack.c.l.b16 %v161
    %v1103 = vunpack.c.h.b16 %v161
    %v1104 = vunpack.c.l.b16 %v162
    %v1105 = vunpack.c.h.b16 %v162
    %v1106 = vunpack.c.l.b16 %v163
    %v1107 = vunpack.c.h.b16 %v163
    %v1108 = vunpack.c.l.b16 %v164
    %v1109 = vunpack.c.h.b16 %v164
    %v1110 = vunpack.c.l.b16 %v165
    %v1111 = vunpack.c.h.b16 %v165
    %v1112 = vunpack.c.l.b16 %v166
    %v1113 = vunpack.c.h.b16 %v166
    %v1114 = vunpack.c.l.b16 %v167
    %v1115 = vunpack.c.h.b16 %v167
    %v1116 = vunpack.c.l.b16 %v168
    %v1117 = vunpack.c.h.b16 %v168
    %v1118 = vunpack.c.l.b16 %v169
    %v1119 = vunpack.c.h.b16 %v169
    %v1120 = vunpack.c.l.b16 %v170
    %v1121 = vunpack.c.h.b16 %v170
    %v1122 = vunpack.c.l.b16 %v171
    %v1123 = vunpack.c.h.b16 %v171
    %v1124 = vunpack.c.l.b16 %v172
    %v1125 = vunpack.c.h.b16 %v172
    %v1126 = vunpack.c.l.b16 %v173
    %v1127 = vunpack.c.h.b16 %v173
    %v1128 = vunpack.c.l.b16 %v174
    %v1129 = vunpack.c.h.b16 %v174
    %v1130 = vunpack.c.l.b16 %v175
    %v1131 = vunpack.c.h.b16 %v175
    %v1132 = vunpack.c.l.b16 %v176
    %v1133 = vunpack.c.h.b16 %v176
    %v1134 = vunpack.c.l.b16 %v177
    %v1135 = vunpack.c.h.b16 %v177
    %v1136 = vunpack.c.l.b16 %v178
    %v1137 = vunpack.c.h.b16 %v178
    %v1138 = vunpack.c.l.b16 %v179
    %v1139 = vunpack.c.h.b16 %v179
    %v1140 = vunpack.c.l.b16 %v180
    %v1141 = vunpack.c.h.b16 %v180
    %v1142 = vunpack.c.l.b16 %v181
    %v1143 = vunpack.c.h.b16 %v181
    %v1144 = vunpack.c.l.b16 %v182
    %v1145 = vunpack.c.h.b16 %v182
    %v1146 = vunpack.c.l.b16 %v183
    %v1147 = vunpack.c.h.b16 %v183
    %v1148 = vunpack.c.l.b16 %v184
    %v1149 = vunpack.c.h.b16 %v184
    %v1150 = vunpack.c.l.b16 %v185
    %v1151 = vunpack.c.h.b16 %v185
    %v1152 = vunpack.c.l.b16 %v186
    %v1153 = vunpack.c.h.b16 %v186
    %v1154 = vunpack.c.l.b16 %v187
    %v1155 = vunpack.c.h.b16 %v187
    %v1156 = vunpack.c.l.b16 %v188
    %v1157 = vunpack.c.h.b16 %v188
    %v1158 = vunpack.c.l.b16 %v189
    %v1159 = vunpack.c.h.b16 %v189
    %v1160 = vunpack.c.l.b16 %v190
    %v1161 = vunpack.c.h.b16 %v190
    %v1162 = vunpack.c.l.b16 %v191
    %v1163 = vunpack.c.h.b16 %v191
    %v1164 = vunpack.c.l.b16 %v192
    %v1165 = vunpack.c.h.b16 %v192
    %v1166 = vunpack.c.l.b16 %v193
    %v1167 = vunpack.c.h.b16 %v193
    %v1168 = vunpack.c.l.b16 %v194
    %v1169 = vunpack.c.h.b16 %v194
    %v1170 = vunpack.c.l.b16 %v195
    %v1171 = vunpack.c.h.b16 %v195
    %v1172 = vunpack.c.l.b16 %v196
    %v1173 = vunpack.c.h.b16 %v196
    %v1174 = vunpack.c.l.b16 %v197
    %v1175 = vunpack.c.h.b16 %v197
    %v1176 = vunpack.c.l.b16 %v198
    %v1177 = vunpack.c.h.b16 %v198
    %v1178 = vunpack.c.l.b16 %v199
    %v1179 = vunpack.c.h.b16 %v199
    %v1180 = vunpack.c.l.b16 %v200
    %v1181 = vunpack.c.h.b16 %v200
    %v1182 = vunpack.c.l.b16 %v201
    %v1183 = vunpack.c.h.b16 %v201
    %v1184 = vunpack.c.l.b16 %v202
    %v1185 = vunpack.c.h.b16 %v202
    %v1186 = vunpack.c.l.b16 %v203
    %v1187 = vunpack.c.h.b16 %v203
    %v1188 = vunpack.c.l.b16 %v204
    %v1189 = vunpack.c.h.b16 %v204
    %v1190 = vunpack.c.l.b16 %v205
    %v1191 = vunpack.c.h.b16 %v205
    %v1192 = vunpack.c.l.b16 %v206
    %v1193 = vunpack.c.h.b16 %v206
    %v1194 = vunpack.c.l.b16 %v207
    %v1195 = vunpack.c.h.b16 %v207
    %v1196 = vunpack.c.l.b16 %v208
    %v1197 = vunpack.c.h.b16 %v208
    %v1198 = vunpack.c.l.b16 %v209
    %v1199 = vunpack.c.h.b16 %v209
    %v1200 = vunpack.c.l.b16 %v210
    %v1201 = vunpack.c.h.b16 %v210
    %v1202 = vunpack.c.l.b16 %v211
    %v1203 = vunpack.c.h.b16 %v211
    %v1204 = vunpack.c.l.b16 %v212
    %v1205 = vunpack.c.h.b16 %v212
    %v1206 = vunpack.c.l.b16 %v213
    %v1207 = vunpack.c.h.b16 %v213
    %v1208 = vunpack.c.l.b16 %v214
    %v1209 = vunpack.c.h.b16 %v214
    %v1210 = vunpack.c.l.b16 %v215
    %v1211 = vunpack.c.h.b16 %v215
    %v1212 = vunpack.c.l.b16 %v216
    %v1213 = vunpack.c.h.b16 %v216
    %v1214 = vunpack.c.l.b16 %v217
    %v1215 = vunpack.c.h.b16 %v217
    %v1216 = vunpack.c.l.b16 %v218
    %v1217 = vunpack.c.h.b16 %v218
    %v1218 = vunpack.c.l.b16 %v219
    %v1219 = vunpack.c.h.b16 %v219
    %v1220 = vunpack.c.l.b16 %v220
    %v1221 = vunpack.c.h.b16 %v220
    %v1222 = vunpack.c.l.b16 %v221
    %v1223 = vunpack.c.h.b16 %v221
    %v1224 = vunpack.c.l.b16 %v222
    %v1225 = vunpack.c.h.b16 %v222
    %v1226 = vunpack.c.l.b16 %v223
    %v1227 = vunpack.c.h.b16 %v223
    %v1228 = vunpack.c.l.b16 %v224
    %v1229 = vunpack.c.h.b16 %v224
    %v1230 = vunpack.c.l.b16 %v225
    %v1231 = vunpack.c.h.b16 %v225
    %v1232 = vunpack.c.l.b16 %v226
    %v1233 = vunpack.c.h.b16 %v226
    %v1234 = vunpack.c.l.b16 %v227
    %v1235 = vunpack.c.h.b16 %v227
    %v1236 = vunpack.c.l.b16 %v228
    %v1237 = vunpack.c.h.b16 %v228
    %v1238 = vunpack.c.l.b16 %v229
    %v1239 = vunpack.c.h.b16 %v229
    %v1240 = vunpack.c.l.b16 %v230
    %v1241 = vunpack.c.h.b16 %v230
    %v1242 = vunpack.c.l.b16 %v231
    %v1243 = vunpack.c.h.b16 %v231
    %v1244 = vunpack.c.l.b16 %v232
    %v1245 = vunpack.c.h.b16 %v232
    %v1246 = vunpack.c.l.b16 %v233
    %v1247 = vunpack.c.h.b16 %v233
    %v1248 = vunpack.c.l.b16 %v234
    %v1249 = vunpack.c.h.b16 %v234
    %v1250 = vunpack.c.l.b16 %v235
    %v1251 = vunpack.c.h.b16 %v235
    %v1252 = vunpack.c.l.b16 %v236
    %v1253 = vunpack.c.h.b16 %v236
    %v1254 = vunpack.c.l.b16 %v237
    %v1255 = vunpack.c.h.b16 %v237
    %v1256 = vunpack.c.l.b16 %v238
    %v1257 = vunpack.c.h.b16 %v238
    %v1258 = vunpack.c.l.b16 %v239
    %v1259 = vunpack.c.h.b16 %v239
    %v1260 = vunpack.c.l.b16 %v240
    %v1261 = vunpack.c.h.b16 %v240
    %v1262 = vunpack.c.l.b16 %v241
    %v1263 = vunpack.c.h.b16 %v241
    %v1264 = vunpack.c.l.b16 %v242
    %v1265 = vunpack.c.h.b16 %v242
    %v1266 = vunpack.c.l.b16 %v243
    %v1267 = vunpack.c.h.b16 %v243
    %v1268 = vunpack.c.l.b16 %v244
    %v1269 = vunpack.c.h.b16 %v244
    %v1270 = vunpack.c.l.b16 %v245
    %v1271 = vunpack.c.h.b16 %v245
    %v1272 = vunpack.c.l.b16 %v246
    %v1273 = vunpack.c.h.b16 %v246
    %v1274 = vunpack.c.l.b16 %v247
    %v1275 = vunpack.c.h.b16 %v247
    %v1276 = vunpack.c.l.b16 %v248
    %v1277 = vunpack.c.h.b16 %v248
    %v1278 = vunpack.c.l.b16 %v249
    %v1279 = vunpack.c.h.b16 %v249
    %v1280 = vunpack.c.l.b16 %v250
    %v1281 = vunpack.c.h.b16 %v250
    %v1282 = vunpack.c.l.b16 %v251
    %v1283 = vunpack.c.h.b16 %v251
    %v1284 = vunpack.c.l.b16 %v252
    %v1285 = vunpack.c.h.b16 %v252
    %v1286 = vunpack.c.l.b16 %v253
    %v1287 = vunpack.c.h.b16 %v253
    %v1288 = vunpack.c.l.b16 %v254
    %v1289 = vunpack.c.h.b16 %v254
    %v1290 = vunpack.c.l.b16 %v255
    %v1291 = vunpack.c.h.b16 %v255
    %v1292 = vunpack.c.l.b16 %v256
    %v1293 = vunpack.c.h.b16 %v256
    %v1294 = vunpack.c.l.b16 %v257
    %v1295 = vunpack.c.h.b16 %v257
    %v1296 = vunpack.c.l.b16 %v258
    %v1297 = vunpack.c.h.b16 %v258
    %v1298 = vunpack.c.l.b16 %v259
    %v1299 = vunpack.c.h.b16 %v259
    %v1300 = vunpack.c.l.b16 %v260
    %v1301 = vunpack.c.h.b16 %v260
    %v1302 = vunpack.c.l.b16 %v261
    %v1303 = vunpack.c.h.b16 %v261
    %v1304 = vunpack.c.l.b16 %v262
    %v1305 = vunpack.c.h.b16 %v262
    %v1306 = vunpack.c.l.b16 %v263
    %v1307 = vunpack.c.h.b16 %v263
    %v1308 = vunpack.c.l.b16 %v264
    %v1309 = vunpack.c.h.b16 %v264
    %v1310 = vunpack.c.l.b16 %v265
    %v1311 = vunpack.c.h.b16 %v265
    %v1312 = vunpack.c.l.b16 %v266
    %v1313 = vunpack.c.h.b16 %v266
    %v1314 = vunpack.c.l.b16 %v267
    %v1315 = vunpack.c.h.b16 %v267
    %v1316 = vunpack.c.l.b16 %v268
    %v1317 = vunpack.c.h.b16 %v268
    %v1318 = vunpack.c.l.b16 %v269
    %v1319 = vunpack.c.h.b16 %v269
    %v1320 = vunpack.c.l.b16 %v270
    %v1321 = vunpack.c.h.b16 %v270
    %v1322 = vunpack.c.l.b16 %v271
    %v1323 = vunpack.c.h.b16 %v271
    %v1324 = vunpack.c.l.b16 %v272
    %v1325 = vunpack.c.h.b16 %v272
    %v1326 = vunpack.c.l.b16 %v273
    %v1327 = vunpack.c.h.b16 %v273
    %v1328 = vunpack.c.l.b16 %v274
    %v1329 = vunpack.c.h.b16 %v274
    %v1330 = vunpack.c.l.b16 %v275
    %v1331 = vunpack.c.h.b16 %v275
    %v1332 = vunpack.c.l.b16 %v276
    %v1333 = vunpack.c.h.b16 %v276
    %v1334 = vunpack.c.l.b16 %v277
    %v1335 = vunpack.c.h.b16 %v277
    %v1336 = vunpack.c.l.b16 %v278
    %v1337 = vunpack.c.h.b16 %v278
    %v1338 = vunpack.c.l.b16 %v279
    %v1339 = vunpack.c.h.b16 %v279
    %v1340 = vunpack.c.l.b16 %v280
    %v1341 = vunpack.c.h.b16 %v280
    %v1342 = vunpack.c.l.b16 %v281
    %v1343 = vunpack.c.h.b16 %v281
    %v1344 = vunpack.c.l.b16 %v282
    %v1345 = vunpack.c.h.b16 %v282
    %v1346 = vunpack.c.l.b16 %v283
    %v1347 = vunpack.c.h.b16 %v283
    %v1348 = vunpack.c.l.b16 %v284
    %v1349 = vunpack.c.h.b16 %v284
    %v1350 = vunpack.c.l.b16 %v285
    %v1351 = vunpack.c.h.b16 %v285
    %v1352 = vunpack.c.l.b16 %v286
    %v1353 = vunpack.c.h.b16 %v286
    %v1354 = vunpack.c.l.b16 %v287
    %v1355 = vunpack.c.h.b16 %v287
    %v1356 = vunpack.c.l.b16 %v288
    %v1357 = vunpack.c.h.b16 %v288
    %v1358 = vunpack.c.l.b16 %v289
    %v1359 = vunpack.c.h.b16 %v289
    %v1360 = vunpack.c.l.b16 %v290
    %v1361 = vunpack.c.h.b16 %v290
    %v1362 = vunpack.c.l.b16 %v291
    %v1363 = vunpack.c.h.b16 %v291
    %v1364 = vunpack.c.l.b16 %v292
    %v1365 = vunpack.c.h.b16 %v292
    %v1366 = vunpack.c.l.b16 %v293
    %v1367 = vunpack.c.h.b16 %v293
    %v1368 = vunpack.c.l.b16 %v294
    %v1369 = vunpack.c.h.b16 %v294
    %v1370 = vunpack.c.l.b16 %v295
    %v1371 = vunpack.c.h.b16 %v295
    %v1372 = vunpack.c.l.b16 %v296
    %v1373 = vunpack.c.h.b16 %v296
    %v1374 = vunpack.c.l.b16 %v297
    %v1375 = vunpack.c.h.b16 %v297
    %v1376 = vunpack.c.l.b16 %v298
    %v1377 = vunpack.c.h.b16 %v298
    %v1378 = vunpack.c.l.b16 %v299
    %v1379 = vunpack.c.h.b16 %v299
    %v1380 = vunpack.c.l.b16 %v300
    %v1381 = vunpack.c.h.b16 %v300
    %v1382 = vunpack.c.l.b16 %v301
    %v1383 = vunpack.c.h.b16 %v301
    %v1384 = vunpack.c.l.b16 %v302
    %v1385 = vunpack.c.h.b16 %v302
    %v1386 = vunpack.c.l.b16 %v303
    %v1387 = vunpack.c.h.b16 %v303
    %v1388 = vunpack.c.l.b16 %v304
    %v1389 = vunpack.c.h.b16 %v304
    %v1390 = vunpack.c.l.b16 %v305
    %v1391 = vunpack.c.h.b16 %v305
    %v1392 = vunpack.c.l.b16 %v306
    %v1393 = vunpack.c.h.b16 %v306
    %v1394 = vunpack.c.l.b16 %v307
    %v1395 = vunpack.c.h.b16 %v307
    %v1396 = vunpack.c.l.b16 %v308
    %v1397 = vunpack.c.h.b16 %v308
    %v1398 = vunpack.c.l.b16 %v309
    %v1399 = vunpack.c.h.b16 %v309
    %v1400 = vunpack.c.l.b16 %v310
    %v1401 = vunpack.c.h.b16 %v310
    %v1402 = vunpack.c.l.b16 %v311
    %v1403 = vunpack.c.h.b16 %v311
    %v1404 = vunpack.c.l.b16 %v312
    %v1405 = vunpack.c.h.b16 %v312
    %v1406 = vunpack.c.l.b16 %v313
    %v1407 = vunpack.c.h.b16 %v313
    %v1408 = vunpack.c.l.b16 %v314
    %v1409 = vunpack.c.h.b16 %v314
    %v1410 = vunpack.c.l.b16 %v315
    %v1411 = vunpack.c.h.b16 %v315
    %v1412 = vunpack.c.l.b16 %v316
    %v1413 = vunpack.c.h.b16 %v316
    %v1414 = vunpack.c.l.b16 %v317
    %v1415 = vunpack.c.h.b16 %v317
    %v1416 = vunpack.c.l.b16 %v318
    %v1417 = vunpack.c.h.b16 %v318
    %v1418 = vunpack.c.l.b16 %v319
    %v1419 = vunpack.c.h.b16 %v319
    %v1420 = vunpack.c.l.b16 %v320
    %v1421 = vunpack.c.h.b16 %v320
    %v1422 = vunpack.c.l.b16 %v321
    %v1423 = vunpack.c.h.b16 %v321
    %v1424 = vunpack.c.l.b16 %v322
    %v1425 = vunpack.c.h.b16 %v322
    %v1426 = vunpack.c.l.b16 %v323
    %v1427 = vunpack.c.h.b16 %v323
    %v1428 = vunpack.c.l.b16 %v324
    %v1429 = vunpack.c.h.b16 %v324
    %v1430 = vunpack.c.l.b16 %v325
    %v1431 = vunpack.c.h.b16 %v325
    %v1432 = vunpack.c.l.b16 %v326
    %v1433 = vunpack.c.h.b16 %v326
    %v1434 = vunpack.c.l.b16 %v327
    %v1435 = vunpack.c.h.b16 %v327
    %v1436 = vunpack.c.l.b16 %v328
    %v1437 = vunpack.c.h.b16 %v328
    %v1438 = vunpack.c.l.b16 %v329
    %v1439 = vunpack.c.h.b16 %v329
    %v1440 = vunpack.c.l.b16 %v330
    %v1441 = vunpack.c.h.b16 %v330
    %v1442 = vunpack.c.l.b16 %v331
    %v1443 = vunpack.c.h.b16 %v331
    %v1444 = vunpack.c.l.b16 %v332
    %v1445 = vunpack.c.h.b16 %v332
    %v1446 = vunpack.c.l.b16 %v333
    %v1447 = vunpack.c.h.b16 %v333
    %v1448 = vunpack.c.l.b16 %v334
    %v1449 = vunpack.c.h.b16 %v334
    %v1450 = vunpack.c.l.b16 %v335
    %v1451 = vunpack.c.h.b16 %v335
    %v1452 = vunpack.c.l.b16 %v336
    %v1453 = vunpack.c.h.b16 %v336
    %v1454 = vunpack.c.l.b16 %v337
    %v1455 = vunpack.c.h.b16 %v337
    %v1456 = vunpack.c.l.b16 %v338
    %v1457 = vunpack.c.h.b16 %v338
    %v1458 = vunpack.c.l.b16 %v339
    %v1459 = vunpack.c.h.b16 %v339
    %v1460 = vunpack.c.l.b16 %v340
    %v1461 = vunpack.c.h.b16 %v340
    %v1462 = vunpack.c.l.b16 %v341
    %v1463 = vunpack.c.h.b16 %v341
    %v1464 = vunpack.c.l.b16 %v342
    %v1465 = vunpack.c.h.b16 %v342
    %v1466 = vunpack.c.l.b16 %v343
    %v1467 = vunpack.c.h.b16 %v343
    %v1468 = vunpack.c.l.b16 %v344
    %v1469 = vunpack.c.h.b16 %v344
    %v1470 = vunpack.c.l.b16 %v345
    %v1471 = vunpack.c.h.b16 %v345
    %v1472 = vunpack.c.l.b16 %v346
    %v1473 = vunpack.c.h.b16 %v346
    %v1474 = vunpack.c.l.b16 %v347
    %v1475 = vunpack.c.h.b16 %v347
    %v1476 = vunpack.c.l.b16 %v348
    %v1477 = vunpack.c.h.b16 %v348
    %v1478 = vunpack.c.l.b16 %v349
    %v1479 = vunpack.c.h.b16 %v349
    %v1480 = vunpack.c.l.b16 %v350
    %v1481 = vunpack.c.h.b16 %v350
    %v1482 = vunpack.c.l.b16 %v351
    %v1483 = vunpack.c.h.b16 %v351
    %v1484 = vunpack.c.l.b16 %v352
    %v1485 = vunpack.c.h.b16 %v352
    %v1486 = vunpack.c.l.b16 %v353
    %v1487 = vunpack.c.h.b16 %v353
    %v1488 = vunpack.c.l.b16 %v354
    %v1489 = vunpack.c.h.b16 %v354
    %v1490 = vunpack.c.l.b16 %v355
    %v1491 = vunpack.c.h.b16 %v355
    %v1492 = vunpack.c.l.b16 %v356
    %v1493 = vunpack.c.h.b16 %v356
    %v1494 = vunpack.c.l.b16 %v357
    %v1495 = vunpack.c.h.b16 %v357
    %v1496 = vunpack.c.l.b16 %v358
    %v1497 = vunpack.c.h.b16 %v358
    %v1498 = vunpack.c.l.b16 %v359
    %v1499 = vunpack.c.h.b16 %v359
    %v1500 = vunpack.c.l.b16 %v360
    %v1501 = vunpack.c.h.b16 %v360
    %v1502 = vunpack.c.l.b16 %v361
    %v1503 = vunpack.c.h.b16 %v361
    %v1504 = vunpack.c.l.b16 %v362
    %v1505 = vunpack.c.h.b16 %v362
    %v1506 = vunpack.c.l.b16 %v363
    %v1507 = vunpack.c.h.b16 %v363
    %v1508 = vunpack.c.l.b16 %v364
    %v1509 = vunpack.c.h.b16 %v364
    %v1510 = vunpack.c.l.b16 %v365
    %v1511 = vunpack.c.h.b16 %v365
    %v1512 = vunpack.c.l.b16 %v366
    %v1513 = vunpack.c.h.b16 %v366
    %v1514 = vunpack.c.l.b16 %v367
    %v1515 = vunpack.c.h.b16 %v367
    %v1516 = vunpack.c.l.b16 %v368
    %v1517 = vunpack.c.h.b16 %v368
    %v1518 = vunpack.c.l.b16 %v369
    %v1519 = vunpack.c.h.b16 %v369
    %v1520 = vunpack.c.l.b16 %v370
    %v1521 = vunpack.c.h.b16 %v370
    %v1522 = vunpack.c.l.b16 %v371
    %v1523 = vunpack.c.h.b16 %v371
    %v1524 = vunpack.c.l.b16 %v372
    %v1525 = vunpack.c.h.b16 %v372
    %v1526 = vunpack.c.l.b16 %v373
    %v1527 = vunpack.c.h.b16 %v373
    %v1528 = vunpack.c.l.b16 %v374
    %v1529 = vunpack.c.h.b16 %v374
    %v1530 = vunpack.c.l.b16 %v375
    %v1531 = vunpack.c.h.b16 %v375
    %v1532 = vunpack.c.l.b16 %v376
    %v1533 = vunpack.c.h.b16 %v376
    %v1534 = vunpack.c.l.b16 %v377
    %v1535 = vunpack.c.h.b16 %v377
    %v1536 = vunpack.c.l.b16 %v378
    %v1537 = vunpack.c.h.b16 %v378
    %v1538 = vunpack.c.l.b16 %v379
    %v1539 = vunpack.c.h.b16 %v379
    %v1540 = vunpack.c.l.b16 %v380
    %v1541 = vunpack.c.h.b16 %v380
    %v1542 = vunpack.c.l.b16 %v381
    %v1543 = vunpack.c.h.b16 %v381
    %v1544 = vunpack.c.l.b16 %v382
    %v1545 = vunpack.c.h.b16 %v382
    %v1546 = vunpack.c.l.b16 %v383
    %v1547 = vunpack.c.h.b16 %v383
    %v1548 = vunpack.c.l.b16 %v384
    %v1549 = vunpack.c.h.b16 %v384
    %v1550 = vunpack.c.l.b16 %v385
    %v1551 = vunpack.c.h.b16 %v385
    %v1552 = vunpack.c.l.b16 %v386
    %v1553 = vunpack.c.h.b16 %v386
    %v1554 = vunpack.c.l.b16 %v387
    %v1555 = vunpack.c.h.b16 %v387
    %v1556 = vunpack.c.l.b16 %v388
    %v1557 = vunpack.c.h.b16 %v388
    %v1558 = vunpack.c.l.b16 %v389
    %v1559 = vunpack.c.h.b16 %v389
    %v1560 = vunpack.c.l.b16 %v390
    %v1561 = vunpack.c.h.b16 %v390
    %v1562 = vunpack.c.l.b16 %v391
    %v1563 = vunpack.c.h.b16 %v391
    %v1564 = vunpack.c.l.b16 %v392
    %v1565 = vunpack.c.h.b16 %v392
    %v1566 = vunpack.c.l.b16 %v393
    %v1567 = vunpack.c.h.b16 %v393
    %v1568 = vunpack.c.l.b16 %v394
    %v1569 = vunpack.c.h.b16 %v394
    %v1570 = vunpack.c.l.b16 %v395
    %v1571 = vunpack.c.h.b16 %v395
    %v1572 = vunpack.c.l.b16 %v396
    %v1573 = vunpack.c.h.b16 %v396
    %v1574 = vunpack.c.l.b16 %v397
    %v1575 = vunpack.c.h.b16 %v397
    %v1576 = vunpack.c.l.b16 %v398
    %v1577 = vunpack.c.h.b16 %v398
    %v1578 = vunpack.c.l.b16 %v399
    %v1579 = vunpack.c.h.b16 %v399
    %v1580 = vunpack.c.l.b16 %v400
    %v1581 = vunpack.c.h.b16 %v400
    %v1582 = vunpack.c.l.b16 %v401
    %v1583 = vunpack.c.h.b16 %v401
    %v1584 = vunpack.c.l.b16 %v402
    %v1585 = vunpack.c.h.b16 %v402
    %v1586 = vunpack.c.l.b16 %v403
    %v1587 = vunpack.c.h.b16 %v403
    %v1588 = vunpack.c.l.b16 %v404
    %v1589 = vunpack.c.h.b16 %v404
    %v1590 = vunpack.c.l.b16 %v405
    %v1591 = vunpack.c.h.b16 %v405
    %v1592 = vunpack.c.l.b16 %v406
    %v1593 = vunpack.c.h.b16 %v406
    %v1594 = vunpack.c.l.b16 %v407
    %v1595 = vunpack.c.h.b16 %v407
    %v1596 = vunpack.c.l.b16 %v408
    %v1597 = vunpack.c.h.b16 %v408
    %v1598 = vunpack.c.l.b16 %v409
    %v1599 = vunpack.c.h.b16 %v409
    %v1600 = vunpack.c.l.b16 %v410
    %v1601 = vunpack.c.h.b16 %v410
    %v1602 = vunpack.c.l.b16 %v411
    %v1603 = vunpack.c.h.b16 %v411
    %v1604 = vunpack.c.l.b16 %v412
    %v1605 = vunpack.c.h.b16 %v412
    %v1606 = vunpack.c.l.b16 %v413
    %v1607 = vunpack.c.h.b16 %v413
    %v1608 = vunpack.c.l.b16 %v414
    %v1609 = vunpack.c.h.b16 %v414
    %v1610 = vunpack.c.l.b16 %v415
    %v1611 = vunpack.c.h.b16 %v415
    %v1612 = vunpack.c.l.b16 %v416
    %v1613 = vunpack.c.h.b16 %v416
    %v1614 = vunpack.c.l.b16 %v417
    %v1615 = vunpack.c.h.b16 %v417
    %v1616 = vunpack.c.l.b16 %v418
    %v1617 = vunpack.c.h.b16 %v418
    %v1618 = vunpack.c.l.b16 %v419
    %v1619 = vunpack.c.h.b16 %v419
    %v1620 = vunpack.c.l.b16 %v420
    %v1621 = vunpack.c.h.b16 %v420
    %v1622 = vunpack.c.l.b16 %v421
    %v1623 = vunpack.c.h.b16 %v421
    %v1624 = vunpack.c.l.b16 %v422
    %v1625 = vunpack.c.h.b16 %v422
    %v1626 = vunpack.c.l.b16 %v423
    %v1627 = vunpack.c.h.b16 %v423
    %v1628 = vunpack.c.l.b16 %v424
    %v1629 = vunpack.c.h.b16 %v424
    %v1630 = vunpack.c.l.b16 %v425
    %v1631 = vunpack.c.h.b16 %v425
    %v1632 = vunpack.c.l.b16 %v426
    %v1633 = vunpack.c.h.b16 %v426
    %v1634 = vunpack.c.l.b16 %v427
    %v1635 = vunpack.c.h.b16 %v427
    %v1636 = vunpack.c.l.b16 %v428
    %v1637 = vunpack.c.h.b16 %v428
    %v1638 = vunpack.c.l.b16 %v429
    %v1639 = vunpack.c.h.b16 %v429
    %v1640 = vunpack.c.l.b16 %v430
    %v1641 = vunpack.c.h.b16 %v430
    %v1642 = vunpack.c.l.b16 %v431
    %v1643 = vunpack.c.h.b16 %v431
    %v1644 = vunpack.c.l.b16 %v432
    %v1645 = vunpack.c.h.b16 %v432
    %v1646 = vunpack.c.l.b16 %v433
    %v1647 = vunpack.c.h.b16 %v433
    %v1648 = vunpack.c.l.b16 %v434
    %v1649 = vunpack.c.h.b16 %v434
    %v1650 = vunpack.c.l.b16 %v435
    %v1651 = vunpack.c.h.b16 %v435
    %v1652 = vunpack.c.l.b16 %v436
    %v1653 = vunpack.c.h.b16 %v436
    %v1654 = vunpack.c.l.b16 %v437
    %v1655 = vunpack.c.h.b16 %v437
    %v1656 = vunpack.c.l.b16 %v438
    %v1657 = vunpack.c.h.b16 %v438
    %v1658 = vunpack.c.l.b16 %v439
    %v1659 = vunpack.c.h.b16 %v439
    %v1660 = vunpack.c.l.b16 %v440
    %v1661 = vunpack.c.h.b16 %v440
    %v1662 = vunpack.c.l.b16 %v441
    %v1663 = vunpack.c.h.b16 %v441
    %v1664 = vunpack.c.l.b16 %v442
    %v1665 = vunpack.c.h.b16 %v442
    %v1666 = vunpack.c.l.b16 %v443
    %v1667 = vunpack.c.h.b16 %v443
    %v1668 = vunpack.c.l.b16 %v444
    %v1669 = vunpack.c.h.b16 %v444
    %v1670 = vunpack.c.l.b16 %v445
    %v1671 = vunpack.c.h.b16 %v445
    %v1672 = vunpack.c.l.b16 %v446
    %v1673 = vunpack.c.h.b16 %v446
    %v1674 = vunpack.c.l.b16 %v447
    %v1675 = vunpack.c.h.b16 %v447
    %v1676 = vunpack.c.l.b16 %v448
    %v1677 = vunpack.c.h.b16 %v448
    %v1678 = vunpack.c.l.b16 %v449
    %v1679 = vunpack.c.h.b16 %v449
    %v1680 = vunpack.c.l.b16 %v450
    %v1681 = vunpack.c.h.b16 %v450
    %v1682 = vunpack.c.l.b16 %v451
    %v1683 = vunpack.c.h.b16 %v451
    %v1684 = vunpack.c.l.b16 %v452
    %v1685 = vunpack.c.h.b16 %v452
    %v1686 = vunpack.c.l.b16 %v453
    %v1687 = vunpack.c.h.b16 %v453
    %v1688 = vunpack.c.l.b16 %v454
    %v1689 = vunpack.c.h.b16 %v454
    %v1690 = vunpack.c.l.b16 %v455
    %v1691 = vunpack.c.h.b16 %v455
    %v1692 = vunpack.c.l.b16 %v456
    %v1693 = vunpack.c.h.b16 %v456
    %v1694 = vunpack.c.l.b16 %v457
    %v1695 = vunpack.c.h.b16 %v457
    %v1696 = vunpack.c.l.b16 %v458
    %v1697 = vunpack.c.h.b16 %v458
    %v1698 = vunpack.c.l.b16 %v459
    %v1699 = vunpack.c.h.b16 %v459
    %v1700 = vunpack.c.l.b16 %v460
    %v1701 = vunpack.c.h.b16 %v460
    %v1702 = vunpack.c.l.b16 %v461
    %v1703 = vunpack.c.h.b16 %v461
    %v1704 = vunpack.c.l.b16 %v462
    %v1705 = vunpack.c.h.b16 %v462
    %v1706 = vunpack.c.l.b16 %v463
    %v1707 = vunpack.c.h.b16 %v463
    %v1708 = vunpack.c.l.b16 %v464
    %v1709 = vunpack.c.h.b16 %v464
    %v1710 = vunpack.c.l.b16 %v465
    %v1711 = vunpack.c.h.b16 %v465
    %v1712 = vunpack.c.l.b16 %v466
    %v1713 = vunpack.c.h.b16 %v466
    %v1714 = vunpack.c.l.b16 %v467
    %v1715 = vunpack.c.h.b16 %v467
    %v1716 = vunpack.c.l.b16 %v468
    %v1717 = vunpack.c.h.b16 %v468
    %v1718 = vunpack.c.l.b16 %v469
    %v1719 = vunpack.c.h.b16 %v469
    %v1720 = vunpack.c.l.b16 %v470
    %v1721 = vunpack.c.h.b16 %v470
    %v1722 = vunpack.c.l.b16 %v471
    %v1723 = vunpack.c.h.b16 %v471
    %v1724 = vunpack.c.l.b16 %v472
    %v1725 = vunpack.c.h.b16 %v472
    %v1726 = vunpack.c.l.b16 %v473
    %v1727 = vunpack.c.h.b16 %v473
    %v1728 = vunpack.c.l.b16 %v474
    %v1729 = vunpack.c.h.b16 %v474
    %v1730 = vunpack.c.l.b16 %v475
    %v1731 = vunpack.c.h.b16 %v475
    %v1732 = vunpack.c.l.b16 %v476
    %v1733 = vunpack.c.h.b16 %v476
    %v1734 = vunpack.c.l.b16 %v477
    %v1735 = vunpack.c.h.b16 %v477
    %v1736 = vunpack.c.l.b16 %v478
    %v1737 = vunpack.c.h.b16 %v478
    %v1738 = vunpack.c.l.b16 %v479
    %v1739 = vunpack.c.h.b16 %v479
    %v1740 = vunpack.c.l.b16 %v480
    %v1741 = vunpack.c.h.b16 %v480
    %v1742 = vunpack.c.l.b16 %v481
    %v1743 = vunpack.c.h.b16 %v481
    %v1744 = vunpack.c.l.b16 %v482
    %v1745 = vunpack.c.h.b16 %v482
    %v1746 = vunpack.c.l.b16 %v483
    %v1747 = vunpack.c.h.b16 %v483
    %v1748 = vunpack.c.l.b16 %v484
    %v1749 = vunpack.c.h.b16 %v484
    %v1750 = vunpack.c.l.b16 %v485
    %v1751 = vunpack.c.h.b16 %v485
    %v1752 = vunpack.c.l.b16 %v486
    %v1753 = vunpack.c.h.b16 %v486
    %v1754 = vunpack.c.l.b16 %v487
    %v1755 = vunpack.c.h.b16 %v487
    %v1756 = vunpack.c.l.b16 %v488
    %v1757 = vunpack.c.h.b16 %v488
    %v1758 = vunpack.c.l.b16 %v489
    %v1759 = vunpack.c.h.b16 %v489
    %v1760 = vunpack.c.l.b16 %v490
    %v1761 = vunpack.c.h.b16 %v490
    %v1762 = vunpack.c.l.b16 %v491
    %v1763 = vunpack.c.h.b16 %v491
    %v1764 = vunpack.c.l.b16 %v492
    %v1765 = vunpack.c.h.b16 %v492
    %v1766 = vunpack.c.l.b16 %v493
    %v1767 = vunpack.c.h.b16 %v493
    %v1768 = vunpack.c.l.b16 %v494
    %v1769 = vunpack.c.h.b16 %v494
    %v1770 = vunpack.c.l.b16 %v495
    %v1771 = vunpack.c.h.b16 %v495
    %v1772 = vunpack.c.l.b16 %v496
    %v1773 = vunpack.c.h.b16 %v496
    %v1774 = vunpack.c.l.b16 %v497
    %v1775 = vunpack.c.h.b16 %v497
    %v1776 = vunpack.c.l.b16 %v498
    %v1777 = vunpack.c.h.b16 %v498
    %v1778 = vunpack.c.l.b16 %v499
    %v1779 = vunpack.c.h.b16 %v499
    %v1780 = vunpack.c.l.b16 %v500
    %v1781 = vunpack.c.h.b16 %v500
    %v1782 = vunpack.c.l.b16 %v501
    %v1783 = vunpack.c.h.b16 %v501
    %v1784 = vunpack.c.l.b16 %v502
    %v1785 = vunpack.c.h.b16 %v502
    %v1786 = vunpack.c.l.b16 %v503
    %v1787 = vunpack.c.h.b16 %v503
    %v1788 = vunpack.c.l.b16 %v504
    %v1789 = vunpack.c.h.b16 %v504
    %v1790 = vunpack.c.l.b16 %v505
    %v1791 = vunpack.c.h.b16 %v505
    %v1792 = vunpack.c.l.b16 %v506
    %v1793 = vunpack.c.h.b16 %v506
    %v1794 = vunpack.c.l.b16 %v507
    %v1795 = vunpack.c.h.b16 %v507
    %v1796 = vunpack.c.l.b16 %v508
    %v1797 = vunpack.c.h.b16 %v508
    %v1798 = vunpack.c.l.b16 %v509
    %v1799 = vunpack.c.h.b16 %v509
    %v1800 = vunpack.c.l.b16 %v510
    %v1801 = vunpack.c.h.b16 %v510
    %v1802 = vunpack.c.l.b16 %v511
    %v1803 = vunpack.c.h.b16 %v511
    %v1804 = vunpack.c.l.b16 %v512
    %v1805 = vunpack.c.h.b16 %v512
    %v1806 = vunpack.c.l.b16 %v513
    %v1807 = vunpack.c.h.b16 %v513
    %v1808 = vunpack.c.l.b16 %v514
    %v1809 = vunpack.c.h.b16 %v514
    %v1810 = vunpack.c.l.b16 %v515
    %v1811 = vunpack.c.h.b16 %v515
    %v1812 = vunpack.c.l.b16 %v516
    %v1813 = vunpack.c.h.b16 %v516
    %v1814 = vunpack.c.l.b16 %v517
    %v1815 = vunpack.c.h.b16 %v517
    %v1816 = vunpack.c.l.b16 %v518
    %v1817 = vunpack.c.h.b16 %v518
    %v1818 = vunpack.c.l.b16 %v519
    %v1819 = vunpack.c.h.b16 %v519
    %v1820 = vunpack.c.l.b16 %v520
    %v1821 = vunpack.c.h.b16 %v520
    %v1822 = vunpack.c.l.b16 %v521
    %v1823 = vunpack.c.h.b16 %v521
    %v1824 = vunpack.c.l.b16 %v522
    %v1825 = vunpack.c.h.b16 %v522
    %v1826 = vunpack.c.l.b16 %v523
    %v1827 = vunpack.c.h.b16 %v523
    %v1828 = vunpack.c.l.b16 %v524
    %v1829 = vunpack.c.h.b16 %v524
    %v1830 = vunpack.c.l.b16 %v525
    %v1831 = vunpack.c.h.b16 %v525
    %v1832 = vunpack.c.l.b16 %v526
    %v1833 = vunpack.c.h.b16 %v526
    %v1834 = vunpack.c.l.b16 %v527
    %v1835 = vunpack.c.h.b16 %v527
    %v1836 = vunpack.c.l.b16 %v528
    %v1837 = vunpack.c.h.b16 %v528
    %v1838 = vunpack.c.l.b16 %v529
    %v1839 = vunpack.c.h.b16 %v529
    %v1840 = vunpack.c.l.b16 %v530
    %v1841 = vunpack.c.h.b16 %v530
    %v1842 = vunpack.c.l.b16 %v531
    %v1843 = vunpack.c.h.b16 %v531
    %v1844 = vunpack.c.l.b16 %v532
    %v1845 = vunpack.c.h.b16 %v532
    %v1846 = vunpack.c.l.b16 %v533
    %v1847 = vunpack.c.h.b16 %v533
    %v1848 = vunpack.c.l.b16 %v534
    %v1849 = vunpack.c.h.b16 %v534
    %v1850 = vunpack.c.l.b16 %v535
    %v1851 = vunpack.c.h.b16 %v535
    %v1852 = vunpack.c.l.b16 %v536
    %v1853 = vunpack.c.h.b16 %v536
    %v1854 = vunpack.c.l.b16 %v537
    %v1855 = vunpack.c.h.b16 %v537
    %v1856 = vunpack.c.l.b16 %v538
    %v1857 = vunpack.c.h.b16 %v538
    %v1858 = vunpack.c.l.b16 %v539
    %v1859 = vunpack.c.h.b16 %v539
    %v1860 = vunpack.c.l.b16 %v540
    %v1861 = vunpack.c.h.b16 %v540
    %v1862 = vunpack.c.l.b16 %v541
    %v1863 = vunpack.c.h.b16 %v541
    %v1864 = vunpack.c.l.b16 %v542
    %v1865 = vunpack.c.h.b16 %v542
    %v1866 = vunpack.c.l.b16 %v543
    %v1867 = vunpack.c.h.b16 %v543
    %v1868 = vunpack.c.l.b16 %v544
    %v1869 = vunpack.c.h.b16 %v544
    %v1870 = vunpack.c.l.b16 %v545
    %v1871 = vunpack.c.h.b16 %v545
    %v1872 = vunpack.c.l.b16 %v546
    %v1873 = vunpack.c.h.b16 %v546
    %v1874 = vunpack.c.l.b16 %v547
    %v1875 = vunpack.c.h.b16 %v547
    %v1876 = vunpack.c.l.b16 %v548
    %v1877 = vunpack.c.h.b16 %v548
    %v1878 = vunpack.c.l.b16 %v549
    %v1879 = vunpack.c.h.b16 %v549
    %v1880 = vunpack.c.l.b16 %v550
    %v1881 = vunpack.c.h.b16 %v550
    %v1882 = vunpack.c.l.b16 %v551
    %v1883 = vunpack.c.h.b16 %v551
    %v1884 = vunpack.c.l.b16 %v552
    %v1885 = vunpack.c.h.b16 %v552
    %v1886 = vunpack.c.l.b16 %v553
    %v1887 = vunpack.c.h.b16 %v553
    %v1888 = vunpack.c.l.b16 %v554
    %v1889 = vunpack.c.h.b16 %v554
    %v1890 = vunpack.c.l.b16 %v555
    %v1891 = vunpack.c.h.b16 %v555
    %v1892 = vunpack.c.l.b16 %v556
    %v1893 = vunpack.c.h.b16 %v556
    %v1894 = vunpack.c.l.b16 %v557
    %v1895 = vunpack.c.h.b16 %v557
    %v1896 = vunpack.c.l.b16 %v558
    %v1897 = vunpack.c.h.b16 %v558
    %v1898 = vunpack.c.l.b16 %v559
    %v1899 = vunpack.c.h.b16 %v559
    %v1900 = vunpack.c.l.b16 %v560
    %v1901 = vunpack.c.h.b16 %v560
    %v1902 = vunpack.c.l.b16 %v561
    %v1903 = vunpack.c.h.b16 %v561
    %v1904 = vunpack.c.l.b16 %v562
    %v1905 = vunpack.c.h.b16 %v562
    %v1906 = vunpack.c.l.b16 %v563
    %v1907 = vunpack.c.h.b16 %v563
    %v1908 = vunpack.c.l.b16 %v564
    %v1909 = vunpack.c.h.b16 %v564
    %v1910 = vunpack.c.l.b16 %v565
    %v1911 = vunpack.c.h.b16 %v565
    %v1912 = vunpack.c.l.b16 %v566
    %v1913 = vunpack.c.h.b16 %v566
    %v1914 = vunpack.c.l.b16 %v567
    %v1915 = vunpack.c.h.b16 %v567
    %v1916 = vunpack.c.l.b16 %v568
    %v1917 = vunpack.c.h.b16 %v568
    %v1918 = vunpack.c.l.b16 %v569
    %v1919 = vunpack.c.h.b16 %v569
    %v1920 = vunpack.c.l.b16 %v570
    %v1921 = vunpack.c.h.b16 %v570
    %v1922 = vunpack.c.l.b16 %v571
    %v1923 = vunpack.c.h.b16 %v571
    %v1924 = vunpack.c.l.b16 %v572
    %v1925 = vunpack.c.h.b16 %v572
    %v1926 = vunpack.c.l.b16 %v573
    %v1927 = vunpack.c.h.b16 %v573
    %v1928 = vunpack.c.l.b16 %v574
    %v1929 = vunpack.c.h.b16 %v574
    %v1930 = vunpack.c.l.b16 %v575
    %v1931 = vunpack.c.h.b16 %v575
    %v1932 = vunpack.c.l.b16 %v576
    %v1933 = vunpack.c.h.b16 %v576
    %v1934 = vunpack.c.l.b16 %v577
    %v1935 = vunpack.c.h.b16 %v577
    %v1936 = vunpack.c.l.b16 %v578
    %v1937 = vunpack.c.h.b16 %v578
    %v1938 = vunpack.c.l.b16 %v579
    %v1939 = vunpack.c.h.b16 %v579
    %v1940 = vunpack.c.l.b16 %v580
    %v1941 = vunpack.c.h.b16 %v580
    %v1942 = vunpack.c.l.b16 %v581
    %v1943 = vunpack.c.h.b16 %v581
    %v1944 = vunpack.c.l.b16 %v582
    %v1945 = vunpack.c.h.b16 %v582
    %v1946 = vunpack.c.l.b16 %v583
    %v1947 = vunpack.c.h.b16 %v583
    %v1948 = vunpack.c.l.b16 %v584
    %v1949 = vunpack.c.h.b16 %v584
    %v1950 = vunpack.c.l.b16 %v585
    %v1951 = vunpack.c.h.b16 %v585
    %v1952 = vunpack.c.l.b16 %v586
    %v1953 = vunpack.c.h.b16 %v586
    %v1954 = vunpack.c.l.b16 %v587
    %v1955 = vunpack.c.h.b16 %v587
    %v1956 = vunpack.c.l.b16 %v588
    %v1957 = vunpack.c.h.b16 %v588
    %v1958 = vunpack.c.l.b16 %v589
    %v1959 = vunpack.c.h.b16 %v589
    %v1960 = vunpack.c.l.b16 %v590
    %v1961 = vunpack.c.h.b16 %v590
    %v1962 = vunpack.c.l.b16 %v591
    %v1963 = vunpack.c.h.b16 %v591
    %v1964 = vunpack.c.l.b16 %v592
    %v1965 = vunpack.c.h.b16 %v592
    %v1966 = vunpack.c.l.b16 %v593
    %v1967 = vunpack.c.h.b16 %v593
    %v1968 = vunpack.c.l.b16 %v594
    %v1969 = vunpack.c.h.b16 %v594
    %v1970 = vunpack.c.l.b16 %v595
    %v1971 = vunpack.c.h.b16 %v595
    %v1972 = vunpack.c.l.b16 %v596
    %v1973 = vunpack.c.h.b16 %v596
    %v1974 = vunpack.c.l.b16 %v597
    %v1975 = vunpack.c.h.b16 %v597
    %v1976 = vunpack.c.l.b16 %v598
    %v1977 = vunpack.c.h.b16 %v598
    %v1978 = vunpack.c.l.b16 %v599
    %v1979 = vunpack.c.h.b16 %v599
    %v1980 = vunpack.c.l.b16 %v600
    %v1981 = vunpack.c.h.b16 %v600
    %v1982 = vunpack.c.l.b16 %v601
    %v1983 = vunpack.c.h.b16 %v601
    %v1984 = vunpack.c.l.b16 %v602
    %v1985 = vunpack.c.h.b16 %v602
    %v1986 = vunpack.c.l.b16 %v603
    %v1987 = vunpack.c.h.b16 %v603
    %v1988 = vunpack.c.l.b16 %v604
    %v1989 = vunpack.c.h.b16 %v604
    %v1990 = vunpack.c.l.b16 %v605
    %v1991 = vunpack.c.h.b16 %v605
    %v1992 = vunpack.c.l.b16 %v606
    %v1993 = vunpack.c.h.b16 %v606
    %v1994 = vpack.c.b16 %v1106, %v1098
    %v1995 = vpack.c.b16 %v1107, %v1099
    %v1996 = vpack.c.b16 %v1108, %v1100
    %v1997 = vpack.c.b16 %v1109, %v1101
    %v1998 = vpack.c.b16 %v1110, %v1102
    %v1999 = vpack.c.b16 %v1111, %v1103
    %v2000 = vpack.c.b16 %v1112, %v1104
    %v2001 = vpack.c.b16 %v1113, %v1105
    %v2002 = vpack.c.b16 %v1122, %v1114
    %v2003 = vpack.c.b16 %v1123, %v1115
    %v2004 = vpack.c.b16 %v1124, %v1116
    %v2005 = vpack.c.b16 %v1125, %v1117
    %v2006 = vpack.c.b16 %v1126, %v1118
    %v2007 = vpack.c.b16 %v1127, %v1119
    %v2008 = vpack.c.b16 %v1128, %v1120
    %v2009 = vpack.c.b16 %v1129, %v1121
    %v2010 = vpack.c.b16 %v1138, %v1130
    %v2011 = vpack.c.b16 %v1139, %v1131
    %v2012 = vpack.c.b16 %v1140, %v1132
    %v2013 = vpack.c.b16 %v1141, %v1133
    %v2014 = vpack.c.b16 %v1142, %v1134
    %v2015 = vpack.c.b16 %v1143, %v1135
    %v2016 = vpack.c.b16 %v1144, %v1136
    %v2017 = vpack.c.b16 %v1145, %v1137
    %v2018 = vpack.c.b16 %v1154, %v1146
    %v2019 = vpack.c.b16 %v1155, %v1147
    %v2020 = vpack.c.b16 %v1156, %v1148
    %v2021 = vpack.c.b16 %v1157, %v1149
    %v2022 = vpack.c.b16 %v1158, %v1150
    %v2023 = vpack.c.b16 %v1159, %v1151
    %v2024 = vpack.c.b16 %v1160, %v1152
    %v2025 = vpack.c.b16 %v1161, %v1153
    %v2026 = vpack.c.b16 %v1170, %v1162
    %v2027 = vpack.c.b16 %v1171, %v1163
    %v2028 = vpack.c.b16 %v1172, %v1164
    %v2029 = vpack.c.b16 %v1173, %v1165
    %v2030 = vpack.c.b16 %v1174, %v1166
    %v2031 = vpack.c.b16 %v1175, %v1167
    %v2032 = vpack.c.b16 %v1176, %v1168
    %v2033 = vpack.c.b16 %v1177, %v1169
    %v2034 = vpack.c.b16 %v1186, %v1178
    %v2035 = vpack.c.b16 %v1187, %v1179
    %v2036 = vpack.c.b16 %v1188, %v1180
    %v2037 = vpack.c.b16 %v1189, %v1181
    %v2038 = vpack.c.b16 %v1190, %v1182
    %v2039 = vpack.c.b16 %v1191, %v1183
    %v2040 = vpack.c.b16 %v1192, %v1184
    %v2041 = vpack.c.b16 %v1193, %v1185
    %v2042 = vpack.c.b16 %v1202, %v1194
    %v2043 = vpack.c.b16 %v1203, %v1195
    %v2044 = vpack.c.b16 %v1204, %v1196
    %v2045 = vpack.c.b16 %v1205, %v1197
    %v2046 = vpack.c.b16 %v1206, %v1198
    %v2047 = vpack.c.b16 %v1207, %v1199
    %v2048 = vpack.c.b16 %v1208, %v1200
    %v2049 = vpack.c.b16 %v1209, %v1201
    %v2050 = vpack.c.b16 %v1218, %v1210
    %v2051 = vpack.c.b16 %v1219, %v1211
    %v2052 = vpack.c.b16 %v1220, %v1212
    %v2053 = vpack.c.b16 %v1221, %v1213
    %v2054 = vpack.c.b16 %v1222, %v1214
    %v2055 = vpack.c.b16 %v1223, %v1215
    %v2056 = vpack.c.b16 %v1224, %v1216
    %v2057 = vpack.c.b16 %v1225, %v1217
    %v2058 = vpack.c.b16 %v1234, %v1226
    %v2059 = vpack.c.b16 %v1235, %v1227
    %v2060 = vpack.c.b16 %v1236, %v1228
    %v2061 = vpack.c.b16 %v1237, %v1229
    %v2062 = vpack.c.b16 %v1238, %v1230
    %v2063 = vpack.c.b16 %v1239, %v1231
    %v2064 = vpack.c.b16 %v1240, %v1232
    %v2065 = vpack.c.b16 %v1241, %v1233
    %v2066 = vpack.c.b16 %v1250, %v1242
    %v2067 = vpack.c.b16 %v1251, %v1243
    %v2068 = vpack.c.b16 %v1252, %v1244
    %v2069 = vpack.c.b16 %v1253, %v1245
    %v2070 = vpack.c.b16 %v1254, %v1246
    %v2071 = vpack.c.b16 %v1255, %v1247
    %v2072 = vpack.c.b16 %v1256, %v1248
    %v2073 = vpack.c.b16 %v1257, %v1249
    %v2074 = vpack.c.b16 %v1266, %v1258
    %v2075 = vpack.c.b16 %v1267, %v1259
    %v2076 = vpack.c.b16 %v1268, %v1260
    %v2077 = vpack.c.b16 %v1269, %v1261
    %v2078 = vpack.c.b16 %v1270, %v1262
    %v2079 = vpack.c.b16 %v1271, %v1263
    %v2080 = vpack.c.b16 %v1272, %v1264
    %v2081 = vpack.c.b16 %v1273, %v1265
    %v2082 = vpack.c.b16 %v1282, %v1274
    %v2083 = vpack.c.b16 %v1283, %v1275
    %v2084 = vpack.c.b16 %v1284, %v1276
    %v2085 = vpack.c.b16 %v1285, %v1277
    %v2086 = vpack.c.b16 %v1286, %v1278
    %v2087 = vpack.c.b16 %v1287, %v1279
    %v2088 = vpack.c.b16 %v1288, %v1280
    %v2089 = vpack.c.b16 %v1289, %v1281
    %v2090 = vpack.c.b16 %v1298, %v1290
    %v2091 = vpack.c.b16 %v1299, %v1291
    %v2092 = vpack.c.b16 %v1300, %v1292
    %v2093 = vpack.c.b16 %v1301, %v1293
    %v2094 = vpack.c.b16 %v1302, %v1294
    %v2095 = vpack.c.b16 %v1303, %v1295
    %v2096 = vpack.c.b16 %v1304, %v1296
    %v2097 = vpack.c.b16 %v1305, %v1297
    %v2098 = vpack.c.b16 %v1314, %v1306
    %v2099 = vpack.c.b16 %v1315, %v1307
    %v2100 = vpack.c.b16 %v1316, %v1308
    %v2101 = vpack.c.b16 %v1317, %v1309
    %v2102 = vpack.c.b16 %v1318, %v1310
    %v2103 = vpack.c.b16 %v1319, %v1311
    %v2104 = vpack.c.b16 %v1320, %v1312
    %v2105 = vpack.c.b16 %v1321, %v1313
    %v2106 = vpack.c.b16 %v1330, %v1322
    %v2107 = vpack.c.b16 %v1331, %v1323
    %v2108 = vpack.c.b16 %v1332, %v1324
    %v2109 = vpack.c.b16 %v1333, %v1325
    %v2110 = vpack.c.b16 %v1334, %v1326
    %v2111 = vpack.c.b16 %v1335, %v1327
    %v2112 = vpack.c.b16 %v1336, %v1328
    %v2113 = vpack.c.b16 %v1337, %v1329
    %v2114 = vpack.c.b16 %v1346, %v1338
    %v2115 = vpack.c.b16 %v1347, %v1339
    %v2116 = vpack.c.b16 %v1348, %v1340
    %v2117 = vpack.c.b16 %v1349, %v1341
    %v2118 = vpack.c.b16 %v1350, %v1342
    %v2119 = vpack.c.b16 %v1351, %v1343
    %v2120 = vpack.c.b16 %v1352, %v1344
    %v2121 = vpack.c.b16 %v1353, %v1345
    %v2122 = vpack.c.b16 %v1362, %v1354
    %v2123 = vpack.c.b16 %v1363, %v1355
    %v2124 = vpack.c.b16 %v1364, %v1356
    %v2125 = vpack.c.b16 %v1365, %v1357
    %v2126 = vpack.c.b16 %v1366, %v1358
    %v2127 = vpack.c.b16 %v1367, %v1359
    %v2128 = vpack.c.b16 %v1368, %v1360
    %v2129 = vpack.c.b16 %v1369, %v1361
    %v2130 = vpack.c.b16 %v1378, %v1370
    %v2131 = vpack.c.b16 %v1379, %v1371
    %v2132 = vpack.c.b16 %v1380, %v1372
    %v2133 = vpack.c.b16 %v1381, %v1373
    %v2134 = vpack.c.b16 %v1382, %v1374
    %v2135 = vpack.c.b16 %v1383, %v1375
    %v2136 = vpack.c.b16 %v1384, %v1376
    %v2137 = vpack.c.b16 %v1385, %v1377
    %v2138 = vpack.c.b16 %v1394, %v1386
    %v2139 = vpack.c.b16 %v1395, %v1387
    %v2140 = vpack.c.b16 %v1396, %v1388
    %v2141 = vpack.c.b16 %v1397, %v1389
    %v2142 = vpack.c.b16 %v1398, %v1390
    %v2143 = vpack.c.b16 %v1399, %v1391
    %v2144 = vpack.c.b16 %v1400, %v1392
    %v2145 = vpack.c.b16 %v1401, %v1393
    %v2146 = vpack.c.b16 %v1410, %v1402
    %v2147 = vpack.c.b16 %v1411, %v1403
    %v2148 = vpack.c.b16 %v1412, %v1404
    %v2149 = vpack.c.b16 %v1413, %v1405
    %v2150 = vpack.c.b16 %v1414, %v1406
    %v2151 = vpack.c.b16 %v1415, %v1407
    %v2152 = vpack.c.b16 %v1416, %v1408
    %v2153 = vpack.c.b16 %v1417, %v1409
    %v2154 = vpack.c.b16 %v1426, %v1418
    %v2155 = vpack.c.b16 %v1427, %v1419
    %v2156 = vpack.c.b16 %v1428, %v1420
    %v2157 = vpack.c.b16 %v1429, %v1421
    %v2158 = vpack.c.b16 %v1430, %v1422
    %v2159 = vpack.c.b16 %v1431, %v1423
    %v2160 = vpack.c.b16 %v1432, %v1424
    %v2161 = vpack.c.b16 %v1433, %v1425
    %v2162 = vpack.c.b16 %v1442, %v1434
    %v2163 = vpack.c.b16 %v1443, %v1435
    %v2164 = vpack.c.b16 %v1444, %v1436
    %v2165 = vpack.c.b16 %v1445, %v1437
    %v2166 = vpack.c.b16 %v1446, %v1438
    %v2167 = vpack.c.b16 %v1447, %v1439
    %v2168 = vpack.c.b16 %v1448, %v1440
    %v2169 = vpack.c.b16 %v1449, %v1441
    %v2170 = vpack.c.b16 %v1458, %v1450
    %v2171 = vpack.c.b16 %v1459, %v1451
    %v2172 = vpack.c.b16 %v1460, %v1452
    %v2173 = vpack.c.b16 %v1461, %v1453
    %v2174 = vpack.c.b16 %v1462, %v1454
    %v2175 = vpack.c.b16 %v1463, %v1455
    %v2176 = vpack.c.b16 %v1464, %v1456
    %v2177 = vpack.c.b16 %v1465, %v1457
    %v2178 = vpack.c.b16 %v1474, %v1466
    %v2179 = vpack.c.b16 %v1475, %v1467
    %v2180 = vpack.c.b16 %v1476, %v1468
    %v2181 = vpack.c.b16 %v1477, %v1469
    %v2182 = vpack.c.b16 %v1478, %v1470
    %v2183 = vpack.c.b16 %v1479, %v1471
    %v2184 = vpack.c.b16 %v1480, %v1472
    %v2185 = vpack.c.b16 %v1481, %v1473
    %v2186 = vpack.c.b16 %v1490, %v1482
    %v2187 = vpack.c.b16 %v1491, %v1483
    %v2188 = vpack.c.b16 %v1492, %v1484
    %v2189 = vpack.c.b16 %v1493, %v1485
    %v2190 = vpack.c.b16 %v1494, %v1486
    %v2191 = vpack.c.b16 %v1495, %v1487
    %v2192 = vpack.c.b16 %v1496, %v1488
    %v2193 = vpack.c.b16 %v1497, %v1489
    %v2194 = vpack.c.b16 %v1506, %v1498
    %v2195 = vpack.c.b16 %v1507, %v1499
    %v2196 = vpack.c.b16 %v1508, %v1500
    %v2197 = vpack.c.b16 %v1509, %v1501
    %v2198 = vpack.c.b16 %v1510, %v1502
    %v2199 = vpack.c.b16 %v1511, %v1503
    %v2200 = vpack.c.b16 %v1512, %v1504
    %v2201 = vpack.c.b16 %v1513, %v1505
    %v2202 = vpack.c.b16 %v1522, %v1514
    %v2203 = vpack.c.b16 %v1523, %v1515
    %v2204 = vpack.c.b16 %v1524, %v1516
    %v2205 = vpack.c.b16 %v1525, %v1517
    %v2206 = vpack.c.b16 %v1526, %v1518
    %v2207 = vpack.c.b16 %v1527, %v1519
    %v2208 = vpack.c.b16 %v1528, %v1520
    %v2209 = vpack.c.b16 %v1529, %v1521
    %v2210 = vpack.c.b16 %v1538, %v1530
    %v2211 = vpack.c.b16 %v1539, %v1531
    %v2212 = vpack.c.b16 %v1540, %v1532
    %v2213 = vpack.c.b16 %v1541, %v1533
    %v2214 = vpack.c.b16 %v1542, %v1534
    %v2215 = vpack.c.b16 %v1543, %v1535
    %v2216 = vpack.c.b16 %v1544, %v1536
    %v2217 = vpack.c.b16 %v1545, %v1537
    %v2218 = vpack.c.b16 %v1554, %v1546
    %v2219 = vpack.c.b16 %v1555, %v1547
    %v2220 = vpack.c.b16 %v1556, %v1548
    %v2221 = vpack.c.b16 %v1557, %v1549
    %v2222 = vpack.c.b16 %v1558, %v1550
    %v2223 = vpack.c.b16 %v1559, %v1551
    %v2224 = vpack.c.b16 %v1560, %v1552
    %v2225 = vpack.c.b16 %v1561, %v1553
    %v2226 = vpack.c.b16 %v1570, %v1562
    %v2227 = vpack.c.b16 %v1571, %v1563
    %v2228 = vpack.c.b16 %v1572, %v1564
    %v2229 = vpack.c.b16 %v1573, %v1565
    %v2230 = vpack.c.b16 %v1574, %v1566
    %v2231 = vpack.c.b16 %v1575, %v1567
    %v2232 = vpack.c.b16 %v1576, %v1568
    %v2233 = vpack.c.b16 %v1577, %v1569
    %v2234 = vpack.c.b16 %v1586, %v1578
    %v2235 = vpack.c.b16 %v1587, %v1579
    %v2236 = vpack.c.b16 %v1588, %v1580
    %v2237 = vpack.c.b16 %v1589, %v1581
    %v2238 = vpack.c.b16 %v1590, %v1582
    %v2239 = vpack.c.b16 %v1591, %v1583
    %v2240 = vpack.c.b16 %v1592, %v1584
    %v2241 = vpack.c.b16 %v1593, %v1585
    %v2242 = vpack.c.b16 %v1602, %v1594
    %v2243 = vpack.c.b16 %v1603, %v1595
    %v2244 = vpack.c.b16 %v1604, %v1596
    %v2245 = vpack.c.b16 %v1605, %v1597
    %v2246 = vpack.c.b16 %v1606, %v1598
    %v2247 = vpack.c.b16 %v1607, %v1599
    %v2248 = vpack.c.b16 %v1608, %v1600
    %v2249 = vpack.c.b16 %v1609, %v1601
    %v2250 = vpack.c.b16 %v1618, %v1610
    %v2251 = vpack.c.b16 %v1619, %v1611
    %v2252 = vpack.c.b16 %v1620, %v1612
    %v2253 = vpack.c.b16 %v1621, %v1613
    %v2254 = vpack.c.b16 %v1622, %v1614
    %v2255 = vpack.c.b16 %v1623, %v1615
    %v2256 = vpack.c.b16 %v1624, %v1616
    %v2257 = vpack.c.b16 %v1625, %v1617
    %v2258 = vpack.c.b16 %v1634, %v1626
    %v2259 = vpack.c.b16 %v1635, %v1627
    %v2260 = vpack.c.b16 %v1636, %v1628
    %v2261 = vpack.c.b16 %v1637, %v1629
    %v2262 = vpack.c.b16 %v1638, %v1630
    %v2263 = vpack.c.b16 %v1639, %v1631
    %v2264 = vpack.c.b16 %v1640, %v1632
    %v2265 = vpack.c.b16 %v1641, %v1633
    %v2266 = vpack.c.b16 %v1650, %v1642
    %v2267 = vpack.c.b16 %v1651, %v1643
    %v2268 = vpack.c.b16 %v1652, %v1644
    %v2269 = vpack.c.b16 %v1653, %v1645
    %v2270 = vpack.c.b16 %v1654, %v1646
    %v2271 = vpack.c.b16 %v1655, %v1647
    %v2272 = vpack.c.b16 %v1656, %v1648
    %v2273 = vpack.c.b16 %v1657, %v1649
    %v2274 = vpack.c.b16 %v1666, %v1658
    %v2275 = vpack.c.b16 %v1667, %v1659
    %v2276 = vpack.c.b16 %v1668, %v1660
    %v2277 = vpack.c.b16 %v1669, %v1661
    %v2278 = vpack.c.b16 %v1670, %v1662
    %v2279 = vpack.c.b16 %v1671, %v1663
    %v2280 = vpack.c.b16 %v1672, %v1664
    %v2281 = vpack.c.b16 %v1673, %v1665
    %v2282 = vpack.c.b16 %v1682, %v1674
    %v2283 = vpack.c.b16 %v1683, %v1675
    %v2284 = vpack.c.b16 %v1684, %v1676
    %v2285 = vpack.c.b16 %v1685, %v1677
    %v2286 = vpack.c.b16 %v1686, %v1678
    %v2287 = vpack.c.b16 %v1687, %v1679
    %v2288 = vpack.c.b16 %v1688, %v1680
    %v2289 = vpack.c.b16 %v1689, %v1681
    %v2290 = vpack.c.b16 %v1698, %v1690
    %v2291 = vpack.c.b16 %v1699, %v1691
    %v2292 = vpack.c.b16 %v1700, %v1692
    %v2293 = vpack.c.b16 %v1701, %v1693
    %v2294 = vpack.c.b16 %v1702, %v1694
    %v2295 = vpack.c.b16 %v1703, %v1695
    %v2296 = vpack.c.b16 %v1704, %v1696
    %v2297 = vpack.c.b16 %v1705, %v1697
    %v2298 = vpack.c.b16 %v1714, %v1706
    %v2299 = vpack.c.b16 %v1715, %v1707
    %v2300 = vpack.c.b16 %v1716, %v1708
    %v2301 = vpack.c.b16 %v1717, %v1709
    %v2302 = vpack.c.b16 %v1718, %v1710
    %v2303 = vpack.c.b16 %v1719, %v1711
    %v2304 = vpack.c.b16 %v1720, %v1712
    %v2305 = vpack.c.b16 %v1721, %v1713
    %v2306 = vpack.c.b16 %v1730, %v1722
    %v2307 = vpack.c.b16 %v1731, %v1723
    %v2308 = vpack.c.b16 %v1732, %v1724
    %v2309 = vpack.c.b16 %v1733, %v1725
    %v2310 = vpack.c.b16 %v1734, %v1726
    %v2311 = vpack.c.b16 %v1735, %v1727
    %v2312 = vpack.c.b16 %v1736, %v1728
    %v2313 = vpack.c.b16 %v1737, %v1729
    %v2314 = vpack.c.b16 %v1746, %v1738
    %v2315 = vpack.c.b16 %v1747, %v1739
    %v2316 = vpack.c.b16 %v1748, %v1740
    %v2317 = vpack.c.b16 %v1749, %v1741
    %v2318 = vpack.c.b16 %v1750, %v1742
    %v2319 = vpack.c.b16 %v1751, %v1743
    %v2320 = vpack.c.b16 %v1752, %v1744
    %v2321 = vpack.c.b16 %v1753, %v1745
    %v2322 = vpack.c.b16 %v1762, %v1754
    %v2323 = vpack.c.b16 %v1763, %v1755
    %v2324 = vpack.c.b16 %v1764, %v1756
    %v2325 = vpack.c.b16 %v1765, %v1757
    %v2326 = vpack.c.b16 %v1766, %v1758
    %v2327 = vpack.c.b16 %v1767, %v1759
    %v2328 = vpack.c.b16 %v1768, %v1760
    %v2329 = vpack.c.b16 %v1769, %v1761
    %v2330 = vpack.c.b16 %v1778, %v1770
    %v2331 = vpack.c.b16 %v1779, %v1771
    %v2332 = vpack.c.b16 %v1780, %v1772
    %v2333 = vpack.c.b16 %v1781, %v1773
    %v2334 = vpack.c.b16 %v1782, %v1774
    %v2335 = vpack.c.b16 %v1783, %v1775
    %v2336 = vpack.c.b16 %v1784, %v1776
    %v2337 = vpack.c.b16 %v1785, %v1777
    %v2338 = vpack.c.b16 %v1794, %v1786
    %v2339 = vpack.c.b16 %v1795, %v1787
    %v2340 = vpack.c.b16 %v1796, %v1788
    %v2341 = vpack.c.b16 %v1797, %v1789
    %v2342 = vpack.c.b16 %v1798, %v1790
    %v2343 = vpack.c.b16 %v1799, %v1791
    %v2344 = vpack.c.b16 %v1800, %v1792
    %v2345 = vpack.c.b16 %v1801, %v1793
    %v2346 = vpack.c.b16 %v1810, %v1802
    %v2347 = vpack.c.b16 %v1811, %v1803
    %v2348 = vpack.c.b16 %v1812, %v1804
    %v2349 = vpack.c.b16 %v1813, %v1805
    %v2350 = vpack.c.b16 %v1814, %v1806
    %v2351 = vpack.c.b16 %v1815, %v1807
    %v2352 = vpack.c.b16 %v1816, %v1808
    %v2353 = vpack.c.b16 %v1817, %v1809
    %v2354 = vpack.c.b16 %v1826, %v1818
    %v2355 = vpack.c.b16 %v1827, %v1819
    %v2356 = vpack.c.b16 %v1828, %v1820
    %v2357 = vpack.c.b16 %v1829, %v1821
    %v2358 = vpack.c.b16 %v1830, %v1822
    %v2359 = vpack.c.b16 %v1831, %v1823
    %v2360 = vpack.c.b16 %v1832, %v1824
    %v2361 = vpack.c.b16 %v1833, %v1825
    %v2362 = vpack.c.b16 %v1842, %v1834
    %v2363 = vpack.c.b16 %v1843, %v1835
    %v2364 = vpack.c.b16 %v1844, %v1836
    %v2365 = vpack.c.b16 %v1845, %v1837
    %v2366 = vpack.c.b16 %v1846, %v1838
    %v2367 = vpack.c.b16 %v1847, %v1839
    %v2368 = vpack.c.b16 %v1848, %v1840
    %v2369 = vpack.c.b16 %v1849, %v1841
    %v2370 = vpack.c.b16 %v1858, %v1850
    %v2371 = vpack.c.b16 %v1859, %v1851
    %v2372 = vpack.c.b16 %v1860, %v1852
    %v2373 = vpack.c.b16 %v1861, %v1853
    %v2374 = vpack.c.b16 %v1862, %v1854
    %v2375 = vpack.c.b16 %v1863, %v1855
    %v2376 = vpack.c.b16 %v1864, %v1856
    %v2377 = vpack.c.b16 %v1865, %v1857
    %v2378 = vpack.c.b16 %v1874, %v1866
    %v2379 = vpack.c.b16 %v1875, %v1867
    %v2380 = vpack.c.b16 %v1876, %v1868
    %v2381 = vpack.c.b16 %v1877, %v1869
    %v2382 = vpack.c.b16 %v1878, %v1870
    %v2383 = vpack.c.b16 %v1879, %v1871
    %v2384 = vpack.c.b16 %v1880, %v1872
    %v2385 = vpack.c.b16 %v1881, %v1873
    %v2386 = vpack.c.b16 %v1890, %v1882
    %v2387 = vpack.c.b16 %v1891, %v1883
    %v2388 = vpack.c.b16 %v1892, %v1884
    %v2389 = vpack.c.b16 %v1893, %v1885
    %v2390 = vpack.c.b16 %v1894, %v1886
    %v2391 = vpack.c.b16 %v1895, %v1887
    %v2392 = vpack.c.b16 %v1896, %v1888
    %v2393 = vpack.c.b16 %v1897, %v1889
    %v2394 = vpack.c.b16 %v1906, %v1898
    %v2395 = vpack.c.b16 %v1907, %v1899
    %v2396 = vpack.c.b16 %v1908, %v1900
    %v2397 = vpack.c.b16 %v1909, %v1901
    %v2398 = vpack.c.b16 %v1910, %v1902
    %v2399 = vpack.c.b16 %v1911, %v1903
    %v2400 = vpack.c.b16 %v1912, %v1904
    %v2401 = vpack.c.b16 %v1913, %v1905
    %v2402 = vpack.c.b16 %v1922, %v1914
    %v2403 = vpack.c.b16 %v1923, %v1915
    %v2404 = vpack.c.b16 %v1924, %v1916
    %v2405 = vpack.c.b16 %v1925, %v1917
    %v2406 = vpack.c.b16 %v1926, %v1918
    %v2407 = vpack.c.b16 %v1927, %v1919
    %v2408 = vpack.c.b16 %v1928, %v1920
    %v2409 = vpack.c.b16 %v1929, %v1921
    %v2410 = vpack.c.b16 %v1938, %v1930
    %v2411 = vpack.c.b16 %v1939, %v1931
    %v2412 = vpack.c.b16 %v1940, %v1932
    %v2413 = vpack.c.b16 %v1941, %v1933
    %v2414 = vpack.c.b16 %v1942, %v1934
    %v2415 = vpack.c.b16 %v1943, %v1935
    %v2416 = vpack.c.b16 %v1944, %v1936
    %v2417 = vpack.c.b16 %v1945, %v1937
    %v2418 = vpack.c.b16 %v1954, %v1946
    %v2419 = vpack.c.b16 %v1955, %v1947
    %v2420 = vpack.c.b16 %v1956, %v1948
    %v2421 = vpack.c.b16 %v1957, %v1949
    %v2422 = vpack.c.b16 %v1958, %v1950
    %v2423 = vpack.c.b16 %v1959, %v1951
    %v2424 = vpack.c.b16 %v1960, %v1952
    %v2425 = vpack.c.b16 %v1961, %v1953
    %v2426 = vpack.c.b16 %v1970, %v1962
    %v2427 = vpack.c.b16 %v1971, %v1963
    %v2428 = vpack.c.b16 %v1972, %v1964
    %v2429 = vpack.c.b16 %v1973, %v1965
    %v2430 = vpack.c.b16 %v1974, %v1966
    %v2431 = vpack.c.b16 %v1975, %v1967
    %v2432 = vpack.c.b16 %v1976, %v1968
    %v2433 = vpack.c.b16 %v1977, %v1969
    %v2434 = vpack.c.b16 %v1986, %v1978
    %v2435 = vpack.c.b16 %v1987, %v1979
    %v2436 = vpack.c.b16 %v1988, %v1980
    %v2437 = vpack.c.b16 %v1989, %v1981
    %v2438 = vpack.c.b16 %v1990, %v1982
    %v2439 = vpack.c.b16 %v1991, %v1983
    %v2440 = vpack.c.b16 %v1992, %v1984
    %v2441 = vpack.c.b16 %v1993, %v1985
    %2890 = vmatpush.bf16.msra.mxu0 %v2050
    %2891 = vmatpush.bf16.msra.mxu0 %v2042
    %2892 = vmatpush.bf16.msra.mxu0 %v2034
    %2893 = vmatpush.bf16.msra.mxu0 %v2026
    %2894 = vmatpush.bf16.msra.mxu0 %v2018
    %2895 = vmatpush.bf16.msra.mxu0 %v2010
    %2896 = vmatpush.bf16.msra.mxu0 %v2002
    %2897 = vmatpush.bf16.msra.mxu0 %v1994
    %2898 = vmatmul.bf16.gmra.mxu0 %v636
    %v2899 = vpop.f32.mrf.mxu0
    %v2900 = vadd.f32 %v609, %v2899
    %v2901 = vpop.f32.mrf.mxu0
    %2902 = vdwg.mxu0
    %2903 = vmatpush.bf16.msra.mxu0 %v2114
    %2904 = vmatpush.bf16.msra.mxu0 %v2106
    %2905 = vmatpush.bf16.msra.mxu0 %v2098
    %2906 = vmatpush.bf16.msra.mxu0 %v2090
    %2907 = vmatpush.bf16.msra.mxu0 %v2082
    %2908 = vmatpush.bf16.msra.mxu0 %v2074
    %2909 = vmatpush.bf16.msra.mxu0 %v2066
    %2910 = vmatpush.bf16.msra.mxu0 %v2058
    %2911 = vmatmul.bf16.gmra.mxu0 %v637
    %v2912 = vpop.f32.mrf.mxu0
    %v2913 = vadd.f32 %v2900, %v2912
    %v2914 = vpop.f32.mrf.mxu0
    %2915 = vdwg.mxu0
    %2916 = vmatpush.bf16.msra.mxu0 %v2178
    %2917 = vmatpush.bf16.msra.mxu0 %v2170
    %2918 = vmatpush.bf16.msra.mxu0 %v2162
    %2919 = vmatpush.bf16.msra.mxu0 %v2154
    %2920 = vmatpush.bf16.msra.mxu0 %v2146
    %2921 = vmatpush.bf16.msra.mxu0 %v2138
    %2922 = vmatpush.bf16.msra.mxu0 %v2130
    %2923 = vmatpush.bf16.msra.mxu0 %v2122
    %2924 = vmatmul.bf16.gmra.mxu0 %v638
    %v2925 = vpop.f32.mrf.mxu0
    %v2926 = vadd.f32 %v2913, %v2925
    %v2927 = vpop.f32.mrf.mxu0
    %2928 = vdwg.mxu0
    %2929 = vmatpush.bf16.msra.mxu0 %v2242
    %2930 = vmatpush.bf16.msra.mxu0 %v2234
    %2931 = vmatpush.bf16.msra.mxu0 %v2226
    %2932 = vmatpush.bf16.msra.mxu0 %v2218
    %2933 = vmatpush.bf16.msra.mxu0 %v2210
    %2934 = vmatpush.bf16.msra.mxu0 %v2202
    %2935 = vmatpush.bf16.msra.mxu0 %v2194
    %2936 = vmatpush.bf16.msra.mxu0 %v2186
    %2937 = vmatmul.bf16.gmra.mxu0 %v639
    %v2938 = vpop.f32.mrf.mxu0
    %v2939 = vadd.f32 %v2926, %v2938
    %v2940 = vpop.f32.mrf.mxu0
    %2941 = vdwg.mxu0
    %2942 = vmatpush.bf16.msra.mxu0 %v2306
    %2943 = vmatpush.bf16.msra.mxu0 %v2298
    %2944 = vmatpush.bf16.msra.mxu0 %v2290
    %2945 = vmatpush.bf16.msra.mxu0 %v2282
    %2946 = vmatpush.bf16.msra.mxu0 %v2274
    %2947 = vmatpush.bf16.msra.mxu0 %v2266
    %2948 = vmatpush.bf16.msra.mxu0 %v2258
    %2949 = vmatpush.bf16.msra.mxu0 %v2250
    %2950 = vmatmul.bf16.gmra.mxu0 %v640
    %v2951 = vpop.f32.mrf.mxu0
    %v2952 = vadd.f32 %v2939, %v2951
    %v2953 = vpop.f32.mrf.mxu0
    %2954 = vdwg.mxu0
    %2955 = vmatpush.bf16.msra.mxu0 %v2370
    %2956 = vmatpush.bf16.msra.mxu0 %v2362
    %2957 = vmatpush.bf16.msra.mxu0 %v2354
    %2958 = vmatpush.bf16.msra.mxu0 %v2346
    %2959 = vmatpush.bf16.msra.mxu0 %v2338
    %2960 = vmatpush.bf16.msra.mxu0 %v2330
    %2961 = vmatpush.bf16.msra.mxu0 %v2322
    %2962 = vmatpush.bf16.msra.mxu0 %v2314
    %2963 = vmatmul.bf16.gmra.mxu0 %v641
    %v2964 = vpop.f32.mrf.mxu0
    %v2965 = vadd.f32 %v2952, %v2964
    %v2966 = vpop.f32.mrf.mxu0
    %2967 = vdwg.mxu0
    %2968 = vmatpush.bf16.msra.mxu0 %v2434
    %2969 = vmatpush.bf16.msra.mxu0 %v2426
    %2970 = vmatpush.bf16.msra.mxu0 %v2418
    %2971 = vmatpush.bf16.msra.mxu0 %v2410
    %2972 = vmatpush.bf16.msra.mxu0 %v2402
    %2973 = vmatpush.bf16.msra.mxu0 %v2394
    %2974 = vmatpush.bf16.msra.mxu0 %v2386
    %2975 = vmatpush.bf16.msra.mxu0 %v2378
    %2976 = vmatmul.bf16.gmra.mxu0 %v642
    %v2977 = vpop.f32.mrf.mxu0
    %v2978 = vadd.f32 %v2965, %v2977
    %v2979 = vpop.f32.mrf.mxu0
    %2980 = vdwg.mxu0
    %2981 = vmatpush.bf16.msra.mxu0 %v2051
    %2982 = vmatpush.bf16.msra.mxu0 %v2043
    %2983 = vmatpush.bf16.msra.mxu0 %v2035
    %2984 = vmatpush.bf16.msra.mxu0 %v2027
    %2985 = vmatpush.bf16.msra.mxu0 %v2019
    %2986 = vmatpush.bf16.msra.mxu0 %v2011
    %2987 = vmatpush.bf16.msra.mxu0 %v2003
    %2988 = vmatpush.bf16.msra.mxu0 %v1995
    %2989 = vmatmul.bf16.gmra.mxu0 %v636
    %v2990 = vpop.f32.mrf.mxu0
    %v2991 = vadd.f32 %v610, %v2990
    %v2992 = vpop.f32.mrf.mxu0
    %2993 = vdwg.mxu0
    %2994 = vmatpush.bf16.msra.mxu0 %v2115
    %2995 = vmatpush.bf16.msra.mxu0 %v2107
    %2996 = vmatpush.bf16.msra.mxu0 %v2099
    %2997 = vmatpush.bf16.msra.mxu0 %v2091
    %2998 = vmatpush.bf16.msra.mxu0 %v2083
    %2999 = vmatpush.bf16.msra.mxu0 %v2075
    %3000 = vmatpush.bf16.msra.mxu0 %v2067
    %3001 = vmatpush.bf16.msra.mxu0 %v2059
    %3002 = vmatmul.bf16.gmra.mxu0 %v637
    %v3003 = vpop.f32.mrf.mxu0
    %v3004 = vadd.f32 %v2991, %v3003
    %v3005 = vpop.f32.mrf.mxu0
    %3006 = vdwg.mxu0
    %3007 = vmatpush.bf16.msra.mxu0 %v2179
    %3008 = vmatpush.bf16.msra.mxu0 %v2171
    %3009 = vmatpush.bf16.msra.mxu0 %v2163
    %3010 = vmatpush.bf16.msra.mxu0 %v2155
    %3011 = vmatpush.bf16.msra.mxu0 %v2147
    %3012 = vmatpush.bf16.msra.mxu0 %v2139
    %3013 = vmatpush.bf16.msra.mxu0 %v2131
    %3014 = vmatpush.bf16.msra.mxu0 %v2123
    %3015 = vmatmul.bf16.gmra.mxu0 %v638
    %v3016 = vpop.f32.mrf.mxu0
    %v3017 = vadd.f32 %v3004, %v3016
    %v3018 = vpop.f32.mrf.mxu0
    %3019 = vdwg.mxu0
    %3020 = vmatpush.bf16.msra.mxu0 %v2243
    %3021 = vmatpush.bf16.msra.mxu0 %v2235
    %3022 = vmatpush.bf16.msra.mxu0 %v2227
    %3023 = vmatpush.bf16.msra.mxu0 %v2219
    %3024 = vmatpush.bf16.msra.mxu0 %v2211
    %3025 = vmatpush.bf16.msra.mxu0 %v2203
    %3026 = vmatpush.bf16.msra.mxu0 %v2195
    %3027 = vmatpush.bf16.msra.mxu0 %v2187
    %3028 = vmatmul.bf16.gmra.mxu0 %v639
    %v3029 = vpop.f32.mrf.mxu0
    %v3030 = vadd.f32 %v3017, %v3029
    %v3031 = vpop.f32.mrf.mxu0
    %3032 = vdwg.mxu0
    %3033 = vmatpush.bf16.msra.mxu0 %v2307
    %3034 = vmatpush.bf16.msra.mxu0 %v2299
    %3035 = vmatpush.bf16.msra.mxu0 %v2291
    %3036 = vmatpush.bf16.msra.mxu0 %v2283
    %3037 = vmatpush.bf16.msra.mxu0 %v2275
    %3038 = vmatpush.bf16.msra.mxu0 %v2267
    %3039 = vmatpush.bf16.msra.mxu0 %v2259
    %3040 = vmatpush.bf16.msra.mxu0 %v2251
    %3041 = vmatmul.bf16.gmra.mxu0 %v640
    %v3042 = vpop.f32.mrf.mxu0
    %v3043 = vadd.f32 %v3030, %v3042
    %v3044 = vpop.f32.mrf.mxu0
    %3045 = vdwg.mxu0
    %3046 = vmatpush.bf16.msra.mxu0 %v2371
    %3047 = vmatpush.bf16.msra.mxu0 %v2363
    %3048 = vmatpush.bf16.msra.mxu0 %v2355
    %3049 = vmatpush.bf16.msra.mxu0 %v2347
    %3050 = vmatpush.bf16.msra.mxu0 %v2339
    %3051 = vmatpush.bf16.msra.mxu0 %v2331
    %3052 = vmatpush.bf16.msra.mxu0 %v2323
    %3053 = vmatpush.bf16.msra.mxu0 %v2315
    %3054 = vmatmul.bf16.gmra.mxu0 %v641
    %v3055 = vpop.f32.mrf.mxu0
    %v3056 = vadd.f32 %v3043, %v3055
    %v3057 = vpop.f32.mrf.mxu0
    %3058 = vdwg.mxu0
    %3059 = vmatpush.bf16.msra.mxu0 %v2435
    %3060 = vmatpush.bf16.msra.mxu0 %v2427
    %3061 = vmatpush.bf16.msra.mxu0 %v2419
    %3062 = vmatpush.bf16.msra.mxu0 %v2411
    %3063 = vmatpush.bf16.msra.mxu0 %v2403
    %3064 = vmatpush.bf16.msra.mxu0 %v2395
    %3065 = vmatpush.bf16.msra.mxu0 %v2387
    %3066 = vmatpush.bf16.msra.mxu0 %v2379
    %3067 = vmatmul.bf16.gmra.mxu0 %v642
    %v3068 = vpop.f32.mrf.mxu0
    %v3069 = vadd.f32 %v3056, %v3068
    %v3070 = vpop.f32.mrf.mxu0
    %3071 = vdwg.mxu0
    %3072 = vmatpush.bf16.msra.mxu0 %v2052
    %3073 = vmatpush.bf16.msra.mxu0 %v2044
    %3074 = vmatpush.bf16.msra.mxu0 %v2036
    %3075 = vmatpush.bf16.msra.mxu0 %v2028
    %3076 = vmatpush.bf16.msra.mxu0 %v2020
    %3077 = vmatpush.bf16.msra.mxu0 %v2012
    %3078 = vmatpush.bf16.msra.mxu0 %v2004
    %3079 = vmatpush.bf16.msra.mxu0 %v1996
    %3080 = vmatmul.bf16.gmra.mxu0 %v636
    %v3081 = vpop.f32.mrf.mxu0
    %v3082 = vadd.f32 %v611, %v3081
    %v3083 = vpop.f32.mrf.mxu0
    %3084 = vdwg.mxu0
    %3085 = vmatpush.bf16.msra.mxu0 %v2116
    %3086 = vmatpush.bf16.msra.mxu0 %v2108
    %3087 = vmatpush.bf16.msra.mxu0 %v2100
    %3088 = vmatpush.bf16.msra.mxu0 %v2092
    %3089 = vmatpush.bf16.msra.mxu0 %v2084
    %3090 = vmatpush.bf16.msra.mxu0 %v2076
    %3091 = vmatpush.bf16.msra.mxu0 %v2068
    %3092 = vmatpush.bf16.msra.mxu0 %v2060
    %3093 = vmatmul.bf16.gmra.mxu0 %v637
    %v3094 = vpop.f32.mrf.mxu0
    %v3095 = vadd.f32 %v3082, %v3094
    %v3096 = vpop.f32.mrf.mxu0
    %3097 = vdwg.mxu0
    %3098 = vmatpush.bf16.msra.mxu0 %v2180
    %3099 = vmatpush.bf16.msra.mxu0 %v2172
    %3100 = vmatpush.bf16.msra.mxu0 %v2164
    %3101 = vmatpush.bf16.msra.mxu0 %v2156
    %3102 = vmatpush.bf16.msra.mxu0 %v2148
    %3103 = vmatpush.bf16.msra.mxu0 %v2140
    %3104 = vmatpush.bf16.msra.mxu0 %v2132
    %3105 = vmatpush.bf16.msra.mxu0 %v2124
    %3106 = vmatmul.bf16.gmra.mxu0 %v638
    %v3107 = vpop.f32.mrf.mxu0
    %v3108 = vadd.f32 %v3095, %v3107
    %v3109 = vpop.f32.mrf.mxu0
    %3110 = vdwg.mxu0
    %3111 = vmatpush.bf16.msra.mxu0 %v2244
    %3112 = vmatpush.bf16.msra.mxu0 %v2236
    %3113 = vmatpush.bf16.msra.mxu0 %v2228
    %3114 = vmatpush.bf16.msra.mxu0 %v2220
    %3115 = vmatpush.bf16.msra.mxu0 %v2212
    %3116 = vmatpush.bf16.msra.mxu0 %v2204
    %3117 = vmatpush.bf16.msra.mxu0 %v2196
    %3118 = vmatpush.bf16.msra.mxu0 %v2188
    %3119 = vmatmul.bf16.gmra.mxu0 %v639
    %v3120 = vpop.f32.mrf.mxu0
    %v3121 = vadd.f32 %v3108, %v3120
    %v3122 = vpop.f32.mrf.mxu0
    %3123 = vdwg.mxu0
    %3124 = vmatpush.bf16.msra.mxu0 %v2308
    %3125 = vmatpush.bf16.msra.mxu0 %v2300
    %3126 = vmatpush.bf16.msra.mxu0 %v2292
    %3127 = vmatpush.bf16.msra.mxu0 %v2284
    %3128 = vmatpush.bf16.msra.mxu0 %v2276
    %3129 = vmatpush.bf16.msra.mxu0 %v2268
    %3130 = vmatpush.bf16.msra.mxu0 %v2260
    %3131 = vmatpush.bf16.msra.mxu0 %v2252
    %3132 = vmatmul.bf16.gmra.mxu0 %v640
    %v3133 = vpop.f32.mrf.mxu0
    %v3134 = vadd.f32 %v3121, %v3133
    %v3135 = vpop.f32.mrf.mxu0
    %3136 = vdwg.mxu0
    %3137 = vmatpush.bf16.msra.mxu0 %v2372
    %3138 = vmatpush.bf16.msra.mxu0 %v2364
    %3139 = vmatpush.bf16.msra.mxu0 %v2356
    %3140 = vmatpush.bf16.msra.mxu0 %v2348
    %3141 = vmatpush.bf16.msra.mxu0 %v2340
    %3142 = vmatpush.bf16.msra.mxu0 %v2332
    %3143 = vmatpush.bf16.msra.mxu0 %v2324
    %3144 = vmatpush.bf16.msra.mxu0 %v2316
    %3145 = vmatmul.bf16.gmra.mxu0 %v641
    %v3146 = vpop.f32.mrf.mxu0
    %v3147 = vadd.f32 %v3134, %v3146
    %v3148 = vpop.f32.mrf.mxu0
    %3149 = vdwg.mxu0
    %3150 = vmatpush.bf16.msra.mxu0 %v2436
    %3151 = vmatpush.bf16.msra.mxu0 %v2428
    %3152 = vmatpush.bf16.msra.mxu0 %v2420
    %3153 = vmatpush.bf16.msra.mxu0 %v2412
    %3154 = vmatpush.bf16.msra.mxu0 %v2404
    %3155 = vmatpush.bf16.msra.mxu0 %v2396
    %3156 = vmatpush.bf16.msra.mxu0 %v2388
    %3157 = vmatpush.bf16.msra.mxu0 %v2380
    %3158 = vmatmul.bf16.gmra.mxu0 %v642
    %v3159 = vpop.f32.mrf.mxu0
    %v3160 = vadd.f32 %v3147, %v3159
    %v3161 = vpop.f32.mrf.mxu0
    %3162 = vdwg.mxu0
    %3163 = vmatpush.bf16.msra.mxu0 %v2053
    %3164 = vmatpush.bf16.msra.mxu0 %v2045
    %3165 = vmatpush.bf16.msra.mxu0 %v2037
    %3166 = vmatpush.bf16.msra.mxu0 %v2029
    %3167 = vmatpush.bf16.msra.mxu0 %v2021
    %3168 = vmatpush.bf16.msra.mxu0 %v2013
    %3169 = vmatpush.bf16.msra.mxu0 %v2005
    %3170 = vmatpush.bf16.msra.mxu0 %v1997
    %3171 = vmatmul.bf16.gmra.mxu0 %v636
    %v3172 = vpop.f32.mrf.mxu0
    %v3173 = vadd.f32 %v612, %v3172
    %v3174 = vpop.f32.mrf.mxu0
    %3175 = vdwg.mxu0
    %3176 = vmatpush.bf16.msra.mxu0 %v2117
    %3177 = vmatpush.bf16.msra.mxu0 %v2109
    %3178 = vmatpush.bf16.msra.mxu0 %v2101
    %3179 = vmatpush.bf16.msra.mxu0 %v2093
    %3180 = vmatpush.bf16.msra.mxu0 %v2085
    %3181 = vmatpush.bf16.msra.mxu0 %v2077
    %3182 = vmatpush.bf16.msra.mxu0 %v2069
    %3183 = vmatpush.bf16.msra.mxu0 %v2061
    %3184 = vmatmul.bf16.gmra.mxu0 %v637
    %v3185 = vpop.f32.mrf.mxu0
    %v3186 = vadd.f32 %v3173, %v3185
    %v3187 = vpop.f32.mrf.mxu0
    %3188 = vdwg.mxu0
    %3189 = vmatpush.bf16.msra.mxu0 %v2181
    %3190 = vmatpush.bf16.msra.mxu0 %v2173
    %3191 = vmatpush.bf16.msra.mxu0 %v2165
    %3192 = vmatpush.bf16.msra.mxu0 %v2157
    %3193 = vmatpush.bf16.msra.mxu0 %v2149
    %3194 = vmatpush.bf16.msra.mxu0 %v2141
    %3195 = vmatpush.bf16.msra.mxu0 %v2133
    %3196 = vmatpush.bf16.msra.mxu0 %v2125
    %3197 = vmatmul.bf16.gmra.mxu0 %v638
    %v3198 = vpop.f32.mrf.mxu0
    %v3199 = vadd.f32 %v3186, %v3198
    %v3200 = vpop.f32.mrf.mxu0
    %3201 = vdwg.mxu0
    %3202 = vmatpush.bf16.msra.mxu0 %v2245
    %3203 = vmatpush.bf16.msra.mxu0 %v2237
    %3204 = vmatpush.bf16.msra.mxu0 %v2229
    %3205 = vmatpush.bf16.msra.mxu0 %v2221
    %3206 = vmatpush.bf16.msra.mxu0 %v2213
    %3207 = vmatpush.bf16.msra.mxu0 %v2205
    %3208 = vmatpush.bf16.msra.mxu0 %v2197
    %3209 = vmatpush.bf16.msra.mxu0 %v2189
    %3210 = vmatmul.bf16.gmra.mxu0 %v639
    %v3211 = vpop.f32.mrf.mxu0
    %v3212 = vadd.f32 %v3199, %v3211
    %v3213 = vpop.f32.mrf.mxu0
    %3214 = vdwg.mxu0
    %3215 = vmatpush.bf16.msra.mxu0 %v2309
    %3216 = vmatpush.bf16.msra.mxu0 %v2301
    %3217 = vmatpush.bf16.msra.mxu0 %v2293
    %3218 = vmatpush.bf16.msra.mxu0 %v2285
    %3219 = vmatpush.bf16.msra.mxu0 %v2277
    %3220 = vmatpush.bf16.msra.mxu0 %v2269
    %3221 = vmatpush.bf16.msra.mxu0 %v2261
    %3222 = vmatpush.bf16.msra.mxu0 %v2253
    %3223 = vmatmul.bf16.gmra.mxu0 %v640
    %v3224 = vpop.f32.mrf.mxu0
    %v3225 = vadd.f32 %v3212, %v3224
    %v3226 = vpop.f32.mrf.mxu0
    %3227 = vdwg.mxu0
    %3228 = vmatpush.bf16.msra.mxu0 %v2373
    %3229 = vmatpush.bf16.msra.mxu0 %v2365
    %3230 = vmatpush.bf16.msra.mxu0 %v2357
    %3231 = vmatpush.bf16.msra.mxu0 %v2349
    %3232 = vmatpush.bf16.msra.mxu0 %v2341
    %3233 = vmatpush.bf16.msra.mxu0 %v2333
    %3234 = vmatpush.bf16.msra.mxu0 %v2325
    %3235 = vmatpush.bf16.msra.mxu0 %v2317
    %3236 = vmatmul.bf16.gmra.mxu0 %v641
    %v3237 = vpop.f32.mrf.mxu0
    %v3238 = vadd.f32 %v3225, %v3237
    %v3239 = vpop.f32.mrf.mxu0
    %3240 = vdwg.mxu0
    %3241 = vmatpush.bf16.msra.mxu0 %v2437
    %3242 = vmatpush.bf16.msra.mxu0 %v2429
    %3243 = vmatpush.bf16.msra.mxu0 %v2421
    %3244 = vmatpush.bf16.msra.mxu0 %v2413
    %3245 = vmatpush.bf16.msra.mxu0 %v2405
    %3246 = vmatpush.bf16.msra.mxu0 %v2397
    %3247 = vmatpush.bf16.msra.mxu0 %v2389
    %3248 = vmatpush.bf16.msra.mxu0 %v2381
    %3249 = vmatmul.bf16.gmra.mxu0 %v642
    %v3250 = vpop.f32.mrf.mxu0
    %v3251 = vadd.f32 %v3238, %v3250
    %v3252 = vpop.f32.mrf.mxu0
    %3253 = vdwg.mxu0
    %3254 = vmatpush.bf16.msra.mxu0 %v2054
    %3255 = vmatpush.bf16.msra.mxu0 %v2046
    %3256 = vmatpush.bf16.msra.mxu0 %v2038
    %3257 = vmatpush.bf16.msra.mxu0 %v2030
    %3258 = vmatpush.bf16.msra.mxu0 %v2022
    %3259 = vmatpush.bf16.msra.mxu0 %v2014
    %3260 = vmatpush.bf16.msra.mxu0 %v2006
    %3261 = vmatpush.bf16.msra.mxu0 %v1998
    %3262 = vmatmul.bf16.gmra.mxu0 %v636
    %v3263 = vpop.f32.mrf.mxu0
    %v3264 = vadd.f32 %v613, %v3263
    %v3265 = vpop.f32.mrf.mxu0
    %3266 = vdwg.mxu0
    %3267 = vmatpush.bf16.msra.mxu0 %v2118
    %3268 = vmatpush.bf16.msra.mxu0 %v2110
    %3269 = vmatpush.bf16.msra.mxu0 %v2102
    %3270 = vmatpush.bf16.msra.mxu0 %v2094
    %3271 = vmatpush.bf16.msra.mxu0 %v2086
    %3272 = vmatpush.bf16.msra.mxu0 %v2078
    %3273 = vmatpush.bf16.msra.mxu0 %v2070
    %3274 = vmatpush.bf16.msra.mxu0 %v2062
    %3275 = vmatmul.bf16.gmra.mxu0 %v637
    %v3276 = vpop.f32.mrf.mxu0
    %v3277 = vadd.f32 %v3264, %v3276
    %v3278 = vpop.f32.mrf.mxu0
    %3279 = vdwg.mxu0
    %3280 = vmatpush.bf16.msra.mxu0 %v2182
    %3281 = vmatpush.bf16.msra.mxu0 %v2174
    %3282 = vmatpush.bf16.msra.mxu0 %v2166
    %3283 = vmatpush.bf16.msra.mxu0 %v2158
    %3284 = vmatpush.bf16.msra.mxu0 %v2150
    %3285 = vmatpush.bf16.msra.mxu0 %v2142
    %3286 = vmatpush.bf16.msra.mxu0 %v2134
    %3287 = vmatpush.bf16.msra.mxu0 %v2126
    %3288 = vmatmul.bf16.gmra.mxu0 %v638
    %v3289 = vpop.f32.mrf.mxu0
    %v3290 = vadd.f32 %v3277, %v3289
    %v3291 = vpop.f32.mrf.mxu0
    %3292 = vdwg.mxu0
    %3293 = vmatpush.bf16.msra.mxu0 %v2246
    %3294 = vmatpush.bf16.msra.mxu0 %v2238
    %3295 = vmatpush.bf16.msra.mxu0 %v2230
    %3296 = vmatpush.bf16.msra.mxu0 %v2222
    %3297 = vmatpush.bf16.msra.mxu0 %v2214
    %3298 = vmatpush.bf16.msra.mxu0 %v2206
    %3299 = vmatpush.bf16.msra.mxu0 %v2198
    %3300 = vmatpush.bf16.msra.mxu0 %v2190
    %3301 = vmatmul.bf16.gmra.mxu0 %v639
    %v3302 = vpop.f32.mrf.mxu0
    %v3303 = vadd.f32 %v3290, %v3302
    %v3304 = vpop.f32.mrf.mxu0
    %3305 = vdwg.mxu0
    %3306 = vmatpush.bf16.msra.mxu0 %v2310
    %3307 = vmatpush.bf16.msra.mxu0 %v2302
    %3308 = vmatpush.bf16.msra.mxu0 %v2294
    %3309 = vmatpush.bf16.msra.mxu0 %v2286
    %3310 = vmatpush.bf16.msra.mxu0 %v2278
    %3311 = vmatpush.bf16.msra.mxu0 %v2270
    %3312 = vmatpush.bf16.msra.mxu0 %v2262
    %3313 = vmatpush.bf16.msra.mxu0 %v2254
    %3314 = vmatmul.bf16.gmra.mxu0 %v640
    %v3315 = vpop.f32.mrf.mxu0
    %v3316 = vadd.f32 %v3303, %v3315
    %v3317 = vpop.f32.mrf.mxu0
    %3318 = vdwg.mxu0
    %3319 = vmatpush.bf16.msra.mxu0 %v2374
    %3320 = vmatpush.bf16.msra.mxu0 %v2366
    %3321 = vmatpush.bf16.msra.mxu0 %v2358
    %3322 = vmatpush.bf16.msra.mxu0 %v2350
    %3323 = vmatpush.bf16.msra.mxu0 %v2342
    %3324 = vmatpush.bf16.msra.mxu0 %v2334
    %3325 = vmatpush.bf16.msra.mxu0 %v2326
    %3326 = vmatpush.bf16.msra.mxu0 %v2318
    %3327 = vmatmul.bf16.gmra.mxu0 %v641
    %v3328 = vpop.f32.mrf.mxu0
    %v3329 = vadd.f32 %v3316, %v3328
    %v3330 = vpop.f32.mrf.mxu0
    %3331 = vdwg.mxu0
    %3332 = vmatpush.bf16.msra.mxu0 %v2438
    %3333 = vmatpush.bf16.msra.mxu0 %v2430
    %3334 = vmatpush.bf16.msra.mxu0 %v2422
    %3335 = vmatpush.bf16.msra.mxu0 %v2414
    %3336 = vmatpush.bf16.msra.mxu0 %v2406
    %3337 = vmatpush.bf16.msra.mxu0 %v2398
    %3338 = vmatpush.bf16.msra.mxu0 %v2390
    %3339 = vmatpush.bf16.msra.mxu0 %v2382
    %3340 = vmatmul.bf16.gmra.mxu0 %v642
    %v3341 = vpop.f32.mrf.mxu0
    %v3342 = vadd.f32 %v3329, %v3341
    %v3343 = vpop.f32.mrf.mxu0
    %3344 = vdwg.mxu0
    %3345 = vmatpush.bf16.msra.mxu0 %v2055
    %3346 = vmatpush.bf16.msra.mxu0 %v2047
    %3347 = vmatpush.bf16.msra.mxu0 %v2039
    %3348 = vmatpush.bf16.msra.mxu0 %v2031
    %3349 = vmatpush.bf16.msra.mxu0 %v2023
    %3350 = vmatpush.bf16.msra.mxu0 %v2015
    %3351 = vmatpush.bf16.msra.mxu0 %v2007
    %3352 = vmatpush.bf16.msra.mxu0 %v1999
    %3353 = vmatmul.bf16.gmra.mxu0 %v636
    %v3354 = vpop.f32.mrf.mxu0
    %v3355 = vadd.f32 %v614, %v3354
    %v3356 = vpop.f32.mrf.mxu0
    %3357 = vdwg.mxu0
    %3358 = vmatpush.bf16.msra.mxu0 %v2119
    %3359 = vmatpush.bf16.msra.mxu0 %v2111
    %3360 = vmatpush.bf16.msra.mxu0 %v2103
    %3361 = vmatpush.bf16.msra.mxu0 %v2095
    %3362 = vmatpush.bf16.msra.mxu0 %v2087
    %3363 = vmatpush.bf16.msra.mxu0 %v2079
    %3364 = vmatpush.bf16.msra.mxu0 %v2071
    %3365 = vmatpush.bf16.msra.mxu0 %v2063
    %3366 = vmatmul.bf16.gmra.mxu0 %v637
    %v3367 = vpop.f32.mrf.mxu0
    %v3368 = vadd.f32 %v3355, %v3367
    %v3369 = vpop.f32.mrf.mxu0
    %3370 = vdwg.mxu0
    %3371 = vmatpush.bf16.msra.mxu0 %v2183
    %3372 = vmatpush.bf16.msra.mxu0 %v2175
    %3373 = vmatpush.bf16.msra.mxu0 %v2167
    %3374 = vmatpush.bf16.msra.mxu0 %v2159
    %3375 = vmatpush.bf16.msra.mxu0 %v2151
    %3376 = vmatpush.bf16.msra.mxu0 %v2143
    %3377 = vmatpush.bf16.msra.mxu0 %v2135
    %3378 = vmatpush.bf16.msra.mxu0 %v2127
    %3379 = vmatmul.bf16.gmra.mxu0 %v638
    %v3380 = vpop.f32.mrf.mxu0
    %v3381 = vadd.f32 %v3368, %v3380
    %v3382 = vpop.f32.mrf.mxu0
    %3383 = vdwg.mxu0
    %3384 = vmatpush.bf16.msra.mxu0 %v2247
    %3385 = vmatpush.bf16.msra.mxu0 %v2239
    %3386 = vmatpush.bf16.msra.mxu0 %v2231
    %3387 = vmatpush.bf16.msra.mxu0 %v2223
    %3388 = vmatpush.bf16.msra.mxu0 %v2215
    %3389 = vmatpush.bf16.msra.mxu0 %v2207
    %3390 = vmatpush.bf16.msra.mxu0 %v2199
    %3391 = vmatpush.bf16.msra.mxu0 %v2191
    %3392 = vmatmul.bf16.gmra.mxu0 %v639
    %v3393 = vpop.f32.mrf.mxu0
    %v3394 = vadd.f32 %v3381, %v3393
    %v3395 = vpop.f32.mrf.mxu0
    %3396 = vdwg.mxu0
    %3397 = vmatpush.bf16.msra.mxu0 %v2311
    %3398 = vmatpush.bf16.msra.mxu0 %v2303
    %3399 = vmatpush.bf16.msra.mxu0 %v2295
    %3400 = vmatpush.bf16.msra.mxu0 %v2287
    %3401 = vmatpush.bf16.msra.mxu0 %v2279
    %3402 = vmatpush.bf16.msra.mxu0 %v2271
    %3403 = vmatpush.bf16.msra.mxu0 %v2263
    %3404 = vmatpush.bf16.msra.mxu0 %v2255
    %3405 = vmatmul.bf16.gmra.mxu0 %v640
    %v3406 = vpop.f32.mrf.mxu0
    %v3407 = vadd.f32 %v3394, %v3406
    %v3408 = vpop.f32.mrf.mxu0
    %3409 = vdwg.mxu0
    %3410 = vmatpush.bf16.msra.mxu0 %v2375
    %3411 = vmatpush.bf16.msra.mxu0 %v2367
    %3412 = vmatpush.bf16.msra.mxu0 %v2359
    %3413 = vmatpush.bf16.msra.mxu0 %v2351
    %3414 = vmatpush.bf16.msra.mxu0 %v2343
    %3415 = vmatpush.bf16.msra.mxu0 %v2335
    %3416 = vmatpush.bf16.msra.mxu0 %v2327
    %3417 = vmatpush.bf16.msra.mxu0 %v2319
    %3418 = vmatmul.bf16.gmra.mxu0 %v641
    %v3419 = vpop.f32.mrf.mxu0
    %v3420 = vadd.f32 %v3407, %v3419
    %v3421 = vpop.f32.mrf.mxu0
    %3422 = vdwg.mxu0
    %3423 = vmatpush.bf16.msra.mxu0 %v2439
    %3424 = vmatpush.bf16.msra.mxu0 %v2431
    %3425 = vmatpush.bf16.msra.mxu0 %v2423
    %3426 = vmatpush.bf16.msra.mxu0 %v2415
    %3427 = vmatpush.bf16.msra.mxu0 %v2407
    %3428 = vmatpush.bf16.msra.mxu0 %v2399
    %3429 = vmatpush.bf16.msra.mxu0 %v2391
    %3430 = vmatpush.bf16.msra.mxu0 %v2383
    %3431 = vmatmul.bf16.gmra.mxu0 %v642
    %v3432 = vpop.f32.mrf.mxu0
    %v3433 = vadd.f32 %v3420, %v3432
    %v3434 = vpop.f32.mrf.mxu0
    %3435 = vdwg.mxu0
    %3436 = vmatpush.bf16.msra.mxu0 %v2056
    %3437 = vmatpush.bf16.msra.mxu0 %v2048
    %3438 = vmatpush.bf16.msra.mxu0 %v2040
    %3439 = vmatpush.bf16.msra.mxu0 %v2032
    %3440 = vmatpush.bf16.msra.mxu0 %v2024
    %3441 = vmatpush.bf16.msra.mxu0 %v2016
    %3442 = vmatpush.bf16.msra.mxu0 %v2008
    %3443 = vmatpush.bf16.msra.mxu0 %v2000
    %3444 = vmatmul.bf16.gmra.mxu0 %v636
    %v3445 = vpop.f32.mrf.mxu0
    %v3446 = vadd.f32 %v615, %v3445
    %v3447 = vpop.f32.mrf.mxu0
    %3448 = vdwg.mxu0
    %3449 = vmatpush.bf16.msra.mxu0 %v2120
    %3450 = vmatpush.bf16.msra.mxu0 %v2112
    %3451 = vmatpush.bf16.msra.mxu0 %v2104
    %3452 = vmatpush.bf16.msra.mxu0 %v2096
    %3453 = vmatpush.bf16.msra.mxu0 %v2088
    %3454 = vmatpush.bf16.msra.mxu0 %v2080
    %3455 = vmatpush.bf16.msra.mxu0 %v2072
    %3456 = vmatpush.bf16.msra.mxu0 %v2064
    %3457 = vmatmul.bf16.gmra.mxu0 %v637
    %v3458 = vpop.f32.mrf.mxu0
    %v3459 = vadd.f32 %v3446, %v3458
    %v3460 = vpop.f32.mrf.mxu0
    %3461 = vdwg.mxu0
    %3462 = vmatpush.bf16.msra.mxu0 %v2184
    %3463 = vmatpush.bf16.msra.mxu0 %v2176
    %3464 = vmatpush.bf16.msra.mxu0 %v2168
    %3465 = vmatpush.bf16.msra.mxu0 %v2160
    %3466 = vmatpush.bf16.msra.mxu0 %v2152
    %3467 = vmatpush.bf16.msra.mxu0 %v2144
    %3468 = vmatpush.bf16.msra.mxu0 %v2136
    %3469 = vmatpush.bf16.msra.mxu0 %v2128
    %3470 = vmatmul.bf16.gmra.mxu0 %v638
    %v3471 = vpop.f32.mrf.mxu0
    %v3472 = vadd.f32 %v3459, %v3471
    %v3473 = vpop.f32.mrf.mxu0
    %3474 = vdwg.mxu0
    %3475 = vmatpush.bf16.msra.mxu0 %v2248
    %3476 = vmatpush.bf16.msra.mxu0 %v2240
    %3477 = vmatpush.bf16.msra.mxu0 %v2232
    %3478 = vmatpush.bf16.msra.mxu0 %v2224
    %3479 = vmatpush.bf16.msra.mxu0 %v2216
    %3480 = vmatpush.bf16.msra.mxu0 %v2208
    %3481 = vmatpush.bf16.msra.mxu0 %v2200
    %3482 = vmatpush.bf16.msra.mxu0 %v2192
    %3483 = vmatmul.bf16.gmra.mxu0 %v639
    %v3484 = vpop.f32.mrf.mxu0
    %v3485 = vadd.f32 %v3472, %v3484
    %v3486 = vpop.f32.mrf.mxu0
    %3487 = vdwg.mxu0
    %3488 = vmatpush.bf16.msra.mxu0 %v2312
    %3489 = vmatpush.bf16.msra.mxu0 %v2304
    %3490 = vmatpush.bf16.msra.mxu0 %v2296
    %3491 = vmatpush.bf16.msra.mxu0 %v2288
    %3492 = vmatpush.bf16.msra.mxu0 %v2280
    %3493 = vmatpush.bf16.msra.mxu0 %v2272
    %3494 = vmatpush.bf16.msra.mxu0 %v2264
    %3495 = vmatpush.bf16.msra.mxu0 %v2256
    %3496 = vmatmul.bf16.gmra.mxu0 %v640
    %v3497 = vpop.f32.mrf.mxu0
    %v3498 = vadd.f32 %v3485, %v3497
    %v3499 = vpop.f32.mrf.mxu0
    %3500 = vdwg.mxu0
    %3501 = vmatpush.bf16.msra.mxu0 %v2376
    %3502 = vmatpush.bf16.msra.mxu0 %v2368
    %3503 = vmatpush.bf16.msra.mxu0 %v2360
    %3504 = vmatpush.bf16.msra.mxu0 %v2352
    %3505 = vmatpush.bf16.msra.mxu0 %v2344
    %3506 = vmatpush.bf16.msra.mxu0 %v2336
    %3507 = vmatpush.bf16.msra.mxu0 %v2328
    %3508 = vmatpush.bf16.msra.mxu0 %v2320
    %3509 = vmatmul.bf16.gmra.mxu0 %v641
    %v3510 = vpop.f32.mrf.mxu0
    %v3511 = vadd.f32 %v3498, %v3510
    %v3512 = vpop.f32.mrf.mxu0
    %3513 = vdwg.mxu0
    %3514 = vmatpush.bf16.msra.mxu0 %v2440
    %3515 = vmatpush.bf16.msra.mxu0 %v2432
    %3516 = vmatpush.bf16.msra.mxu0 %v2424
    %3517 = vmatpush.bf16.msra.mxu0 %v2416
    %3518 = vmatpush.bf16.msra.mxu0 %v2408
    %3519 = vmatpush.bf16.msra.mxu0 %v2400
    %3520 = vmatpush.bf16.msra.mxu0 %v2392
    %3521 = vmatpush.bf16.msra.mxu0 %v2384
    %3522 = vmatmul.bf16.gmra.mxu0 %v642
    %v3523 = vpop.f32.mrf.mxu0
    %v3524 = vadd.f32 %v3511, %v3523
    %v3525 = vpop.f32.mrf.mxu0
    %3526 = vdwg.mxu0
    %3527 = vmatpush.bf16.msra.mxu0 %v2057
    %3528 = vmatpush.bf16.msra.mxu0 %v2049
    %3529 = vmatpush.bf16.msra.mxu0 %v2041
    %3530 = vmatpush.bf16.msra.mxu0 %v2033
    %3531 = vmatpush.bf16.msra.mxu0 %v2025
    %3532 = vmatpush.bf16.msra.mxu0 %v2017
    %3533 = vmatpush.bf16.msra.mxu0 %v2009
    %3534 = vmatpush.bf16.msra.mxu0 %v2001
    %3535 = vmatmul.bf16.gmra.mxu0 %v636
    %v3536 = vpop.f32.mrf.mxu0
    %v3537 = vadd.f32 %v616, %v3536
    %v3538 = vpop.f32.mrf.mxu0
    %3539 = vdwg.mxu0
    %3540 = vmatpush.bf16.msra.mxu0 %v2121
    %3541 = vmatpush.bf16.msra.mxu0 %v2113
    %3542 = vmatpush.bf16.msra.mxu0 %v2105
    %3543 = vmatpush.bf16.msra.mxu0 %v2097
    %3544 = vmatpush.bf16.msra.mxu0 %v2089
    %3545 = vmatpush.bf16.msra.mxu0 %v2081
    %3546 = vmatpush.bf16.msra.mxu0 %v2073
    %3547 = vmatpush.bf16.msra.mxu0 %v2065
    %3548 = vmatmul.bf16.gmra.mxu0 %v637
    %v3549 = vpop.f32.mrf.mxu0
    %v3550 = vadd.f32 %v3537, %v3549
    %v3551 = vpop.f32.mrf.mxu0
    %3552 = vdwg.mxu0
    %3553 = vmatpush.bf16.msra.mxu0 %v2185
    %3554 = vmatpush.bf16.msra.mxu0 %v2177
    %3555 = vmatpush.bf16.msra.mxu0 %v2169
    %3556 = vmatpush.bf16.msra.mxu0 %v2161
    %3557 = vmatpush.bf16.msra.mxu0 %v2153
    %3558 = vmatpush.bf16.msra.mxu0 %v2145
    %3559 = vmatpush.bf16.msra.mxu0 %v2137
    %3560 = vmatpush.bf16.msra.mxu0 %v2129
    %3561 = vmatmul.bf16.gmra.mxu0 %v638
    %v3562 = vpop.f32.mrf.mxu0
    %v3563 = vadd.f32 %v3550, %v3562
    %v3564 = vpop.f32.mrf.mxu0
    %3565 = vdwg.mxu0
    %3566 = vmatpush.bf16.msra.mxu0 %v2249
    %3567 = vmatpush.bf16.msra.mxu0 %v2241
    %3568 = vmatpush.bf16.msra.mxu0 %v2233
    %3569 = vmatpush.bf16.msra.mxu0 %v2225
    %3570 = vmatpush.bf16.msra.mxu0 %v2217
    %3571 = vmatpush.bf16.msra.mxu0 %v2209
    %3572 = vmatpush.bf16.msra.mxu0 %v2201
    %3573 = vmatpush.bf16.msra.mxu0 %v2193
    %3574 = vmatmul.bf16.gmra.mxu0 %v639
    %v3575 = vpop.f32.mrf.mxu0
    %v3576 = vadd.f32 %v3563, %v3575
    %v3577 = vpop.f32.mrf.mxu0
    %3578 = vdwg.mxu0
    %3579 = vmatpush.bf16.msra.mxu0 %v2313
    %3580 = vmatpush.bf16.msra.mxu0 %v2305
    %3581 = vmatpush.bf16.msra.mxu0 %v2297
    %3582 = vmatpush.bf16.msra.mxu0 %v2289
    %3583 = vmatpush.bf16.msra.mxu0 %v2281
    %3584 = vmatpush.bf16.msra.mxu0 %v2273
    %3585 = vmatpush.bf16.msra.mxu0 %v2265
    %3586 = vmatpush.bf16.msra.mxu0 %v2257
    %3587 = vmatmul.bf16.gmra.mxu0 %v640
    %v3588 = vpop.f32.mrf.mxu0
    %v3589 = vadd.f32 %v3576, %v3588
    %v3590 = vpop.f32.mrf.mxu0
    %3591 = vdwg.mxu0
    %3592 = vmatpush.bf16.msra.mxu0 %v2377
    %3593 = vmatpush.bf16.msra.mxu0 %v2369
    %3594 = vmatpush.bf16.msra.mxu0 %v2361
    %3595 = vmatpush.bf16.msra.mxu0 %v2353
    %3596 = vmatpush.bf16.msra.mxu0 %v2345
    %3597 = vmatpush.bf16.msra.mxu0 %v2337
    %3598 = vmatpush.bf16.msra.mxu0 %v2329
    %3599 = vmatpush.bf16.msra.mxu0 %v2321
    %3600 = vmatmul.bf16.gmra.mxu0 %v641
    %v3601 = vpop.f32.mrf.mxu0
    %v3602 = vadd.f32 %v3589, %v3601
    %v3603 = vpop.f32.mrf.mxu0
    %3604 = vdwg.mxu0
    %3605 = vmatpush.bf16.msra.mxu0 %v2441
    %3606 = vmatpush.bf16.msra.mxu0 %v2433
    %3607 = vmatpush.bf16.msra.mxu0 %v2425
    %3608 = vmatpush.bf16.msra.mxu0 %v2417
    %3609 = vmatpush.bf16.msra.mxu0 %v2409
    %3610 = vmatpush.bf16.msra.mxu0 %v2401
    %3611 = vmatpush.bf16.msra.mxu0 %v2393
    %3612 = vmatpush.bf16.msra.mxu0 %v2385
    %3613 = vmatmul.bf16.gmra.mxu0 %v642
    %v3614 = vpop.f32.mrf.mxu0
    %v3615 = vadd.f32 %v3602, %v3614
    %v3616 = vpop.f32.mrf.mxu0
    %3617 = vdwg.mxu0
    %v3618 = vmul.f32 %v2978, 0.2
    %v3619 = vmul.f32 %v3069, 0.2
    %v3620 = vmul.f32 %v3160, 0.2
    %v3621 = vmul.f32 %v3251, 0.2
    %v3622 = vmul.f32 %v3342, 0.2
    %v3623 = vmul.f32 %v3433, 0.2
    %v3624 = vmul.f32 %v3524, 0.2
    %v3625 = vmul.f32 %v3615, 0.2
    %v3626 = vmax.f32 %v2978, %v3618
    %v3627 = vmax.f32 %v3069, %v3619
    %v3628 = vmax.f32 %v3160, %v3620
    %v3629 = vmax.f32 %v3251, %v3621
    %v3630 = vmax.f32 %v3342, %v3622
    %v3631 = vmax.f32 %v3433, %v3623
    %v3632 = vmax.f32 %v3524, %v3624
    %v3633 = vmax.f32 %v3615, %v3625
    %v3634 = vlaneseq
    %v3635 = vshrl.u32 %v3634, 7
    %v3636 = vstv %s154
    %v3637 = vadd.s32 %v3635, %v3636
    %v3638 = vlaneseq
    %v3639 = vand.u32 %v3638, 127
    %v3640 = vadd.s32 %v3639, 128
    %v3641 = vadd.s32 %v3639, 256
    %v3642 = vadd.s32 %v3639, 384
    %v3643 = vadd.s32 %v3639, 512
    %v3644 = vadd.s32 %v3639, 640
    %v3645 = vadd.s32 %v3639, 768
    %v3646 = vadd.s32 %v3639, 896
    %v3647 = vmul.u32 %v3637, 2654435769
    %v3648 = vmul.u32 %v3639, 3432918353
    %v3649 = vmul.u32 %v3640, 3432918353
    %v3650 = vmul.u32 %v3641, 3432918353
    %v3651 = vmul.u32 %v3642, 3432918353
    %v3652 = vmul.u32 %v3643, 3432918353
    %v3653 = vmul.u32 %v3644, 3432918353
    %v3654 = vmul.u32 %v3645, 3432918353
    %v3655 = vmul.u32 %v3646, 3432918353
    %v3656 = vxor.u32 %v3647, %v3648
    %v3657 = vxor.u32 %v3647, %v3649
    %v3658 = vxor.u32 %v3647, %v3650
    %v3659 = vxor.u32 %v3647, %v3651
    %v3660 = vxor.u32 %v3647, %v3652
    %v3661 = vxor.u32 %v3647, %v3653
    %v3662 = vxor.u32 %v3647, %v3654
    %v3663 = vxor.u32 %v3647, %v3655
    %s3664 = smul.u32 %s153, 19349663
    %v3665 = vstv %s3664
    %v3666 = vadd.s32 %v3656, %v3665
    %v3667 = vadd.s32 %v3657, %v3665
    %v3668 = vadd.s32 %v3658, %v3665
    %v3669 = vadd.s32 %v3659, %v3665
    %v3670 = vadd.s32 %v3660, %v3665
    %v3671 = vadd.s32 %v3661, %v3665
    %v3672 = vadd.s32 %v3662, %v3665
    %v3673 = vadd.s32 %v3663, %v3665
    %v3674 = vadd.s32 %v3666, 1
    %v3675 = vadd.s32 %v3667, 1
    %v3676 = vadd.s32 %v3668, 1
    %v3677 = vadd.s32 %v3669, 1
    %v3678 = vadd.s32 %v3670, 1
    %v3679 = vadd.s32 %v3671, 1
    %v3680 = vadd.s32 %v3672, 1
    %v3681 = vadd.s32 %v3673, 1
    %v3682 = vshrl.u32 %v3674, 16
    %v3683 = vshrl.u32 %v3675, 16
    %v3684 = vshrl.u32 %v3676, 16
    %v3685 = vshrl.u32 %v3677, 16
    %v3686 = vshrl.u32 %v3678, 16
    %v3687 = vshrl.u32 %v3679, 16
    %v3688 = vshrl.u32 %v3680, 16
    %v3689 = vshrl.u32 %v3681, 16
    %v3690 = vxor.u32 %v3674, %v3682
    %v3691 = vxor.u32 %v3675, %v3683
    %v3692 = vxor.u32 %v3676, %v3684
    %v3693 = vxor.u32 %v3677, %v3685
    %v3694 = vxor.u32 %v3678, %v3686
    %v3695 = vxor.u32 %v3679, %v3687
    %v3696 = vxor.u32 %v3680, %v3688
    %v3697 = vxor.u32 %v3681, %v3689
    %v3698 = vmul.u32 %v3690, 2246822507
    %v3699 = vmul.u32 %v3691, 2246822507
    %v3700 = vmul.u32 %v3692, 2246822507
    %v3701 = vmul.u32 %v3693, 2246822507
    %v3702 = vmul.u32 %v3694, 2246822507
    %v3703 = vmul.u32 %v3695, 2246822507
    %v3704 = vmul.u32 %v3696, 2246822507
    %v3705 = vmul.u32 %v3697, 2246822507
    %v3706 = vshrl.u32 %v3698, 13
    %v3707 = vshrl.u32 %v3699, 13
    %v3708 = vshrl.u32 %v3700, 13
    %v3709 = vshrl.u32 %v3701, 13
    %v3710 = vshrl.u32 %v3702, 13
    %v3711 = vshrl.u32 %v3703, 13
    %v3712 = vshrl.u32 %v3704, 13
    %v3713 = vshrl.u32 %v3705, 13
    %v3714 = vxor.u32 %v3698, %v3706
    %v3715 = vxor.u32 %v3699, %v3707
    %v3716 = vxor.u32 %v3700, %v3708
    %v3717 = vxor.u32 %v3701, %v3709
    %v3718 = vxor.u32 %v3702, %v3710
    %v3719 = vxor.u32 %v3703, %v3711
    %v3720 = vxor.u32 %v3704, %v3712
    %v3721 = vxor.u32 %v3705, %v3713
    %v3722 = vmul.u32 %v3714, 3266489909
    %v3723 = vmul.u32 %v3715, 3266489909
    %v3724 = vmul.u32 %v3716, 3266489909
    %v3725 = vmul.u32 %v3717, 3266489909
    %v3726 = vmul.u32 %v3718, 3266489909
    %v3727 = vmul.u32 %v3719, 3266489909
    %v3728 = vmul.u32 %v3720, 3266489909
    %v3729 = vmul.u32 %v3721, 3266489909
    %v3730 = vshrl.u32 %v3722, 16
    %v3731 = vshrl.u32 %v3723, 16
    %v3732 = vshrl.u32 %v3724, 16
    %v3733 = vshrl.u32 %v3725, 16
    %v3734 = vshrl.u32 %v3726, 16
    %v3735 = vshrl.u32 %v3727, 16
    %v3736 = vshrl.u32 %v3728, 16
    %v3737 = vshrl.u32 %v3729, 16
    %v3738 = vxor.u32 %v3722, %v3730
    %v3739 = vxor.u32 %v3723, %v3731
    %v3740 = vxor.u32 %v3724, %v3732
    %v3741 = vxor.u32 %v3725, %v3733
    %v3742 = vxor.u32 %v3726, %v3734
    %v3743 = vxor.u32 %v3727, %v3735
    %v3744 = vxor.u32 %v3728, %v3736
    %v3745 = vxor.u32 %v3729, %v3737
    %v3746 = vshrl.u32 %v3738, 8
    %v3747 = vshrl.u32 %v3739, 8
    %v3748 = vshrl.u32 %v3740, 8
    %v3749 = vshrl.u32 %v3741, 8
    %v3750 = vshrl.u32 %v3742, 8
    %v3751 = vshrl.u32 %v3743, 8
    %v3752 = vshrl.u32 %v3744, 8
    %v3753 = vshrl.u32 %v3745, 8
    %vm3754 = vcmp.ge.s32.totalorder %v3746, 5033164
    %vm3755 = vcmp.ge.s32.totalorder %v3747, 5033164
    %vm3756 = vcmp.ge.s32.totalorder %v3748, 5033164
    %vm3757 = vcmp.ge.s32.totalorder %v3749, 5033164
    %vm3758 = vcmp.ge.s32.totalorder %v3750, 5033164
    %vm3759 = vcmp.ge.s32.totalorder %v3751, 5033164
    %vm3760 = vcmp.ge.s32.totalorder %v3752, 5033164
    %vm3761 = vcmp.ge.s32.totalorder %v3753, 5033164
    %v3762 = vmul.f32 %v3626, 1.4285715
    %v3763 = vmul.f32 %v3627, 1.4285715
    %v3764 = vmul.f32 %v3628, 1.4285715
    %v3765 = vmul.f32 %v3629, 1.4285715
    %v3766 = vmul.f32 %v3630, 1.4285715
    %v3767 = vmul.f32 %v3631, 1.4285715
    %v3768 = vmul.f32 %v3632, 1.4285715
    %v3769 = vmul.f32 %v3633, 1.4285715
    %v3770 = vsel %vm3754, %v3762, 0.0
    %v3771 = vsel %vm3755, %v3763, 0.0
    %v3772 = vsel %vm3756, %v3764, 0.0
    %v3773 = vsel %vm3757, %v3765, 0.0
    %v3774 = vsel %vm3758, %v3766, 0.0
    %v3775 = vsel %vm3759, %v3767, 0.0
    %v3776 = vsel %vm3760, %v3768, 0.0
    %v3777 = vsel %vm3761, %v3769, 0.0
    %v3778 = vpack.c.bf16 %v3770, %v3770
    %v3779 = vpack.c.bf16 %v3771, %v3771
    %v3780 = vpack.c.bf16 %v3772, %v3772
    %v3781 = vpack.c.bf16 %v3773, %v3773
    %v3782 = vpack.c.bf16 %v3774, %v3774
    %v3783 = vpack.c.bf16 %v3775, %v3775
    %v3784 = vpack.c.bf16 %v3776, %v3776
    %v3785 = vpack.c.bf16 %v3777, %v3777
    %v3786 = vld [vmem:[#allocation7] sm:$0xff]
    %v3787 = vld [vmem:[#allocation7 + $0x8] sm:$0xff]
    %v3788 = vld [vmem:[#allocation7 + $0x10] sm:$0xff]
    %v3789 = vld [vmem:[#allocation7 + $0x18] sm:$0xff]
    %v3790 = vld [vmem:[#allocation7 + $0x20] sm:$0xff]
    %v3791 = vld [vmem:[#allocation7 + $0x28] sm:$0xff]
    %v3792 = vld [vmem:[#allocation7 + $0x30] sm:$0xff]
    %v3793 = vld [vmem:[#allocation7 + $0x38] sm:$0xff]
    %v3794 = vld [vmem:[#allocation7 + $0x40] sm:$0xff]
    %v3795 = vld [vmem:[#allocation7 + $0x48] sm:$0xff]
    %v3796 = vld [vmem:[#allocation7 + $0x50] sm:$0xff]
    %v3797 = vld [vmem:[#allocation7 + $0x58] sm:$0xff]
    %v3798 = vld [vmem:[#allocation7 + $0x60] sm:$0xff]
    %v3799 = vld [vmem:[#allocation7 + $0x68] sm:$0xff]
    %v3800 = vld [vmem:[#allocation7 + $0x70] sm:$0xff]
    %v3801 = vld [vmem:[#allocation7 + $0x78] sm:$0xff]
    %v3802 = vld [vmem:[#allocation7 + $0x80] sm:$0xff]
    %v3803 = vld [vmem:[#allocation7 + $0x88] sm:$0xff]
    %v3804 = vld [vmem:[#allocation7 + $0x90] sm:$0xff]
    %v3805 = vld [vmem:[#allocation7 + $0x98] sm:$0xff]
    %v3806 = vld [vmem:[#allocation7 + $0xa0] sm:$0xff]
    %v3807 = vld [vmem:[#allocation7 + $0xa8] sm:$0xff]
    %v3808 = vld [vmem:[#allocation7 + $0xb0] sm:$0xff]
    %v3809 = vld [vmem:[#allocation7 + $0xb8] sm:$0xff]
    %v3810 = vld [vmem:[#allocation7 + $0xc0] sm:$0xff]
    %v3811 = vld [vmem:[#allocation7 + $0xc8] sm:$0xff]
    %v3812 = vld [vmem:[#allocation7 + $0xd0] sm:$0xff]
    %v3813 = vld [vmem:[#allocation7 + $0xd8] sm:$0xff]
    %v3814 = vld [vmem:[#allocation7 + $0xe0] sm:$0xff]
    %v3815 = vld [vmem:[#allocation7 + $0xe8] sm:$0xff]
    %v3816 = vld [vmem:[#allocation7 + $0xf0] sm:$0xff]
    %v3817 = vld [vmem:[#allocation7 + $0xf8] sm:$0xff]
    %v3818 = vld [vmem:[#allocation7 + $0x100] sm:$0xff]
    %v3819 = vld [vmem:[#allocation7 + $0x108] sm:$0xff]
    %v3820 = vld [vmem:[#allocation7 + $0x110] sm:$0xff]
    %v3821 = vld [vmem:[#allocation7 + $0x118] sm:$0xff]
    %v3822 = vld [vmem:[#allocation7 + $0x120] sm:$0xff]
    %v3823 = vld [vmem:[#allocation7 + $0x128] sm:$0xff]
    %v3824 = vld [vmem:[#allocation7 + $0x130] sm:$0xff]
    %v3825 = vld [vmem:[#allocation7 + $0x138] sm:$0xff]
    %v3826 = vld [vmem:[#allocation7 + $0x140] sm:$0xff]
    %v3827 = vld [vmem:[#allocation7 + $0x148] sm:$0xff]
    %v3828 = vld [vmem:[#allocation7 + $0x150] sm:$0xff]
    %v3829 = vld [vmem:[#allocation7 + $0x158] sm:$0xff]
    %v3830 = vld [vmem:[#allocation7 + $0x160] sm:$0xff]
    %v3831 = vld [vmem:[#allocation7 + $0x168] sm:$0xff]
    %v3832 = vld [vmem:[#allocation7 + $0x170] sm:$0xff]
    %v3833 = vld [vmem:[#allocation7 + $0x178] sm:$0xff]
    %v3834 = vld [vmem:[#allocation7 + $0x180] sm:$0xff]
    %v3835 = vld [vmem:[#allocation7 + $0x188] sm:$0xff]
    %v3836 = vld [vmem:[#allocation7 + $0x190] sm:$0xff]
    %v3837 = vld [vmem:[#allocation7 + $0x198] sm:$0xff]
    %v3838 = vld [vmem:[#allocation7 + $0x1a0] sm:$0xff]
    %v3839 = vld [vmem:[#allocation7 + $0x1a8] sm:$0xff]
    %v3840 = vld [vmem:[#allocation7 + $0x1b0] sm:$0xff]
    %v3841 = vld [vmem:[#allocation7 + $0x1b8] sm:$0xff]
    %v3842 = vld [vmem:[#allocation7 + $0x1c0] sm:$0xff]
    %v3843 = vld [vmem:[#allocation7 + $0x1c8] sm:$0xff]
    %v3844 = vld [vmem:[#allocation7 + $0x1d0] sm:$0xff]
    %v3845 = vld [vmem:[#allocation7 + $0x1d8] sm:$0xff]
    %v3846 = vld [vmem:[#allocation7 + $0x1e0] sm:$0xff]
    %v3847 = vld [vmem:[#allocation7 + $0x1e8] sm:$0xff]
    %v3848 = vld [vmem:[#allocation7 + $0x1f0] sm:$0xff]
    %v3849 = vld [vmem:[#allocation7 + $0x1f8] sm:$0xff]
    %v3850 = vld [vmem:[#allocation7 + $0x200] sm:$0xff]
    %v3851 = vld [vmem:[#allocation7 + $0x208] sm:$0xff]
    %v3852 = vld [vmem:[#allocation7 + $0x210] sm:$0xff]
    %v3853 = vld [vmem:[#allocation7 + $0x218] sm:$0xff]
    %v3854 = vld [vmem:[#allocation7 + $0x220] sm:$0xff]
    %v3855 = vld [vmem:[#allocation7 + $0x228] sm:$0xff]
    %v3856 = vld [vmem:[#allocation7 + $0x230] sm:$0xff]
    %v3857 = vld [vmem:[#allocation7 + $0x238] sm:$0xff]
    %v3858 = vld [vmem:[#allocation7 + $0x240] sm:$0xff]
    %v3859 = vld [vmem:[#allocation7 + $0x248] sm:$0xff]
    %v3860 = vld [vmem:[#allocation7 + $0x250] sm:$0xff]
    %v3861 = vld [vmem:[#allocation7 + $0x258] sm:$0xff]
    %v3862 = vld [vmem:[#allocation7 + $0x260] sm:$0xff]
    %v3863 = vld [vmem:[#allocation7 + $0x268] sm:$0xff]
    %v3864 = vld [vmem:[#allocation7 + $0x270] sm:$0xff]
    %v3865 = vld [vmem:[#allocation7 + $0x278] sm:$0xff]
    %v3866 = vld [vmem:[#allocation7 + $0x280] sm:$0xff]
    %v3867 = vld [vmem:[#allocation7 + $0x288] sm:$0xff]
    %v3868 = vld [vmem:[#allocation7 + $0x290] sm:$0xff]
    %v3869 = vld [vmem:[#allocation7 + $0x298] sm:$0xff]
    %v3870 = vld [vmem:[#allocation7 + $0x2a0] sm:$0xff]
    %v3871 = vld [vmem:[#allocation7 + $0x2a8] sm:$0xff]
    %v3872 = vld [vmem:[#allocation7 + $0x2b0] sm:$0xff]
    %v3873 = vld [vmem:[#allocation7 + $0x2b8] sm:$0xff]
    %v3874 = vld [vmem:[#allocation7 + $0x2c0] sm:$0xff]
    %v3875 = vld [vmem:[#allocation7 + $0x2c8] sm:$0xff]
    %v3876 = vld [vmem:[#allocation7 + $0x2d0] sm:$0xff]
    %v3877 = vld [vmem:[#allocation7 + $0x2d8] sm:$0xff]
    %v3878 = vld [vmem:[#allocation7 + $0x2e0] sm:$0xff]
    %v3879 = vld [vmem:[#allocation7 + $0x2e8] sm:$0xff]
    %v3880 = vld [vmem:[#allocation7 + $0x2f0] sm:$0xff]
    %v3881 = vld [vmem:[#allocation7 + $0x2f8] sm:$0xff]
    %v3882 = vld [vmem:[#allocation7 + $0x300] sm:$0xff]
    %v3883 = vld [vmem:[#allocation7 + $0x308] sm:$0xff]
    %v3884 = vld [vmem:[#allocation7 + $0x310] sm:$0xff]
    %v3885 = vld [vmem:[#allocation7 + $0x318] sm:$0xff]
    %v3886 = vld [vmem:[#allocation7 + $0x320] sm:$0xff]
    %v3887 = vld [vmem:[#allocation7 + $0x328] sm:$0xff]
    %v3888 = vld [vmem:[#allocation7 + $0x330] sm:$0xff]
    %v3889 = vld [vmem:[#allocation7 + $0x338] sm:$0xff]
    %v3890 = vld [vmem:[#allocation7 + $0x340] sm:$0xff]
    %v3891 = vld [vmem:[#allocation7 + $0x348] sm:$0xff]
    %v3892 = vld [vmem:[#allocation7 + $0x350] sm:$0xff]
    %v3893 = vld [vmem:[#allocation7 + $0x358] sm:$0xff]
    %v3894 = vld [vmem:[#allocation7 + $0x360] sm:$0xff]
    %v3895 = vld [vmem:[#allocation7 + $0x368] sm:$0xff]
    %v3896 = vld [vmem:[#allocation7 + $0x370] sm:$0xff]
    %v3897 = vld [vmem:[#allocation7 + $0x378] sm:$0xff]
    %v3898 = vld [vmem:[#allocation7 + $0x380] sm:$0xff]
    %v3899 = vld [vmem:[#allocation7 + $0x388] sm:$0xff]
    %v3900 = vld [vmem:[#allocation7 + $0x390] sm:$0xff]
    %v3901 = vld [vmem:[#allocation7 + $0x398] sm:$0xff]
    %v3902 = vld [vmem:[#allocation7 + $0x3a0] sm:$0xff]
    %v3903 = vld [vmem:[#allocation7 + $0x3a8] sm:$0xff]
    %v3904 = vld [vmem:[#allocation7 + $0x3b0] sm:$0xff]
    %v3905 = vld [vmem:[#allocation7 + $0x3b8] sm:$0xff]
    %v3906 = vld [vmem:[#allocation7 + $0x3c0] sm:$0xff]
    %v3907 = vld [vmem:[#allocation7 + $0x3c8] sm:$0xff]
    %v3908 = vld [vmem:[#allocation7 + $0x3d0] sm:$0xff]
    %v3909 = vld [vmem:[#allocation7 + $0x3d8] sm:$0xff]
    %v3910 = vld [vmem:[#allocation7 + $0x3e0] sm:$0xff]
    %v3911 = vld [vmem:[#allocation7 + $0x3e8] sm:$0xff]
    %v3912 = vld [vmem:[#allocation7 + $0x3f0] sm:$0xff]
    %v3913 = vld [vmem:[#allocation7 + $0x3f8] sm:$0xff]
    %v3914 = vld [vmem:[#allocation7 + $0x400] sm:$0xff]
    %v3915 = vld [vmem:[#allocation7 + $0x408] sm:$0xff]
    %v3916 = vld [vmem:[#allocation7 + $0x410] sm:$0xff]
    %v3917 = vld [vmem:[#allocation7 + $0x418] sm:$0xff]
    %v3918 = vld [vmem:[#allocation7 + $0x420] sm:$0xff]
    %v3919 = vld [vmem:[#allocation7 + $0x428] sm:$0xff]
    %v3920 = vld [vmem:[#allocation7 + $0x430] sm:$0xff]
    %v3921 = vld [vmem:[#allocation7 + $0x438] sm:$0xff]
    %v3922 = vld [vmem:[#allocation7 + $0x440] sm:$0xff]
    %v3923 = vld [vmem:[#allocation7 + $0x448] sm:$0xff]
    %v3924 = vld [vmem:[#allocation7 + $0x450] sm:$0xff]
    %v3925 = vld [vmem:[#allocation7 + $0x458] sm:$0xff]
    %v3926 = vld [vmem:[#allocation7 + $0x460] sm:$0xff]
    %v3927 = vld [vmem:[#allocation7 + $0x468] sm:$0xff]
    %v3928 = vld [vmem:[#allocation7 + $0x470] sm:$0xff]
    %v3929 = vld [vmem:[#allocation7 + $0x478] sm:$0xff]
    %v3930 = vld [vmem:[#allocation7 + $0x480] sm:$0xff]
    %v3931 = vld [vmem:[#allocation7 + $0x488] sm:$0xff]
    %v3932 = vld [vmem:[#allocation7 + $0x490] sm:$0xff]
    %v3933 = vld [vmem:[#allocation7 + $0x498] sm:$0xff]
    %v3934 = vld [vmem:[#allocation7 + $0x4a0] sm:$0xff]
    %v3935 = vld [vmem:[#allocation7 + $0x4a8] sm:$0xff]
    %v3936 = vld [vmem:[#allocation7 + $0x4b0] sm:$0xff]
    %v3937 = vld [vmem:[#allocation7 + $0x4b8] sm:$0xff]
    %v3938 = vld [vmem:[#allocation7 + $0x4c0] sm:$0xff]
    %v3939 = vld [vmem:[#allocation7 + $0x4c8] sm:$0xff]
    %v3940 = vld [vmem:[#allocation7 + $0x4d0] sm:$0xff]
    %v3941 = vld [vmem:[#allocation7 + $0x4d8] sm:$0xff]
    %v3942 = vld [vmem:[#allocation7 + $0x4e0] sm:$0xff]
    %v3943 = vld [vmem:[#allocation7 + $0x4e8] sm:$0xff]
    %v3944 = vld [vmem:[#allocation7 + $0x4f0] sm:$0xff]
    %v3945 = vld [vmem:[#allocation7 + $0x4f8] sm:$0xff]
    %v3946 = vld [vmem:[#allocation7 + $0x500] sm:$0xff]
    %v3947 = vld [vmem:[#allocation7 + $0x508] sm:$0xff]
    %v3948 = vld [vmem:[#allocation7 + $0x510] sm:$0xff]
    %v3949 = vld [vmem:[#allocation7 + $0x518] sm:$0xff]
    %v3950 = vld [vmem:[#allocation7 + $0x520] sm:$0xff]
    %v3951 = vld [vmem:[#allocation7 + $0x528] sm:$0xff]
    %v3952 = vld [vmem:[#allocation7 + $0x530] sm:$0xff]
    %v3953 = vld [vmem:[#allocation7 + $0x538] sm:$0xff]
    %v3954 = vld [vmem:[#allocation7 + $0x540] sm:$0xff]
    %v3955 = vld [vmem:[#allocation7 + $0x548] sm:$0xff]
    %v3956 = vld [vmem:[#allocation7 + $0x550] sm:$0xff]
    %v3957 = vld [vmem:[#allocation7 + $0x558] sm:$0xff]
    %v3958 = vld [vmem:[#allocation7 + $0x560] sm:$0xff]
    %v3959 = vld [vmem:[#allocation7 + $0x568] sm:$0xff]
    %v3960 = vld [vmem:[#allocation7 + $0x570] sm:$0xff]
    %v3961 = vld [vmem:[#allocation7 + $0x578] sm:$0xff]
    %v3962 = vld [vmem:[#allocation7 + $0x580] sm:$0xff]
    %v3963 = vld [vmem:[#allocation7 + $0x588] sm:$0xff]
    %v3964 = vld [vmem:[#allocation7 + $0x590] sm:$0xff]
    %v3965 = vld [vmem:[#allocation7 + $0x598] sm:$0xff]
    %v3966 = vld [vmem:[#allocation7 + $0x5a0] sm:$0xff]
    %v3967 = vld [vmem:[#allocation7 + $0x5a8] sm:$0xff]
    %v3968 = vld [vmem:[#allocation7 + $0x5b0] sm:$0xff]
    %v3969 = vld [vmem:[#allocation7 + $0x5b8] sm:$0xff]
    %v3970 = vld [vmem:[#allocation7 + $0x5c0] sm:$0xff]
    %v3971 = vld [vmem:[#allocation7 + $0x5c8] sm:$0xff]
    %v3972 = vld [vmem:[#allocation7 + $0x5d0] sm:$0xff]
    %v3973 = vld [vmem:[#allocation7 + $0x5d8] sm:$0xff]
    %v3974 = vld [vmem:[#allocation7 + $0x5e0] sm:$0xff]
    %v3975 = vld [vmem:[#allocation7 + $0x5e8] sm:$0xff]
    %v3976 = vld [vmem:[#allocation7 + $0x5f0] sm:$0xff]
    %v3977 = vld [vmem:[#allocation7 + $0x5f8] sm:$0xff]
    %v3978 = vld [vmem:[#allocation7 + $0x600] sm:$0xff]
    %v3979 = vld [vmem:[#allocation7 + $0x608] sm:$0xff]
    %v3980 = vld [vmem:[#allocation7 + $0x610] sm:$0xff]
    %v3981 = vld [vmem:[#allocation7 + $0x618] sm:$0xff]
    %v3982 = vld [vmem:[#allocation7 + $0x620] sm:$0xff]
    %v3983 = vld [vmem:[#allocation7 + $0x628] sm:$0xff]
    %v3984 = vld [vmem:[#allocation7 + $0x630] sm:$0xff]
    %v3985 = vld [vmem:[#allocation7 + $0x638] sm:$0xff]
    %v3986 = vld [vmem:[#allocation7 + $0x640] sm:$0xff]
    %v3987 = vld [vmem:[#allocation7 + $0x648] sm:$0xff]
    %v3988 = vld [vmem:[#allocation7 + $0x650] sm:$0xff]
    %v3989 = vld [vmem:[#allocation7 + $0x658] sm:$0xff]
    %v3990 = vld [vmem:[#allocation7 + $0x660] sm:$0xff]
    %v3991 = vld [vmem:[#allocation7 + $0x668] sm:$0xff]
    %v3992 = vld [vmem:[#allocation7 + $0x670] sm:$0xff]
    %v3993 = vld [vmem:[#allocation7 + $0x678] sm:$0xff]
    %v3994 = vld [vmem:[#allocation7 + $0x680] sm:$0xff]
    %v3995 = vld [vmem:[#allocation7 + $0x688] sm:$0xff]
    %v3996 = vld [vmem:[#allocation7 + $0x690] sm:$0xff]
    %v3997 = vld [vmem:[#allocation7 + $0x698] sm:$0xff]
    %v3998 = vld [vmem:[#allocation7 + $0x6a0] sm:$0xff]
    %v3999 = vld [vmem:[#allocation7 + $0x6a8] sm:$0xff]
    %v4000 = vld [vmem:[#allocation7 + $0x6b0] sm:$0xff]
    %v4001 = vld [vmem:[#allocation7 + $0x6b8] sm:$0xff]
    %v4002 = vld [vmem:[#allocation7 + $0x6c0] sm:$0xff]
    %v4003 = vld [vmem:[#allocation7 + $0x6c8] sm:$0xff]
    %v4004 = vld [vmem:[#allocation7 + $0x6d0] sm:$0xff]
    %v4005 = vld [vmem:[#allocation7 + $0x6d8] sm:$0xff]
    %v4006 = vld [vmem:[#allocation7 + $0x6e0] sm:$0xff]
    %v4007 = vld [vmem:[#allocation7 + $0x6e8] sm:$0xff]
    %v4008 = vld [vmem:[#allocation7 + $0x6f0] sm:$0xff]
    %v4009 = vld [vmem:[#allocation7 + $0x6f8] sm:$0xff]
    %v4010 = vld [vmem:[#allocation7 + $0x700] sm:$0xff]
    %v4011 = vld [vmem:[#allocation7 + $0x708] sm:$0xff]
    %v4012 = vld [vmem:[#allocation7 + $0x710] sm:$0xff]
    %v4013 = vld [vmem:[#allocation7 + $0x718] sm:$0xff]
    %v4014 = vld [vmem:[#allocation7 + $0x720] sm:$0xff]
    %v4015 = vld [vmem:[#allocation7 + $0x728] sm:$0xff]
    %v4016 = vld [vmem:[#allocation7 + $0x730] sm:$0xff]
    %v4017 = vld [vmem:[#allocation7 + $0x738] sm:$0xff]
    %v4018 = vld [vmem:[#allocation7 + $0x740] sm:$0xff]
    %v4019 = vld [vmem:[#allocation7 + $0x748] sm:$0xff]
    %v4020 = vld [vmem:[#allocation7 + $0x750] sm:$0xff]
    %v4021 = vld [vmem:[#allocation7 + $0x758] sm:$0xff]
    %v4022 = vld [vmem:[#allocation7 + $0x760] sm:$0xff]
    %v4023 = vld [vmem:[#allocation7 + $0x768] sm:$0xff]
    %v4024 = vld [vmem:[#allocation7 + $0x770] sm:$0xff]
    %v4025 = vld [vmem:[#allocation7 + $0x778] sm:$0xff]
    %v4026 = vld [vmem:[#allocation7 + $0x780] sm:$0xff]
    %v4027 = vld [vmem:[#allocation7 + $0x788] sm:$0xff]
    %v4028 = vld [vmem:[#allocation7 + $0x790] sm:$0xff]
    %v4029 = vld [vmem:[#allocation7 + $0x798] sm:$0xff]
    %v4030 = vld [vmem:[#allocation7 + $0x7a0] sm:$0xff]
    %v4031 = vld [vmem:[#allocation7 + $0x7a8] sm:$0xff]
    %v4032 = vld [vmem:[#allocation7 + $0x7b0] sm:$0xff]
    %v4033 = vld [vmem:[#allocation7 + $0x7b8] sm:$0xff]
    %v4034 = vld [vmem:[#allocation7 + $0x7c0] sm:$0xff]
    %v4035 = vld [vmem:[#allocation7 + $0x7c8] sm:$0xff]
    %v4036 = vld [vmem:[#allocation7 + $0x7d0] sm:$0xff]
    %v4037 = vld [vmem:[#allocation7 + $0x7d8] sm:$0xff]
    %v4038 = vld [vmem:[#allocation7 + $0x7e0] sm:$0xff]
    %v4039 = vld [vmem:[#allocation7 + $0x7e8] sm:$0xff]
    %v4040 = vld [vmem:[#allocation7 + $0x7f0] sm:$0xff]
    %v4041 = vld [vmem:[#allocation7 + $0x7f8] sm:$0xff]
    %v4042 = vld [vmem:[#allocation8] sm:$0xf]
    %v4044 = vperm.slane %v4042, 0
    %v4045 = vperm.slane %v4042, 1
    %v4046 = vperm.slane %v4042, 2
    %v4047 = vperm.slane %v4042, 3
    %v4308 = vunpack.c.l.b16 %v3786
    %v4309 = vunpack.c.h.b16 %v3786
    %v4310 = vunpack.c.l.b16 %v3787
    %v4311 = vunpack.c.h.b16 %v3787
    %v4312 = vunpack.c.l.b16 %v3788
    %v4313 = vunpack.c.h.b16 %v3788
    %v4314 = vunpack.c.l.b16 %v3789
    %v4315 = vunpack.c.h.b16 %v3789
    %v4316 = vunpack.c.l.b16 %v3790
    %v4317 = vunpack.c.h.b16 %v3790
    %v4318 = vunpack.c.l.b16 %v3791
    %v4319 = vunpack.c.h.b16 %v3791
    %v4320 = vunpack.c.l.b16 %v3792
    %v4321 = vunpack.c.h.b16 %v3792
    %v4322 = vunpack.c.l.b16 %v3793
    %v4323 = vunpack.c.h.b16 %v3793
    %v4324 = vunpack.c.l.b16 %v3794
    %v4325 = vunpack.c.h.b16 %v3794
    %v4326 = vunpack.c.l.b16 %v3795
    %v4327 = vunpack.c.h.b16 %v3795
    %v4328 = vunpack.c.l.b16 %v3796
    %v4329 = vunpack.c.h.b16 %v3796
    %v4330 = vunpack.c.l.b16 %v3797
    %v4331 = vunpack.c.h.b16 %v3797
    %v4332 = vunpack.c.l.b16 %v3798
    %v4333 = vunpack.c.h.b16 %v3798
    %v4334 = vunpack.c.l.b16 %v3799
    %v4335 = vunpack.c.h.b16 %v3799
    %v4336 = vunpack.c.l.b16 %v3800
    %v4337 = vunpack.c.h.b16 %v3800
    %v4338 = vunpack.c.l.b16 %v3801
    %v4339 = vunpack.c.h.b16 %v3801
    %v4340 = vunpack.c.l.b16 %v3802
    %v4341 = vunpack.c.h.b16 %v3802
    %v4342 = vunpack.c.l.b16 %v3803
    %v4343 = vunpack.c.h.b16 %v3803
    %v4344 = vunpack.c.l.b16 %v3804
    %v4345 = vunpack.c.h.b16 %v3804
    %v4346 = vunpack.c.l.b16 %v3805
    %v4347 = vunpack.c.h.b16 %v3805
    %v4348 = vunpack.c.l.b16 %v3806
    %v4349 = vunpack.c.h.b16 %v3806
    %v4350 = vunpack.c.l.b16 %v3807
    %v4351 = vunpack.c.h.b16 %v3807
    %v4352 = vunpack.c.l.b16 %v3808
    %v4353 = vunpack.c.h.b16 %v3808
    %v4354 = vunpack.c.l.b16 %v3809
    %v4355 = vunpack.c.h.b16 %v3809
    %v4356 = vunpack.c.l.b16 %v3810
    %v4357 = vunpack.c.h.b16 %v3810
    %v4358 = vunpack.c.l.b16 %v3811
    %v4359 = vunpack.c.h.b16 %v3811
    %v4360 = vunpack.c.l.b16 %v3812
    %v4361 = vunpack.c.h.b16 %v3812
    %v4362 = vunpack.c.l.b16 %v3813
    %v4363 = vunpack.c.h.b16 %v3813
    %v4364 = vunpack.c.l.b16 %v3814
    %v4365 = vunpack.c.h.b16 %v3814
    %v4366 = vunpack.c.l.b16 %v3815
    %v4367 = vunpack.c.h.b16 %v3815
    %v4368 = vunpack.c.l.b16 %v3816
    %v4369 = vunpack.c.h.b16 %v3816
    %v4370 = vunpack.c.l.b16 %v3817
    %v4371 = vunpack.c.h.b16 %v3817
    %v4372 = vunpack.c.l.b16 %v3818
    %v4373 = vunpack.c.h.b16 %v3818
    %v4374 = vunpack.c.l.b16 %v3819
    %v4375 = vunpack.c.h.b16 %v3819
    %v4376 = vunpack.c.l.b16 %v3820
    %v4377 = vunpack.c.h.b16 %v3820
    %v4378 = vunpack.c.l.b16 %v3821
    %v4379 = vunpack.c.h.b16 %v3821
    %v4380 = vunpack.c.l.b16 %v3822
    %v4381 = vunpack.c.h.b16 %v3822
    %v4382 = vunpack.c.l.b16 %v3823
    %v4383 = vunpack.c.h.b16 %v3823
    %v4384 = vunpack.c.l.b16 %v3824
    %v4385 = vunpack.c.h.b16 %v3824
    %v4386 = vunpack.c.l.b16 %v3825
    %v4387 = vunpack.c.h.b16 %v3825
    %v4388 = vunpack.c.l.b16 %v3826
    %v4389 = vunpack.c.h.b16 %v3826
    %v4390 = vunpack.c.l.b16 %v3827
    %v4391 = vunpack.c.h.b16 %v3827
    %v4392 = vunpack.c.l.b16 %v3828
    %v4393 = vunpack.c.h.b16 %v3828
    %v4394 = vunpack.c.l.b16 %v3829
    %v4395 = vunpack.c.h.b16 %v3829
    %v4396 = vunpack.c.l.b16 %v3830
    %v4397 = vunpack.c.h.b16 %v3830
    %v4398 = vunpack.c.l.b16 %v3831
    %v4399 = vunpack.c.h.b16 %v3831
    %v4400 = vunpack.c.l.b16 %v3832
    %v4401 = vunpack.c.h.b16 %v3832
    %v4402 = vunpack.c.l.b16 %v3833
    %v4403 = vunpack.c.h.b16 %v3833
    %v4404 = vunpack.c.l.b16 %v3834
    %v4405 = vunpack.c.h.b16 %v3834
    %v4406 = vunpack.c.l.b16 %v3835
    %v4407 = vunpack.c.h.b16 %v3835
    %v4408 = vunpack.c.l.b16 %v3836
    %v4409 = vunpack.c.h.b16 %v3836
    %v4410 = vunpack.c.l.b16 %v3837
    %v4411 = vunpack.c.h.b16 %v3837
    %v4412 = vunpack.c.l.b16 %v3838
    %v4413 = vunpack.c.h.b16 %v3838
    %v4414 = vunpack.c.l.b16 %v3839
    %v4415 = vunpack.c.h.b16 %v3839
    %v4416 = vunpack.c.l.b16 %v3840
    %v4417 = vunpack.c.h.b16 %v3840
    %v4418 = vunpack.c.l.b16 %v3841
    %v4419 = vunpack.c.h.b16 %v3841
    %v4420 = vunpack.c.l.b16 %v3842
    %v4421 = vunpack.c.h.b16 %v3842
    %v4422 = vunpack.c.l.b16 %v3843
    %v4423 = vunpack.c.h.b16 %v3843
    %v4424 = vunpack.c.l.b16 %v3844
    %v4425 = vunpack.c.h.b16 %v3844
    %v4426 = vunpack.c.l.b16 %v3845
    %v4427 = vunpack.c.h.b16 %v3845
    %v4428 = vunpack.c.l.b16 %v3846
    %v4429 = vunpack.c.h.b16 %v3846
    %v4430 = vunpack.c.l.b16 %v3847
    %v4431 = vunpack.c.h.b16 %v3847
    %v4432 = vunpack.c.l.b16 %v3848
    %v4433 = vunpack.c.h.b16 %v3848
    %v4434 = vunpack.c.l.b16 %v3849
    %v4435 = vunpack.c.h.b16 %v3849
    %v4436 = vunpack.c.l.b16 %v3850
    %v4437 = vunpack.c.h.b16 %v3850
    %v4438 = vunpack.c.l.b16 %v3851
    %v4439 = vunpack.c.h.b16 %v3851
    %v4440 = vunpack.c.l.b16 %v3852
    %v4441 = vunpack.c.h.b16 %v3852
    %v4442 = vunpack.c.l.b16 %v3853
    %v4443 = vunpack.c.h.b16 %v3853
    %v4444 = vunpack.c.l.b16 %v3854
    %v4445 = vunpack.c.h.b16 %v3854
    %v4446 = vunpack.c.l.b16 %v3855
    %v4447 = vunpack.c.h.b16 %v3855
    %v4448 = vunpack.c.l.b16 %v3856
    %v4449 = vunpack.c.h.b16 %v3856
    %v4450 = vunpack.c.l.b16 %v3857
    %v4451 = vunpack.c.h.b16 %v3857
    %v4452 = vunpack.c.l.b16 %v3858
    %v4453 = vunpack.c.h.b16 %v3858
    %v4454 = vunpack.c.l.b16 %v3859
    %v4455 = vunpack.c.h.b16 %v3859
    %v4456 = vunpack.c.l.b16 %v3860
    %v4457 = vunpack.c.h.b16 %v3860
    %v4458 = vunpack.c.l.b16 %v3861
    %v4459 = vunpack.c.h.b16 %v3861
    %v4460 = vunpack.c.l.b16 %v3862
    %v4461 = vunpack.c.h.b16 %v3862
    %v4462 = vunpack.c.l.b16 %v3863
    %v4463 = vunpack.c.h.b16 %v3863
    %v4464 = vunpack.c.l.b16 %v3864
    %v4465 = vunpack.c.h.b16 %v3864
    %v4466 = vunpack.c.l.b16 %v3865
    %v4467 = vunpack.c.h.b16 %v3865
    %v4468 = vunpack.c.l.b16 %v3866
    %v4469 = vunpack.c.h.b16 %v3866
    %v4470 = vunpack.c.l.b16 %v3867
    %v4471 = vunpack.c.h.b16 %v3867
    %v4472 = vunpack.c.l.b16 %v3868
    %v4473 = vunpack.c.h.b16 %v3868
    %v4474 = vunpack.c.l.b16 %v3869
    %v4475 = vunpack.c.h.b16 %v3869
    %v4476 = vunpack.c.l.b16 %v3870
    %v4477 = vunpack.c.h.b16 %v3870
    %v4478 = vunpack.c.l.b16 %v3871
    %v4479 = vunpack.c.h.b16 %v3871
    %v4480 = vunpack.c.l.b16 %v3872
    %v4481 = vunpack.c.h.b16 %v3872
    %v4482 = vunpack.c.l.b16 %v3873
    %v4483 = vunpack.c.h.b16 %v3873
    %v4484 = vunpack.c.l.b16 %v3874
    %v4485 = vunpack.c.h.b16 %v3874
    %v4486 = vunpack.c.l.b16 %v3875
    %v4487 = vunpack.c.h.b16 %v3875
    %v4488 = vunpack.c.l.b16 %v3876
    %v4489 = vunpack.c.h.b16 %v3876
    %v4490 = vunpack.c.l.b16 %v3877
    %v4491 = vunpack.c.h.b16 %v3877
    %v4492 = vunpack.c.l.b16 %v3878
    %v4493 = vunpack.c.h.b16 %v3878
    %v4494 = vunpack.c.l.b16 %v3879
    %v4495 = vunpack.c.h.b16 %v3879
    %v4496 = vunpack.c.l.b16 %v3880
    %v4497 = vunpack.c.h.b16 %v3880
    %v4498 = vunpack.c.l.b16 %v3881
    %v4499 = vunpack.c.h.b16 %v3881
    %v4500 = vunpack.c.l.b16 %v3882
    %v4501 = vunpack.c.h.b16 %v3882
    %v4502 = vunpack.c.l.b16 %v3883
    %v4503 = vunpack.c.h.b16 %v3883
    %v4504 = vunpack.c.l.b16 %v3884
    %v4505 = vunpack.c.h.b16 %v3884
    %v4506 = vunpack.c.l.b16 %v3885
    %v4507 = vunpack.c.h.b16 %v3885
    %v4508 = vunpack.c.l.b16 %v3886
    %v4509 = vunpack.c.h.b16 %v3886
    %v4510 = vunpack.c.l.b16 %v3887
    %v4511 = vunpack.c.h.b16 %v3887
    %v4512 = vunpack.c.l.b16 %v3888
    %v4513 = vunpack.c.h.b16 %v3888
    %v4514 = vunpack.c.l.b16 %v3889
    %v4515 = vunpack.c.h.b16 %v3889
    %v4516 = vunpack.c.l.b16 %v3890
    %v4517 = vunpack.c.h.b16 %v3890
    %v4518 = vunpack.c.l.b16 %v3891
    %v4519 = vunpack.c.h.b16 %v3891
    %v4520 = vunpack.c.l.b16 %v3892
    %v4521 = vunpack.c.h.b16 %v3892
    %v4522 = vunpack.c.l.b16 %v3893
    %v4523 = vunpack.c.h.b16 %v3893
    %v4524 = vunpack.c.l.b16 %v3894
    %v4525 = vunpack.c.h.b16 %v3894
    %v4526 = vunpack.c.l.b16 %v3895
    %v4527 = vunpack.c.h.b16 %v3895
    %v4528 = vunpack.c.l.b16 %v3896
    %v4529 = vunpack.c.h.b16 %v3896
    %v4530 = vunpack.c.l.b16 %v3897
    %v4531 = vunpack.c.h.b16 %v3897
    %v4532 = vunpack.c.l.b16 %v3898
    %v4533 = vunpack.c.h.b16 %v3898
    %v4534 = vunpack.c.l.b16 %v3899
    %v4535 = vunpack.c.h.b16 %v3899
    %v4536 = vunpack.c.l.b16 %v3900
    %v4537 = vunpack.c.h.b16 %v3900
    %v4538 = vunpack.c.l.b16 %v3901
    %v4539 = vunpack.c.h.b16 %v3901
    %v4540 = vunpack.c.l.b16 %v3902
    %v4541 = vunpack.c.h.b16 %v3902
    %v4542 = vunpack.c.l.b16 %v3903
    %v4543 = vunpack.c.h.b16 %v3903
    %v4544 = vunpack.c.l.b16 %v3904
    %v4545 = vunpack.c.h.b16 %v3904
    %v4546 = vunpack.c.l.b16 %v3905
    %v4547 = vunpack.c.h.b16 %v3905
    %v4548 = vunpack.c.l.b16 %v3906
    %v4549 = vunpack.c.h.b16 %v3906
    %v4550 = vunpack.c.l.b16 %v3907
    %v4551 = vunpack.c.h.b16 %v3907
    %v4552 = vunpack.c.l.b16 %v3908
    %v4553 = vunpack.c.h.b16 %v3908
    %v4554 = vunpack.c.l.b16 %v3909
    %v4555 = vunpack.c.h.b16 %v3909
    %v4556 = vunpack.c.l.b16 %v3910
    %v4557 = vunpack.c.h.b16 %v3910
    %v4558 = vunpack.c.l.b16 %v3911
    %v4559 = vunpack.c.h.b16 %v3911
    %v4560 = vunpack.c.l.b16 %v3912
    %v4561 = vunpack.c.h.b16 %v3912
    %v4562 = vunpack.c.l.b16 %v3913
    %v4563 = vunpack.c.h.b16 %v3913
    %v4564 = vunpack.c.l.b16 %v3914
    %v4565 = vunpack.c.h.b16 %v3914
    %v4566 = vunpack.c.l.b16 %v3915
    %v4567 = vunpack.c.h.b16 %v3915
    %v4568 = vunpack.c.l.b16 %v3916
    %v4569 = vunpack.c.h.b16 %v3916
    %v4570 = vunpack.c.l.b16 %v3917
    %v4571 = vunpack.c.h.b16 %v3917
    %v4572 = vunpack.c.l.b16 %v3918
    %v4573 = vunpack.c.h.b16 %v3918
    %v4574 = vunpack.c.l.b16 %v3919
    %v4575 = vunpack.c.h.b16 %v3919
    %v4576 = vunpack.c.l.b16 %v3920
    %v4577 = vunpack.c.h.b16 %v3920
    %v4578 = vunpack.c.l.b16 %v3921
    %v4579 = vunpack.c.h.b16 %v3921
    %v4580 = vunpack.c.l.b16 %v3922
    %v4581 = vunpack.c.h.b16 %v3922
    %v4582 = vunpack.c.l.b16 %v3923
    %v4583 = vunpack.c.h.b16 %v3923
    %v4584 = vunpack.c.l.b16 %v3924
    %v4585 = vunpack.c.h.b16 %v3924
    %v4586 = vunpack.c.l.b16 %v3925
    %v4587 = vunpack.c.h.b16 %v3925
    %v4588 = vunpack.c.l.b16 %v3926
    %v4589 = vunpack.c.h.b16 %v3926
    %v4590 = vunpack.c.l.b16 %v3927
    %v4591 = vunpack.c.h.b16 %v3927
    %v4592 = vunpack.c.l.b16 %v3928
    %v4593 = vunpack.c.h.b16 %v3928
    %v4594 = vunpack.c.l.b16 %v3929
    %v4595 = vunpack.c.h.b16 %v3929
    %v4596 = vunpack.c.l.b16 %v3930
    %v4597 = vunpack.c.h.b16 %v3930
    %v4598 = vunpack.c.l.b16 %v3931
    %v4599 = vunpack.c.h.b16 %v3931
    %v4600 = vunpack.c.l.b16 %v3932
    %v4601 = vunpack.c.h.b16 %v3932
    %v4602 = vunpack.c.l.b16 %v3933
    %v4603 = vunpack.c.h.b16 %v3933
    %v4604 = vunpack.c.l.b16 %v3934
    %v4605 = vunpack.c.h.b16 %v3934
    %v4606 = vunpack.c.l.b16 %v3935
    %v4607 = vunpack.c.h.b16 %v3935
    %v4608 = vunpack.c.l.b16 %v3936
    %v4609 = vunpack.c.h.b16 %v3936
    %v4610 = vunpack.c.l.b16 %v3937
    %v4611 = vunpack.c.h.b16 %v3937
    %v4612 = vunpack.c.l.b16 %v3938
    %v4613 = vunpack.c.h.b16 %v3938
    %v4614 = vunpack.c.l.b16 %v3939
    %v4615 = vunpack.c.h.b16 %v3939
    %v4616 = vunpack.c.l.b16 %v3940
    %v4617 = vunpack.c.h.b16 %v3940
    %v4618 = vunpack.c.l.b16 %v3941
    %v4619 = vunpack.c.h.b16 %v3941
    %v4620 = vunpack.c.l.b16 %v3942
    %v4621 = vunpack.c.h.b16 %v3942
    %v4622 = vunpack.c.l.b16 %v3943
    %v4623 = vunpack.c.h.b16 %v3943
    %v4624 = vunpack.c.l.b16 %v3944
    %v4625 = vunpack.c.h.b16 %v3944
    %v4626 = vunpack.c.l.b16 %v3945
    %v4627 = vunpack.c.h.b16 %v3945
    %v4628 = vunpack.c.l.b16 %v3946
    %v4629 = vunpack.c.h.b16 %v3946
    %v4630 = vunpack.c.l.b16 %v3947
    %v4631 = vunpack.c.h.b16 %v3947
    %v4632 = vunpack.c.l.b16 %v3948
    %v4633 = vunpack.c.h.b16 %v3948
    %v4634 = vunpack.c.l.b16 %v3949
    %v4635 = vunpack.c.h.b16 %v3949
    %v4636 = vunpack.c.l.b16 %v3950
    %v4637 = vunpack.c.h.b16 %v3950
    %v4638 = vunpack.c.l.b16 %v3951
    %v4639 = vunpack.c.h.b16 %v3951
    %v4640 = vunpack.c.l.b16 %v3952
    %v4641 = vunpack.c.h.b16 %v3952
    %v4642 = vunpack.c.l.b16 %v3953
    %v4643 = vunpack.c.h.b16 %v3953
    %v4644 = vunpack.c.l.b16 %v3954
    %v4645 = vunpack.c.h.b16 %v3954
    %v4646 = vunpack.c.l.b16 %v3955
    %v4647 = vunpack.c.h.b16 %v3955
    %v4648 = vunpack.c.l.b16 %v3956
    %v4649 = vunpack.c.h.b16 %v3956
    %v4650 = vunpack.c.l.b16 %v3957
    %v4651 = vunpack.c.h.b16 %v3957
    %v4652 = vunpack.c.l.b16 %v3958
    %v4653 = vunpack.c.h.b16 %v3958
    %v4654 = vunpack.c.l.b16 %v3959
    %v4655 = vunpack.c.h.b16 %v3959
    %v4656 = vunpack.c.l.b16 %v3960
    %v4657 = vunpack.c.h.b16 %v3960
    %v4658 = vunpack.c.l.b16 %v3961
    %v4659 = vunpack.c.h.b16 %v3961
    %v4660 = vunpack.c.l.b16 %v3962
    %v4661 = vunpack.c.h.b16 %v3962
    %v4662 = vunpack.c.l.b16 %v3963
    %v4663 = vunpack.c.h.b16 %v3963
    %v4664 = vunpack.c.l.b16 %v3964
    %v4665 = vunpack.c.h.b16 %v3964
    %v4666 = vunpack.c.l.b16 %v3965
    %v4667 = vunpack.c.h.b16 %v3965
    %v4668 = vunpack.c.l.b16 %v3966
    %v4669 = vunpack.c.h.b16 %v3966
    %v4670 = vunpack.c.l.b16 %v3967
    %v4671 = vunpack.c.h.b16 %v3967
    %v4672 = vunpack.c.l.b16 %v3968
    %v4673 = vunpack.c.h.b16 %v3968
    %v4674 = vunpack.c.l.b16 %v3969
    %v4675 = vunpack.c.h.b16 %v3969
    %v4676 = vunpack.c.l.b16 %v3970
    %v4677 = vunpack.c.h.b16 %v3970
    %v4678 = vunpack.c.l.b16 %v3971
    %v4679 = vunpack.c.h.b16 %v3971
    %v4680 = vunpack.c.l.b16 %v3972
    %v4681 = vunpack.c.h.b16 %v3972
    %v4682 = vunpack.c.l.b16 %v3973
    %v4683 = vunpack.c.h.b16 %v3973
    %v4684 = vunpack.c.l.b16 %v3974
    %v4685 = vunpack.c.h.b16 %v3974
    %v4686 = vunpack.c.l.b16 %v3975
    %v4687 = vunpack.c.h.b16 %v3975
    %v4688 = vunpack.c.l.b16 %v3976
    %v4689 = vunpack.c.h.b16 %v3976
    %v4690 = vunpack.c.l.b16 %v3977
    %v4691 = vunpack.c.h.b16 %v3977
    %v4692 = vunpack.c.l.b16 %v3978
    %v4693 = vunpack.c.h.b16 %v3978
    %v4694 = vunpack.c.l.b16 %v3979
    %v4695 = vunpack.c.h.b16 %v3979
    %v4696 = vunpack.c.l.b16 %v3980
    %v4697 = vunpack.c.h.b16 %v3980
    %v4698 = vunpack.c.l.b16 %v3981
    %v4699 = vunpack.c.h.b16 %v3981
    %v4700 = vunpack.c.l.b16 %v3982
    %v4701 = vunpack.c.h.b16 %v3982
    %v4702 = vunpack.c.l.b16 %v3983
    %v4703 = vunpack.c.h.b16 %v3983
    %v4704 = vunpack.c.l.b16 %v3984
    %v4705 = vunpack.c.h.b16 %v3984
    %v4706 = vunpack.c.l.b16 %v3985
    %v4707 = vunpack.c.h.b16 %v3985
    %v4708 = vunpack.c.l.b16 %v3986
    %v4709 = vunpack.c.h.b16 %v3986
    %v4710 = vunpack.c.l.b16 %v3987
    %v4711 = vunpack.c.h.b16 %v3987
    %v4712 = vunpack.c.l.b16 %v3988
    %v4713 = vunpack.c.h.b16 %v3988
    %v4714 = vunpack.c.l.b16 %v3989
    %v4715 = vunpack.c.h.b16 %v3989
    %v4716 = vunpack.c.l.b16 %v3990
    %v4717 = vunpack.c.h.b16 %v3990
    %v4718 = vunpack.c.l.b16 %v3991
    %v4719 = vunpack.c.h.b16 %v3991
    %v4720 = vunpack.c.l.b16 %v3992
    %v4721 = vunpack.c.h.b16 %v3992
    %v4722 = vunpack.c.l.b16 %v3993
    %v4723 = vunpack.c.h.b16 %v3993
    %v4724 = vunpack.c.l.b16 %v3994
    %v4725 = vunpack.c.h.b16 %v3994
    %v4726 = vunpack.c.l.b16 %v3995
    %v4727 = vunpack.c.h.b16 %v3995
    %v4728 = vunpack.c.l.b16 %v3996
    %v4729 = vunpack.c.h.b16 %v3996
    %v4730 = vunpack.c.l.b16 %v3997
    %v4731 = vunpack.c.h.b16 %v3997
    %v4732 = vunpack.c.l.b16 %v3998
    %v4733 = vunpack.c.h.b16 %v3998
    %v4734 = vunpack.c.l.b16 %v3999
    %v4735 = vunpack.c.h.b16 %v3999
    %v4736 = vunpack.c.l.b16 %v4000
    %v4737 = vunpack.c.h.b16 %v4000
    %v4738 = vunpack.c.l.b16 %v4001
    %v4739 = vunpack.c.h.b16 %v4001
    %v4740 = vunpack.c.l.b16 %v4002
    %v4741 = vunpack.c.h.b16 %v4002
    %v4742 = vunpack.c.l.b16 %v4003
    %v4743 = vunpack.c.h.b16 %v4003
    %v4744 = vunpack.c.l.b16 %v4004
    %v4745 = vunpack.c.h.b16 %v4004
    %v4746 = vunpack.c.l.b16 %v4005
    %v4747 = vunpack.c.h.b16 %v4005
    %v4748 = vunpack.c.l.b16 %v4006
    %v4749 = vunpack.c.h.b16 %v4006
    %v4750 = vunpack.c.l.b16 %v4007
    %v4751 = vunpack.c.h.b16 %v4007
    %v4752 = vunpack.c.l.b16 %v4008
    %v4753 = vunpack.c.h.b16 %v4008
    %v4754 = vunpack.c.l.b16 %v4009
    %v4755 = vunpack.c.h.b16 %v4009
    %v4756 = vunpack.c.l.b16 %v4010
    %v4757 = vunpack.c.h.b16 %v4010
    %v4758 = vunpack.c.l.b16 %v4011
    %v4759 = vunpack.c.h.b16 %v4011
    %v4760 = vunpack.c.l.b16 %v4012
    %v4761 = vunpack.c.h.b16 %v4012
    %v4762 = vunpack.c.l.b16 %v4013
    %v4763 = vunpack.c.h.b16 %v4013
    %v4764 = vunpack.c.l.b16 %v4014
    %v4765 = vunpack.c.h.b16 %v4014
    %v4766 = vunpack.c.l.b16 %v4015
    %v4767 = vunpack.c.h.b16 %v4015
    %v4768 = vunpack.c.l.b16 %v4016
    %v4769 = vunpack.c.h.b16 %v4016
    %v4770 = vunpack.c.l.b16 %v4017
    %v4771 = vunpack.c.h.b16 %v4017
    %v4772 = vunpack.c.l.b16 %v4018
    %v4773 = vunpack.c.h.b16 %v4018
    %v4774 = vunpack.c.l.b16 %v4019
    %v4775 = vunpack.c.h.b16 %v4019
    %v4776 = vunpack.c.l.b16 %v4020
    %v4777 = vunpack.c.h.b16 %v4020
    %v4778 = vunpack.c.l.b16 %v4021
    %v4779 = vunpack.c.h.b16 %v4021
    %v4780 = vunpack.c.l.b16 %v4022
    %v4781 = vunpack.c.h.b16 %v4022
    %v4782 = vunpack.c.l.b16 %v4023
    %v4783 = vunpack.c.h.b16 %v4023
    %v4784 = vunpack.c.l.b16 %v4024
    %v4785 = vunpack.c.h.b16 %v4024
    %v4786 = vunpack.c.l.b16 %v4025
    %v4787 = vunpack.c.h.b16 %v4025
    %v4788 = vunpack.c.l.b16 %v4026
    %v4789 = vunpack.c.h.b16 %v4026
    %v4790 = vunpack.c.l.b16 %v4027
    %v4791 = vunpack.c.h.b16 %v4027
    %v4792 = vunpack.c.l.b16 %v4028
    %v4793 = vunpack.c.h.b16 %v4028
    %v4794 = vunpack.c.l.b16 %v4029
    %v4795 = vunpack.c.h.b16 %v4029
    %v4796 = vunpack.c.l.b16 %v4030
    %v4797 = vunpack.c.h.b16 %v4030
    %v4798 = vunpack.c.l.b16 %v4031
    %v4799 = vunpack.c.h.b16 %v4031
    %v4800 = vunpack.c.l.b16 %v4032
    %v4801 = vunpack.c.h.b16 %v4032
    %v4802 = vunpack.c.l.b16 %v4033
    %v4803 = vunpack.c.h.b16 %v4033
    %v4804 = vunpack.c.l.b16 %v4034
    %v4805 = vunpack.c.h.b16 %v4034
    %v4806 = vunpack.c.l.b16 %v4035
    %v4807 = vunpack.c.h.b16 %v4035
    %v4808 = vunpack.c.l.b16 %v4036
    %v4809 = vunpack.c.h.b16 %v4036
    %v4810 = vunpack.c.l.b16 %v4037
    %v4811 = vunpack.c.h.b16 %v4037
    %v4812 = vunpack.c.l.b16 %v4038
    %v4813 = vunpack.c.h.b16 %v4038
    %v4814 = vunpack.c.l.b16 %v4039
    %v4815 = vunpack.c.h.b16 %v4039
    %v4816 = vunpack.c.l.b16 %v4040
    %v4817 = vunpack.c.h.b16 %v4040
    %v4818 = vunpack.c.l.b16 %v4041
    %v4819 = vunpack.c.h.b16 %v4041
    %v4820 = vpack.c.b16 %v4312, %v4308
    %v4821 = vpack.c.b16 %v4313, %v4309
    %v4822 = vpack.c.b16 %v4314, %v4310
    %v4823 = vpack.c.b16 %v4315, %v4311
    %v4824 = vpack.c.b16 %v4320, %v4316
    %v4825 = vpack.c.b16 %v4321, %v4317
    %v4826 = vpack.c.b16 %v4322, %v4318
    %v4827 = vpack.c.b16 %v4323, %v4319
    %v4828 = vpack.c.b16 %v4328, %v4324
    %v4829 = vpack.c.b16 %v4329, %v4325
    %v4830 = vpack.c.b16 %v4330, %v4326
    %v4831 = vpack.c.b16 %v4331, %v4327
    %v4832 = vpack.c.b16 %v4336, %v4332
    %v4833 = vpack.c.b16 %v4337, %v4333
    %v4834 = vpack.c.b16 %v4338, %v4334
    %v4835 = vpack.c.b16 %v4339, %v4335
    %v4836 = vpack.c.b16 %v4344, %v4340
    %v4837 = vpack.c.b16 %v4345, %v4341
    %v4838 = vpack.c.b16 %v4346, %v4342
    %v4839 = vpack.c.b16 %v4347, %v4343
    %v4840 = vpack.c.b16 %v4352, %v4348
    %v4841 = vpack.c.b16 %v4353, %v4349
    %v4842 = vpack.c.b16 %v4354, %v4350
    %v4843 = vpack.c.b16 %v4355, %v4351
    %v4844 = vpack.c.b16 %v4360, %v4356
    %v4845 = vpack.c.b16 %v4361, %v4357
    %v4846 = vpack.c.b16 %v4362, %v4358
    %v4847 = vpack.c.b16 %v4363, %v4359
    %v4848 = vpack.c.b16 %v4368, %v4364
    %v4849 = vpack.c.b16 %v4369, %v4365
    %v4850 = vpack.c.b16 %v4370, %v4366
    %v4851 = vpack.c.b16 %v4371, %v4367
    %v4852 = vpack.c.b16 %v4376, %v4372
    %v4853 = vpack.c.b16 %v4377, %v4373
    %v4854 = vpack.c.b16 %v4378, %v4374
    %v4855 = vpack.c.b16 %v4379, %v4375
    %v4856 = vpack.c.b16 %v4384, %v4380
    %v4857 = vpack.c.b16 %v4385, %v4381
    %v4858 = vpack.c.b16 %v4386, %v4382
    %v4859 = vpack.c.b16 %v4387, %v4383
    %v4860 = vpack.c.b16 %v4392, %v4388
    %v4861 = vpack.c.b16 %v4393, %v4389
    %v4862 = vpack.c.b16 %v4394, %v4390
    %v4863 = vpack.c.b16 %v4395, %v4391
    %v4864 = vpack.c.b16 %v4400, %v4396
    %v4865 = vpack.c.b16 %v4401, %v4397
    %v4866 = vpack.c.b16 %v4402, %v4398
    %v4867 = vpack.c.b16 %v4403, %v4399
    %v4868 = vpack.c.b16 %v4408, %v4404
    %v4869 = vpack.c.b16 %v4409, %v4405
    %v4870 = vpack.c.b16 %v4410, %v4406
    %v4871 = vpack.c.b16 %v4411, %v4407
    %v4872 = vpack.c.b16 %v4416, %v4412
    %v4873 = vpack.c.b16 %v4417, %v4413
    %v4874 = vpack.c.b16 %v4418, %v4414
    %v4875 = vpack.c.b16 %v4419, %v4415
    %v4876 = vpack.c.b16 %v4424, %v4420
    %v4877 = vpack.c.b16 %v4425, %v4421
    %v4878 = vpack.c.b16 %v4426, %v4422
    %v4879 = vpack.c.b16 %v4427, %v4423
    %v4880 = vpack.c.b16 %v4432, %v4428
    %v4881 = vpack.c.b16 %v4433, %v4429
    %v4882 = vpack.c.b16 %v4434, %v4430
    %v4883 = vpack.c.b16 %v4435, %v4431
    %v4884 = vpack.c.b16 %v4440, %v4436
    %v4885 = vpack.c.b16 %v4441, %v4437
    %v4886 = vpack.c.b16 %v4442, %v4438
    %v4887 = vpack.c.b16 %v4443, %v4439
    %v4888 = vpack.c.b16 %v4448, %v4444
    %v4889 = vpack.c.b16 %v4449, %v4445
    %v4890 = vpack.c.b16 %v4450, %v4446
    %v4891 = vpack.c.b16 %v4451, %v4447
    %v4892 = vpack.c.b16 %v4456, %v4452
    %v4893 = vpack.c.b16 %v4457, %v4453
    %v4894 = vpack.c.b16 %v4458, %v4454
    %v4895 = vpack.c.b16 %v4459, %v4455
    %v4896 = vpack.c.b16 %v4464, %v4460
    %v4897 = vpack.c.b16 %v4465, %v4461
    %v4898 = vpack.c.b16 %v4466, %v4462
    %v4899 = vpack.c.b16 %v4467, %v4463
    %v4900 = vpack.c.b16 %v4472, %v4468
    %v4901 = vpack.c.b16 %v4473, %v4469
    %v4902 = vpack.c.b16 %v4474, %v4470
    %v4903 = vpack.c.b16 %v4475, %v4471
    %v4904 = vpack.c.b16 %v4480, %v4476
    %v4905 = vpack.c.b16 %v4481, %v4477
    %v4906 = vpack.c.b16 %v4482, %v4478
    %v4907 = vpack.c.b16 %v4483, %v4479
    %v4908 = vpack.c.b16 %v4488, %v4484
    %v4909 = vpack.c.b16 %v4489, %v4485
    %v4910 = vpack.c.b16 %v4490, %v4486
    %v4911 = vpack.c.b16 %v4491, %v4487
    %v4912 = vpack.c.b16 %v4496, %v4492
    %v4913 = vpack.c.b16 %v4497, %v4493
    %v4914 = vpack.c.b16 %v4498, %v4494
    %v4915 = vpack.c.b16 %v4499, %v4495
    %v4916 = vpack.c.b16 %v4504, %v4500
    %v4917 = vpack.c.b16 %v4505, %v4501
    %v4918 = vpack.c.b16 %v4506, %v4502
    %v4919 = vpack.c.b16 %v4507, %v4503
    %v4920 = vpack.c.b16 %v4512, %v4508
    %v4921 = vpack.c.b16 %v4513, %v4509
    %v4922 = vpack.c.b16 %v4514, %v4510
    %v4923 = vpack.c.b16 %v4515, %v4511
    %v4924 = vpack.c.b16 %v4520, %v4516
    %v4925 = vpack.c.b16 %v4521, %v4517
    %v4926 = vpack.c.b16 %v4522, %v4518
    %v4927 = vpack.c.b16 %v4523, %v4519
    %v4928 = vpack.c.b16 %v4528, %v4524
    %v4929 = vpack.c.b16 %v4529, %v4525
    %v4930 = vpack.c.b16 %v4530, %v4526
    %v4931 = vpack.c.b16 %v4531, %v4527
    %v4932 = vpack.c.b16 %v4536, %v4532
    %v4933 = vpack.c.b16 %v4537, %v4533
    %v4934 = vpack.c.b16 %v4538, %v4534
    %v4935 = vpack.c.b16 %v4539, %v4535
    %v4936 = vpack.c.b16 %v4544, %v4540
    %v4937 = vpack.c.b16 %v4545, %v4541
    %v4938 = vpack.c.b16 %v4546, %v4542
    %v4939 = vpack.c.b16 %v4547, %v4543
    %v4940 = vpack.c.b16 %v4552, %v4548
    %v4941 = vpack.c.b16 %v4553, %v4549
    %v4942 = vpack.c.b16 %v4554, %v4550
    %v4943 = vpack.c.b16 %v4555, %v4551
    %v4944 = vpack.c.b16 %v4560, %v4556
    %v4945 = vpack.c.b16 %v4561, %v4557
    %v4946 = vpack.c.b16 %v4562, %v4558
    %v4947 = vpack.c.b16 %v4563, %v4559
    %v4948 = vpack.c.b16 %v4568, %v4564
    %v4949 = vpack.c.b16 %v4569, %v4565
    %v4950 = vpack.c.b16 %v4570, %v4566
    %v4951 = vpack.c.b16 %v4571, %v4567
    %v4952 = vpack.c.b16 %v4576, %v4572
    %v4953 = vpack.c.b16 %v4577, %v4573
    %v4954 = vpack.c.b16 %v4578, %v4574
    %v4955 = vpack.c.b16 %v4579, %v4575
    %v4956 = vpack.c.b16 %v4584, %v4580
    %v4957 = vpack.c.b16 %v4585, %v4581
    %v4958 = vpack.c.b16 %v4586, %v4582
    %v4959 = vpack.c.b16 %v4587, %v4583
    %v4960 = vpack.c.b16 %v4592, %v4588
    %v4961 = vpack.c.b16 %v4593, %v4589
    %v4962 = vpack.c.b16 %v4594, %v4590
    %v4963 = vpack.c.b16 %v4595, %v4591
    %v4964 = vpack.c.b16 %v4600, %v4596
    %v4965 = vpack.c.b16 %v4601, %v4597
    %v4966 = vpack.c.b16 %v4602, %v4598
    %v4967 = vpack.c.b16 %v4603, %v4599
    %v4968 = vpack.c.b16 %v4608, %v4604
    %v4969 = vpack.c.b16 %v4609, %v4605
    %v4970 = vpack.c.b16 %v4610, %v4606
    %v4971 = vpack.c.b16 %v4611, %v4607
    %v4972 = vpack.c.b16 %v4616, %v4612
    %v4973 = vpack.c.b16 %v4617, %v4613
    %v4974 = vpack.c.b16 %v4618, %v4614
    %v4975 = vpack.c.b16 %v4619, %v4615
    %v4976 = vpack.c.b16 %v4624, %v4620
    %v4977 = vpack.c.b16 %v4625, %v4621
    %v4978 = vpack.c.b16 %v4626, %v4622
    %v4979 = vpack.c.b16 %v4627, %v4623
    %v4980 = vpack.c.b16 %v4632, %v4628
    %v4981 = vpack.c.b16 %v4633, %v4629
    %v4982 = vpack.c.b16 %v4634, %v4630
    %v4983 = vpack.c.b16 %v4635, %v4631
    %v4984 = vpack.c.b16 %v4640, %v4636
    %v4985 = vpack.c.b16 %v4641, %v4637
    %v4986 = vpack.c.b16 %v4642, %v4638
    %v4987 = vpack.c.b16 %v4643, %v4639
    %v4988 = vpack.c.b16 %v4648, %v4644
    %v4989 = vpack.c.b16 %v4649, %v4645
    %v4990 = vpack.c.b16 %v4650, %v4646
    %v4991 = vpack.c.b16 %v4651, %v4647
    %v4992 = vpack.c.b16 %v4656, %v4652
    %v4993 = vpack.c.b16 %v4657, %v4653
    %v4994 = vpack.c.b16 %v4658, %v4654
    %v4995 = vpack.c.b16 %v4659, %v4655
    %v4996 = vpack.c.b16 %v4664, %v4660
    %v4997 = vpack.c.b16 %v4665, %v4661
    %v4998 = vpack.c.b16 %v4666, %v4662
    %v4999 = vpack.c.b16 %v4667, %v4663
    %v5000 = vpack.c.b16 %v4672, %v4668
    %v5001 = vpack.c.b16 %v4673, %v4669
    %v5002 = vpack.c.b16 %v4674, %v4670
    %v5003 = vpack.c.b16 %v4675, %v4671
    %v5004 = vpack.c.b16 %v4680, %v4676
    %v5005 = vpack.c.b16 %v4681, %v4677
    %v5006 = vpack.c.b16 %v4682, %v4678
    %v5007 = vpack.c.b16 %v4683, %v4679
    %v5008 = vpack.c.b16 %v4688, %v4684
    %v5009 = vpack.c.b16 %v4689, %v4685
    %v5010 = vpack.c.b16 %v4690, %v4686
    %v5011 = vpack.c.b16 %v4691, %v4687
    %v5012 = vpack.c.b16 %v4696, %v4692
    %v5013 = vpack.c.b16 %v4697, %v4693
    %v5014 = vpack.c.b16 %v4698, %v4694
    %v5015 = vpack.c.b16 %v4699, %v4695
    %v5016 = vpack.c.b16 %v4704, %v4700
    %v5017 = vpack.c.b16 %v4705, %v4701
    %v5018 = vpack.c.b16 %v4706, %v4702
    %v5019 = vpack.c.b16 %v4707, %v4703
    %v5020 = vpack.c.b16 %v4712, %v4708
    %v5021 = vpack.c.b16 %v4713, %v4709
    %v5022 = vpack.c.b16 %v4714, %v4710
    %v5023 = vpack.c.b16 %v4715, %v4711
    %v5024 = vpack.c.b16 %v4720, %v4716
    %v5025 = vpack.c.b16 %v4721, %v4717
    %v5026 = vpack.c.b16 %v4722, %v4718
    %v5027 = vpack.c.b16 %v4723, %v4719
    %v5028 = vpack.c.b16 %v4728, %v4724
    %v5029 = vpack.c.b16 %v4729, %v4725
    %v5030 = vpack.c.b16 %v4730, %v4726
    %v5031 = vpack.c.b16 %v4731, %v4727
    %v5032 = vpack.c.b16 %v4736, %v4732
    %v5033 = vpack.c.b16 %v4737, %v4733
    %v5034 = vpack.c.b16 %v4738, %v4734
    %v5035 = vpack.c.b16 %v4739, %v4735
    %v5036 = vpack.c.b16 %v4744, %v4740
    %v5037 = vpack.c.b16 %v4745, %v4741
    %v5038 = vpack.c.b16 %v4746, %v4742
    %v5039 = vpack.c.b16 %v4747, %v4743
    %v5040 = vpack.c.b16 %v4752, %v4748
    %v5041 = vpack.c.b16 %v4753, %v4749
    %v5042 = vpack.c.b16 %v4754, %v4750
    %v5043 = vpack.c.b16 %v4755, %v4751
    %v5044 = vpack.c.b16 %v4760, %v4756
    %v5045 = vpack.c.b16 %v4761, %v4757
    %v5046 = vpack.c.b16 %v4762, %v4758
    %v5047 = vpack.c.b16 %v4763, %v4759
    %v5048 = vpack.c.b16 %v4768, %v4764
    %v5049 = vpack.c.b16 %v4769, %v4765
    %v5050 = vpack.c.b16 %v4770, %v4766
    %v5051 = vpack.c.b16 %v4771, %v4767
    %v5052 = vpack.c.b16 %v4776, %v4772
    %v5053 = vpack.c.b16 %v4777, %v4773
    %v5054 = vpack.c.b16 %v4778, %v4774
    %v5055 = vpack.c.b16 %v4779, %v4775
    %v5056 = vpack.c.b16 %v4784, %v4780
    %v5057 = vpack.c.b16 %v4785, %v4781
    %v5058 = vpack.c.b16 %v4786, %v4782
    %v5059 = vpack.c.b16 %v4787, %v4783
    %v5060 = vpack.c.b16 %v4792, %v4788
    %v5061 = vpack.c.b16 %v4793, %v4789
    %v5062 = vpack.c.b16 %v4794, %v4790
    %v5063 = vpack.c.b16 %v4795, %v4791
    %v5064 = vpack.c.b16 %v4800, %v4796
    %v5065 = vpack.c.b16 %v4801, %v4797
    %v5066 = vpack.c.b16 %v4802, %v4798
    %v5067 = vpack.c.b16 %v4803, %v4799
    %v5068 = vpack.c.b16 %v4808, %v4804
    %v5069 = vpack.c.b16 %v4809, %v4805
    %v5070 = vpack.c.b16 %v4810, %v4806
    %v5071 = vpack.c.b16 %v4811, %v4807
    %v5072 = vpack.c.b16 %v4816, %v4812
    %v5073 = vpack.c.b16 %v4817, %v4813
    %v5074 = vpack.c.b16 %v4818, %v4814
    %v5075 = vpack.c.b16 %v4819, %v4815
    %5332 = vmatpush.bf16.msra.mxu0 %v4848
    %5333 = vmatpush.bf16.msra.mxu0 %v4844
    %5334 = vmatpush.bf16.msra.mxu0 %v4840
    %5335 = vmatpush.bf16.msra.mxu0 %v4836
    %5336 = vmatpush.bf16.msra.mxu0 %v4832
    %5337 = vmatpush.bf16.msra.mxu0 %v4828
    %5338 = vmatpush.bf16.msra.mxu0 %v4824
    %5339 = vmatpush.bf16.msra.mxu0 %v4820
    %5340 = vmatmul.bf16.gmra.mxu0 %v3778
    %v5341 = vpop.f32.mrf.mxu0
    %v5342 = vadd.f32 %v4044, %v5341
    %v5343 = vpop.f32.mrf.mxu0
    %5344 = vdwg.mxu0
    %5345 = vmatpush.bf16.msra.mxu0 %v4880
    %5346 = vmatpush.bf16.msra.mxu0 %v4876
    %5347 = vmatpush.bf16.msra.mxu0 %v4872
    %5348 = vmatpush.bf16.msra.mxu0 %v4868
    %5349 = vmatpush.bf16.msra.mxu0 %v4864
    %5350 = vmatpush.bf16.msra.mxu0 %v4860
    %5351 = vmatpush.bf16.msra.mxu0 %v4856
    %5352 = vmatpush.bf16.msra.mxu0 %v4852
    %5353 = vmatmul.bf16.gmra.mxu0 %v3779
    %v5354 = vpop.f32.mrf.mxu0
    %v5355 = vadd.f32 %v5342, %v5354
    %v5356 = vpop.f32.mrf.mxu0
    %5357 = vdwg.mxu0
    %5358 = vmatpush.bf16.msra.mxu0 %v4912
    %5359 = vmatpush.bf16.msra.mxu0 %v4908
    %5360 = vmatpush.bf16.msra.mxu0 %v4904
    %5361 = vmatpush.bf16.msra.mxu0 %v4900
    %5362 = vmatpush.bf16.msra.mxu0 %v4896
    %5363 = vmatpush.bf16.msra.mxu0 %v4892
    %5364 = vmatpush.bf16.msra.mxu0 %v4888
    %5365 = vmatpush.bf16.msra.mxu0 %v4884
    %5366 = vmatmul.bf16.gmra.mxu0 %v3780
    %v5367 = vpop.f32.mrf.mxu0
    %v5368 = vadd.f32 %v5355, %v5367
    %v5369 = vpop.f32.mrf.mxu0
    %5370 = vdwg.mxu0
    %5371 = vmatpush.bf16.msra.mxu0 %v4944
    %5372 = vmatpush.bf16.msra.mxu0 %v4940
    %5373 = vmatpush.bf16.msra.mxu0 %v4936
    %5374 = vmatpush.bf16.msra.mxu0 %v4932
    %5375 = vmatpush.bf16.msra.mxu0 %v4928
    %5376 = vmatpush.bf16.msra.mxu0 %v4924
    %5377 = vmatpush.bf16.msra.mxu0 %v4920
    %5378 = vmatpush.bf16.msra.mxu0 %v4916
    %5379 = vmatmul.bf16.gmra.mxu0 %v3781
    %v5380 = vpop.f32.mrf.mxu0
    %v5381 = vadd.f32 %v5368, %v5380
    %v5382 = vpop.f32.mrf.mxu0
    %5383 = vdwg.mxu0
    %5384 = vmatpush.bf16.msra.mxu0 %v4976
    %5385 = vmatpush.bf16.msra.mxu0 %v4972
    %5386 = vmatpush.bf16.msra.mxu0 %v4968
    %5387 = vmatpush.bf16.msra.mxu0 %v4964
    %5388 = vmatpush.bf16.msra.mxu0 %v4960
    %5389 = vmatpush.bf16.msra.mxu0 %v4956
    %5390 = vmatpush.bf16.msra.mxu0 %v4952
    %5391 = vmatpush.bf16.msra.mxu0 %v4948
    %5392 = vmatmul.bf16.gmra.mxu0 %v3782
    %v5393 = vpop.f32.mrf.mxu0
    %v5394 = vadd.f32 %v5381, %v5393
    %v5395 = vpop.f32.mrf.mxu0
    %5396 = vdwg.mxu0
    %5397 = vmatpush.bf16.msra.mxu0 %v5008
    %5398 = vmatpush.bf16.msra.mxu0 %v5004
    %5399 = vmatpush.bf16.msra.mxu0 %v5000
    %5400 = vmatpush.bf16.msra.mxu0 %v4996
    %5401 = vmatpush.bf16.msra.mxu0 %v4992
    %5402 = vmatpush.bf16.msra.mxu0 %v4988
    %5403 = vmatpush.bf16.msra.mxu0 %v4984
    %5404 = vmatpush.bf16.msra.mxu0 %v4980
    %5405 = vmatmul.bf16.gmra.mxu0 %v3783
    %v5406 = vpop.f32.mrf.mxu0
    %v5407 = vadd.f32 %v5394, %v5406
    %v5408 = vpop.f32.mrf.mxu0
    %5409 = vdwg.mxu0
    %5410 = vmatpush.bf16.msra.mxu0 %v5040
    %5411 = vmatpush.bf16.msra.mxu0 %v5036
    %5412 = vmatpush.bf16.msra.mxu0 %v5032
    %5413 = vmatpush.bf16.msra.mxu0 %v5028
    %5414 = vmatpush.bf16.msra.mxu0 %v5024
    %5415 = vmatpush.bf16.msra.mxu0 %v5020
    %5416 = vmatpush.bf16.msra.mxu0 %v5016
    %5417 = vmatpush.bf16.msra.mxu0 %v5012
    %5418 = vmatmul.bf16.gmra.mxu0 %v3784
    %v5419 = vpop.f32.mrf.mxu0
    %v5420 = vadd.f32 %v5407, %v5419
    %v5421 = vpop.f32.mrf.mxu0
    %5422 = vdwg.mxu0
    %5423 = vmatpush.bf16.msra.mxu0 %v5072
    %5424 = vmatpush.bf16.msra.mxu0 %v5068
    %5425 = vmatpush.bf16.msra.mxu0 %v5064
    %5426 = vmatpush.bf16.msra.mxu0 %v5060
    %5427 = vmatpush.bf16.msra.mxu0 %v5056
    %5428 = vmatpush.bf16.msra.mxu0 %v5052
    %5429 = vmatpush.bf16.msra.mxu0 %v5048
    %5430 = vmatpush.bf16.msra.mxu0 %v5044
    %5431 = vmatmul.bf16.gmra.mxu0 %v3785
    %v5432 = vpop.f32.mrf.mxu0
    %v5433 = vadd.f32 %v5420, %v5432
    %v5434 = vpop.f32.mrf.mxu0
    %5435 = vdwg.mxu0
    %5436 = vmatpush.bf16.msra.mxu0 %v4849
    %5437 = vmatpush.bf16.msra.mxu0 %v4845
    %5438 = vmatpush.bf16.msra.mxu0 %v4841
    %5439 = vmatpush.bf16.msra.mxu0 %v4837
    %5440 = vmatpush.bf16.msra.mxu0 %v4833
    %5441 = vmatpush.bf16.msra.mxu0 %v4829
    %5442 = vmatpush.bf16.msra.mxu0 %v4825
    %5443 = vmatpush.bf16.msra.mxu0 %v4821
    %5444 = vmatmul.bf16.gmra.mxu0 %v3778
    %v5445 = vpop.f32.mrf.mxu0
    %v5446 = vadd.f32 %v4045, %v5445
    %v5447 = vpop.f32.mrf.mxu0
    %5448 = vdwg.mxu0
    %5449 = vmatpush.bf16.msra.mxu0 %v4881
    %5450 = vmatpush.bf16.msra.mxu0 %v4877
    %5451 = vmatpush.bf16.msra.mxu0 %v4873
    %5452 = vmatpush.bf16.msra.mxu0 %v4869
    %5453 = vmatpush.bf16.msra.mxu0 %v4865
    %5454 = vmatpush.bf16.msra.mxu0 %v4861
    %5455 = vmatpush.bf16.msra.mxu0 %v4857
    %5456 = vmatpush.bf16.msra.mxu0 %v4853
    %5457 = vmatmul.bf16.gmra.mxu0 %v3779
    %v5458 = vpop.f32.mrf.mxu0
    %v5459 = vadd.f32 %v5446, %v5458
    %v5460 = vpop.f32.mrf.mxu0
    %5461 = vdwg.mxu0
    %5462 = vmatpush.bf16.msra.mxu0 %v4913
    %5463 = vmatpush.bf16.msra.mxu0 %v4909
    %5464 = vmatpush.bf16.msra.mxu0 %v4905
    %5465 = vmatpush.bf16.msra.mxu0 %v4901
    %5466 = vmatpush.bf16.msra.mxu0 %v4897
    %5467 = vmatpush.bf16.msra.mxu0 %v4893
    %5468 = vmatpush.bf16.msra.mxu0 %v4889
    %5469 = vmatpush.bf16.msra.mxu0 %v4885
    %5470 = vmatmul.bf16.gmra.mxu0 %v3780
    %v5471 = vpop.f32.mrf.mxu0
    %v5472 = vadd.f32 %v5459, %v5471
    %v5473 = vpop.f32.mrf.mxu0
    %5474 = vdwg.mxu0
    %5475 = vmatpush.bf16.msra.mxu0 %v4945
    %5476 = vmatpush.bf16.msra.mxu0 %v4941
    %5477 = vmatpush.bf16.msra.mxu0 %v4937
    %5478 = vmatpush.bf16.msra.mxu0 %v4933
    %5479 = vmatpush.bf16.msra.mxu0 %v4929
    %5480 = vmatpush.bf16.msra.mxu0 %v4925
    %5481 = vmatpush.bf16.msra.mxu0 %v4921
    %5482 = vmatpush.bf16.msra.mxu0 %v4917
    %5483 = vmatmul.bf16.gmra.mxu0 %v3781
    %v5484 = vpop.f32.mrf.mxu0
    %v5485 = vadd.f32 %v5472, %v5484
    %v5486 = vpop.f32.mrf.mxu0
    %5487 = vdwg.mxu0
    %5488 = vmatpush.bf16.msra.mxu0 %v4977
    %5489 = vmatpush.bf16.msra.mxu0 %v4973
    %5490 = vmatpush.bf16.msra.mxu0 %v4969
    %5491 = vmatpush.bf16.msra.mxu0 %v4965
    %5492 = vmatpush.bf16.msra.mxu0 %v4961
    %5493 = vmatpush.bf16.msra.mxu0 %v4957
    %5494 = vmatpush.bf16.msra.mxu0 %v4953
    %5495 = vmatpush.bf16.msra.mxu0 %v4949
    %5496 = vmatmul.bf16.gmra.mxu0 %v3782
    %v5497 = vpop.f32.mrf.mxu0
    %v5498 = vadd.f32 %v5485, %v5497
    %v5499 = vpop.f32.mrf.mxu0
    %5500 = vdwg.mxu0
    %5501 = vmatpush.bf16.msra.mxu0 %v5009
    %5502 = vmatpush.bf16.msra.mxu0 %v5005
    %5503 = vmatpush.bf16.msra.mxu0 %v5001
    %5504 = vmatpush.bf16.msra.mxu0 %v4997
    %5505 = vmatpush.bf16.msra.mxu0 %v4993
    %5506 = vmatpush.bf16.msra.mxu0 %v4989
    %5507 = vmatpush.bf16.msra.mxu0 %v4985
    %5508 = vmatpush.bf16.msra.mxu0 %v4981
    %5509 = vmatmul.bf16.gmra.mxu0 %v3783
    %v5510 = vpop.f32.mrf.mxu0
    %v5511 = vadd.f32 %v5498, %v5510
    %v5512 = vpop.f32.mrf.mxu0
    %5513 = vdwg.mxu0
    %5514 = vmatpush.bf16.msra.mxu0 %v5041
    %5515 = vmatpush.bf16.msra.mxu0 %v5037
    %5516 = vmatpush.bf16.msra.mxu0 %v5033
    %5517 = vmatpush.bf16.msra.mxu0 %v5029
    %5518 = vmatpush.bf16.msra.mxu0 %v5025
    %5519 = vmatpush.bf16.msra.mxu0 %v5021
    %5520 = vmatpush.bf16.msra.mxu0 %v5017
    %5521 = vmatpush.bf16.msra.mxu0 %v5013
    %5522 = vmatmul.bf16.gmra.mxu0 %v3784
    %v5523 = vpop.f32.mrf.mxu0
    %v5524 = vadd.f32 %v5511, %v5523
    %v5525 = vpop.f32.mrf.mxu0
    %5526 = vdwg.mxu0
    %5527 = vmatpush.bf16.msra.mxu0 %v5073
    %5528 = vmatpush.bf16.msra.mxu0 %v5069
    %5529 = vmatpush.bf16.msra.mxu0 %v5065
    %5530 = vmatpush.bf16.msra.mxu0 %v5061
    %5531 = vmatpush.bf16.msra.mxu0 %v5057
    %5532 = vmatpush.bf16.msra.mxu0 %v5053
    %5533 = vmatpush.bf16.msra.mxu0 %v5049
    %5534 = vmatpush.bf16.msra.mxu0 %v5045
    %5535 = vmatmul.bf16.gmra.mxu0 %v3785
    %v5536 = vpop.f32.mrf.mxu0
    %v5537 = vadd.f32 %v5524, %v5536
    %v5538 = vpop.f32.mrf.mxu0
    %5539 = vdwg.mxu0
    %5540 = vmatpush.bf16.msra.mxu0 %v4850
    %5541 = vmatpush.bf16.msra.mxu0 %v4846
    %5542 = vmatpush.bf16.msra.mxu0 %v4842
    %5543 = vmatpush.bf16.msra.mxu0 %v4838
    %5544 = vmatpush.bf16.msra.mxu0 %v4834
    %5545 = vmatpush.bf16.msra.mxu0 %v4830
    %5546 = vmatpush.bf16.msra.mxu0 %v4826
    %5547 = vmatpush.bf16.msra.mxu0 %v4822
    %5548 = vmatmul.bf16.gmra.mxu0 %v3778
    %v5549 = vpop.f32.mrf.mxu0
    %v5550 = vadd.f32 %v4046, %v5549
    %v5551 = vpop.f32.mrf.mxu0
    %5552 = vdwg.mxu0
    %5553 = vmatpush.bf16.msra.mxu0 %v4882
    %5554 = vmatpush.bf16.msra.mxu0 %v4878
    %5555 = vmatpush.bf16.msra.mxu0 %v4874
    %5556 = vmatpush.bf16.msra.mxu0 %v4870
    %5557 = vmatpush.bf16.msra.mxu0 %v4866
    %5558 = vmatpush.bf16.msra.mxu0 %v4862
    %5559 = vmatpush.bf16.msra.mxu0 %v4858
    %5560 = vmatpush.bf16.msra.mxu0 %v4854
    %5561 = vmatmul.bf16.gmra.mxu0 %v3779
    %v5562 = vpop.f32.mrf.mxu0
    %v5563 = vadd.f32 %v5550, %v5562
    %v5564 = vpop.f32.mrf.mxu0
    %5565 = vdwg.mxu0
    %5566 = vmatpush.bf16.msra.mxu0 %v4914
    %5567 = vmatpush.bf16.msra.mxu0 %v4910
    %5568 = vmatpush.bf16.msra.mxu0 %v4906
    %5569 = vmatpush.bf16.msra.mxu0 %v4902
    %5570 = vmatpush.bf16.msra.mxu0 %v4898
    %5571 = vmatpush.bf16.msra.mxu0 %v4894
    %5572 = vmatpush.bf16.msra.mxu0 %v4890
    %5573 = vmatpush.bf16.msra.mxu0 %v4886
    %5574 = vmatmul.bf16.gmra.mxu0 %v3780
    %v5575 = vpop.f32.mrf.mxu0
    %v5576 = vadd.f32 %v5563, %v5575
    %v5577 = vpop.f32.mrf.mxu0
    %5578 = vdwg.mxu0
    %5579 = vmatpush.bf16.msra.mxu0 %v4946
    %5580 = vmatpush.bf16.msra.mxu0 %v4942
    %5581 = vmatpush.bf16.msra.mxu0 %v4938
    %5582 = vmatpush.bf16.msra.mxu0 %v4934
    %5583 = vmatpush.bf16.msra.mxu0 %v4930
    %5584 = vmatpush.bf16.msra.mxu0 %v4926
    %5585 = vmatpush.bf16.msra.mxu0 %v4922
    %5586 = vmatpush.bf16.msra.mxu0 %v4918
    %5587 = vmatmul.bf16.gmra.mxu0 %v3781
    %v5588 = vpop.f32.mrf.mxu0
    %v5589 = vadd.f32 %v5576, %v5588
    %v5590 = vpop.f32.mrf.mxu0
    %5591 = vdwg.mxu0
    %5592 = vmatpush.bf16.msra.mxu0 %v4978
    %5593 = vmatpush.bf16.msra.mxu0 %v4974
    %5594 = vmatpush.bf16.msra.mxu0 %v4970
    %5595 = vmatpush.bf16.msra.mxu0 %v4966
    %5596 = vmatpush.bf16.msra.mxu0 %v4962
    %5597 = vmatpush.bf16.msra.mxu0 %v4958
    %5598 = vmatpush.bf16.msra.mxu0 %v4954
    %5599 = vmatpush.bf16.msra.mxu0 %v4950
    %5600 = vmatmul.bf16.gmra.mxu0 %v3782
    %v5601 = vpop.f32.mrf.mxu0
    %v5602 = vadd.f32 %v5589, %v5601
    %v5603 = vpop.f32.mrf.mxu0
    %5604 = vdwg.mxu0
    %5605 = vmatpush.bf16.msra.mxu0 %v5010
    %5606 = vmatpush.bf16.msra.mxu0 %v5006
    %5607 = vmatpush.bf16.msra.mxu0 %v5002
    %5608 = vmatpush.bf16.msra.mxu0 %v4998
    %5609 = vmatpush.bf16.msra.mxu0 %v4994
    %5610 = vmatpush.bf16.msra.mxu0 %v4990
    %5611 = vmatpush.bf16.msra.mxu0 %v4986
    %5612 = vmatpush.bf16.msra.mxu0 %v4982
    %5613 = vmatmul.bf16.gmra.mxu0 %v3783
    %v5614 = vpop.f32.mrf.mxu0
    %v5615 = vadd.f32 %v5602, %v5614
    %v5616 = vpop.f32.mrf.mxu0
    %5617 = vdwg.mxu0
    %5618 = vmatpush.bf16.msra.mxu0 %v5042
    %5619 = vmatpush.bf16.msra.mxu0 %v5038
    %5620 = vmatpush.bf16.msra.mxu0 %v5034
    %5621 = vmatpush.bf16.msra.mxu0 %v5030
    %5622 = vmatpush.bf16.msra.mxu0 %v5026
    %5623 = vmatpush.bf16.msra.mxu0 %v5022
    %5624 = vmatpush.bf16.msra.mxu0 %v5018
    %5625 = vmatpush.bf16.msra.mxu0 %v5014
    %5626 = vmatmul.bf16.gmra.mxu0 %v3784
    %v5627 = vpop.f32.mrf.mxu0
    %v5628 = vadd.f32 %v5615, %v5627
    %v5629 = vpop.f32.mrf.mxu0
    %5630 = vdwg.mxu0
    %5631 = vmatpush.bf16.msra.mxu0 %v5074
    %5632 = vmatpush.bf16.msra.mxu0 %v5070
    %5633 = vmatpush.bf16.msra.mxu0 %v5066
    %5634 = vmatpush.bf16.msra.mxu0 %v5062
    %5635 = vmatpush.bf16.msra.mxu0 %v5058
    %5636 = vmatpush.bf16.msra.mxu0 %v5054
    %5637 = vmatpush.bf16.msra.mxu0 %v5050
    %5638 = vmatpush.bf16.msra.mxu0 %v5046
    %5639 = vmatmul.bf16.gmra.mxu0 %v3785
    %v5640 = vpop.f32.mrf.mxu0
    %v5641 = vadd.f32 %v5628, %v5640
    %v5642 = vpop.f32.mrf.mxu0
    %5643 = vdwg.mxu0
    %5644 = vmatpush.bf16.msra.mxu0 %v4851
    %5645 = vmatpush.bf16.msra.mxu0 %v4847
    %5646 = vmatpush.bf16.msra.mxu0 %v4843
    %5647 = vmatpush.bf16.msra.mxu0 %v4839
    %5648 = vmatpush.bf16.msra.mxu0 %v4835
    %5649 = vmatpush.bf16.msra.mxu0 %v4831
    %5650 = vmatpush.bf16.msra.mxu0 %v4827
    %5651 = vmatpush.bf16.msra.mxu0 %v4823
    %5652 = vmatmul.bf16.gmra.mxu0 %v3778
    %v5653 = vpop.f32.mrf.mxu0
    %v5654 = vadd.f32 %v4047, %v5653
    %v5655 = vpop.f32.mrf.mxu0
    %5656 = vdwg.mxu0
    %5657 = vmatpush.bf16.msra.mxu0 %v4883
    %5658 = vmatpush.bf16.msra.mxu0 %v4879
    %5659 = vmatpush.bf16.msra.mxu0 %v4875
    %5660 = vmatpush.bf16.msra.mxu0 %v4871
    %5661 = vmatpush.bf16.msra.mxu0 %v4867
    %5662 = vmatpush.bf16.msra.mxu0 %v4863
    %5663 = vmatpush.bf16.msra.mxu0 %v4859
    %5664 = vmatpush.bf16.msra.mxu0 %v4855
    %5665 = vmatmul.bf16.gmra.mxu0 %v3779
    %v5666 = vpop.f32.mrf.mxu0
    %v5667 = vadd.f32 %v5654, %v5666
    %v5668 = vpop.f32.mrf.mxu0
    %5669 = vdwg.mxu0
    %5670 = vmatpush.bf16.msra.mxu0 %v4915
    %5671 = vmatpush.bf16.msra.mxu0 %v4911
    %5672 = vmatpush.bf16.msra.mxu0 %v4907
    %5673 = vmatpush.bf16.msra.mxu0 %v4903
    %5674 = vmatpush.bf16.msra.mxu0 %v4899
    %5675 = vmatpush.bf16.msra.mxu0 %v4895
    %5676 = vmatpush.bf16.msra.mxu0 %v4891
    %5677 = vmatpush.bf16.msra.mxu0 %v4887
    %5678 = vmatmul.bf16.gmra.mxu0 %v3780
    %v5679 = vpop.f32.mrf.mxu0
    %v5680 = vadd.f32 %v5667, %v5679
    %v5681 = vpop.f32.mrf.mxu0
    %5682 = vdwg.mxu0
    %5683 = vmatpush.bf16.msra.mxu0 %v4947
    %5684 = vmatpush.bf16.msra.mxu0 %v4943
    %5685 = vmatpush.bf16.msra.mxu0 %v4939
    %5686 = vmatpush.bf16.msra.mxu0 %v4935
    %5687 = vmatpush.bf16.msra.mxu0 %v4931
    %5688 = vmatpush.bf16.msra.mxu0 %v4927
    %5689 = vmatpush.bf16.msra.mxu0 %v4923
    %5690 = vmatpush.bf16.msra.mxu0 %v4919
    %5691 = vmatmul.bf16.gmra.mxu0 %v3781
    %v5692 = vpop.f32.mrf.mxu0
    %v5693 = vadd.f32 %v5680, %v5692
    %v5694 = vpop.f32.mrf.mxu0
    %5695 = vdwg.mxu0
    %5696 = vmatpush.bf16.msra.mxu0 %v4979
    %5697 = vmatpush.bf16.msra.mxu0 %v4975
    %5698 = vmatpush.bf16.msra.mxu0 %v4971
    %5699 = vmatpush.bf16.msra.mxu0 %v4967
    %5700 = vmatpush.bf16.msra.mxu0 %v4963
    %5701 = vmatpush.bf16.msra.mxu0 %v4959
    %5702 = vmatpush.bf16.msra.mxu0 %v4955
    %5703 = vmatpush.bf16.msra.mxu0 %v4951
    %5704 = vmatmul.bf16.gmra.mxu0 %v3782
    %v5705 = vpop.f32.mrf.mxu0
    %v5706 = vadd.f32 %v5693, %v5705
    %v5707 = vpop.f32.mrf.mxu0
    %5708 = vdwg.mxu0
    %5709 = vmatpush.bf16.msra.mxu0 %v5011
    %5710 = vmatpush.bf16.msra.mxu0 %v5007
    %5711 = vmatpush.bf16.msra.mxu0 %v5003
    %5712 = vmatpush.bf16.msra.mxu0 %v4999
    %5713 = vmatpush.bf16.msra.mxu0 %v4995
    %5714 = vmatpush.bf16.msra.mxu0 %v4991
    %5715 = vmatpush.bf16.msra.mxu0 %v4987
    %5716 = vmatpush.bf16.msra.mxu0 %v4983
    %5717 = vmatmul.bf16.gmra.mxu0 %v3783
    %v5718 = vpop.f32.mrf.mxu0
    %v5719 = vadd.f32 %v5706, %v5718
    %v5720 = vpop.f32.mrf.mxu0
    %5721 = vdwg.mxu0
    %5722 = vmatpush.bf16.msra.mxu0 %v5043
    %5723 = vmatpush.bf16.msra.mxu0 %v5039
    %5724 = vmatpush.bf16.msra.mxu0 %v5035
    %5725 = vmatpush.bf16.msra.mxu0 %v5031
    %5726 = vmatpush.bf16.msra.mxu0 %v5027
    %5727 = vmatpush.bf16.msra.mxu0 %v5023
    %5728 = vmatpush.bf16.msra.mxu0 %v5019
    %5729 = vmatpush.bf16.msra.mxu0 %v5015
    %5730 = vmatmul.bf16.gmra.mxu0 %v3784
    %v5731 = vpop.f32.mrf.mxu0
    %v5732 = vadd.f32 %v5719, %v5731
    %v5733 = vpop.f32.mrf.mxu0
    %5734 = vdwg.mxu0
    %5735 = vmatpush.bf16.msra.mxu0 %v5075
    %5736 = vmatpush.bf16.msra.mxu0 %v5071
    %5737 = vmatpush.bf16.msra.mxu0 %v5067
    %5738 = vmatpush.bf16.msra.mxu0 %v5063
    %5739 = vmatpush.bf16.msra.mxu0 %v5059
    %5740 = vmatpush.bf16.msra.mxu0 %v5055
    %5741 = vmatpush.bf16.msra.mxu0 %v5051
    %5742 = vmatpush.bf16.msra.mxu0 %v5047
    %5743 = vmatmul.bf16.gmra.mxu0 %v3785
    %v5744 = vpop.f32.mrf.mxu0
    %v5745 = vadd.f32 %v5732, %v5744
    %v5746 = vpop.f32.mrf.mxu0
    %5747 = vdwg.mxu0
    %v5748 = vmul.f32 %v5433, 0.2
    %v5749 = vmul.f32 %v5537, 0.2
    %v5750 = vmul.f32 %v5641, 0.2
    %v5751 = vmul.f32 %v5745, 0.2
    %v5752 = vmax.f32 %v5433, %v5748
    %v5753 = vmax.f32 %v5537, %v5749
    %v5754 = vmax.f32 %v5641, %v5750
    %v5755 = vmax.f32 %v5745, %v5751
    %v5756 = vadd.s32 %v3666, 2
    %v5757 = vadd.s32 %v3667, 2
    %v5758 = vadd.s32 %v3668, 2
    %v5759 = vadd.s32 %v3669, 2
    %v5760 = vshrl.u32 %v5756, 16
    %v5761 = vshrl.u32 %v5757, 16
    %v5762 = vshrl.u32 %v5758, 16
    %v5763 = vshrl.u32 %v5759, 16
    %v5764 = vxor.u32 %v5756, %v5760
    %v5765 = vxor.u32 %v5757, %v5761
    %v5766 = vxor.u32 %v5758, %v5762
    %v5767 = vxor.u32 %v5759, %v5763
    %v5768 = vmul.u32 %v5764, 2246822507
    %v5769 = vmul.u32 %v5765, 2246822507
    %v5770 = vmul.u32 %v5766, 2246822507
    %v5771 = vmul.u32 %v5767, 2246822507
    %v5772 = vshrl.u32 %v5768, 13
    %v5773 = vshrl.u32 %v5769, 13
    %v5774 = vshrl.u32 %v5770, 13
    %v5775 = vshrl.u32 %v5771, 13
    %v5776 = vxor.u32 %v5768, %v5772
    %v5777 = vxor.u32 %v5769, %v5773
    %v5778 = vxor.u32 %v5770, %v5774
    %v5779 = vxor.u32 %v5771, %v5775
    %v5780 = vmul.u32 %v5776, 3266489909
    %v5781 = vmul.u32 %v5777, 3266489909
    %v5782 = vmul.u32 %v5778, 3266489909
    %v5783 = vmul.u32 %v5779, 3266489909
    %v5784 = vshrl.u32 %v5780, 16
    %v5785 = vshrl.u32 %v5781, 16
    %v5786 = vshrl.u32 %v5782, 16
    %v5787 = vshrl.u32 %v5783, 16
    %v5788 = vxor.u32 %v5780, %v5784
    %v5789 = vxor.u32 %v5781, %v5785
    %v5790 = vxor.u32 %v5782, %v5786
    %v5791 = vxor.u32 %v5783, %v5787
    %v5792 = vshrl.u32 %v5788, 8
    %v5793 = vshrl.u32 %v5789, 8
    %v5794 = vshrl.u32 %v5790, 8
    %v5795 = vshrl.u32 %v5791, 8
    %vm5796 = vcmp.ge.s32.totalorder %v5792, 5033164
    %vm5797 = vcmp.ge.s32.totalorder %v5793, 5033164
    %vm5798 = vcmp.ge.s32.totalorder %v5794, 5033164
    %vm5799 = vcmp.ge.s32.totalorder %v5795, 5033164
    %v5800 = vmul.f32 %v5752, 1.4285715
    %v5801 = vmul.f32 %v5753, 1.4285715
    %v5802 = vmul.f32 %v5754, 1.4285715
    %v5803 = vmul.f32 %v5755, 1.4285715
    %v5804 = vsel %vm5796, %v5800, 0.0
    %v5805 = vsel %vm5797, %v5801, 0.0
    %v5806 = vsel %vm5798, %v5802, 0.0
    %v5807 = vsel %vm5799, %v5803, 0.0
    %v5808 = vpack.c.bf16 %v5804, %v5804
    %v5809 = vpack.c.bf16 %v5805, %v5805
    %v5810 = vpack.c.bf16 %v5806, %v5806
    %v5811 = vpack.c.bf16 %v5807, %v5807
    %v5812 = vld [vmem:[#allocation10] sm:$0xff]
    %v5813 = vld [vmem:[#allocation10 + $0x8] sm:$0xff]
    %v5814 = vld [vmem:[#allocation10 + $0x10] sm:$0xff]
    %v5815 = vld [vmem:[#allocation10 + $0x18] sm:$0xff]
    %v5816 = vld [vmem:[#allocation10 + $0x20] sm:$0xff]
    %v5817 = vld [vmem:[#allocation10 + $0x28] sm:$0xff]
    %v5818 = vld [vmem:[#allocation10 + $0x30] sm:$0xff]
    %v5819 = vld [vmem:[#allocation10 + $0x38] sm:$0xff]
    %v5820 = vld [vmem:[#allocation10 + $0x40] sm:$0xff]
    %v5821 = vld [vmem:[#allocation10 + $0x48] sm:$0xff]
    %v5822 = vld [vmem:[#allocation10 + $0x50] sm:$0xff]
    %v5823 = vld [vmem:[#allocation10 + $0x58] sm:$0xff]
    %v5824 = vld [vmem:[#allocation10 + $0x60] sm:$0xff]
    %v5825 = vld [vmem:[#allocation10 + $0x68] sm:$0xff]
    %v5826 = vld [vmem:[#allocation10 + $0x70] sm:$0xff]
    %v5827 = vld [vmem:[#allocation10 + $0x78] sm:$0xff]
    %v5828 = vld [vmem:[#allocation10 + $0x80] sm:$0xff]
    %v5829 = vld [vmem:[#allocation10 + $0x88] sm:$0xff]
    %v5830 = vld [vmem:[#allocation10 + $0x90] sm:$0xff]
    %v5831 = vld [vmem:[#allocation10 + $0x98] sm:$0xff]
    %v5832 = vld [vmem:[#allocation10 + $0xa0] sm:$0xff]
    %v5833 = vld [vmem:[#allocation10 + $0xa8] sm:$0xff]
    %v5834 = vld [vmem:[#allocation10 + $0xb0] sm:$0xff]
    %v5835 = vld [vmem:[#allocation10 + $0xb8] sm:$0xff]
    %v5836 = vld [vmem:[#allocation10 + $0xc0] sm:$0xff]
    %v5837 = vld [vmem:[#allocation10 + $0xc8] sm:$0xff]
    %v5838 = vld [vmem:[#allocation10 + $0xd0] sm:$0xff]
    %v5839 = vld [vmem:[#allocation10 + $0xd8] sm:$0xff]
    %v5840 = vld [vmem:[#allocation10 + $0xe0] sm:$0xff]
    %v5841 = vld [vmem:[#allocation10 + $0xe8] sm:$0xff]
    %v5842 = vld [vmem:[#allocation10 + $0xf0] sm:$0xff]
    %v5843 = vld [vmem:[#allocation10 + $0xf8] sm:$0xff]
    %v5844 = vld [vmem:[#allocation10 + $0x100] sm:$0xff]
    %v5845 = vld [vmem:[#allocation10 + $0x108] sm:$0xff]
    %v5846 = vld [vmem:[#allocation10 + $0x110] sm:$0xff]
    %v5847 = vld [vmem:[#allocation10 + $0x118] sm:$0xff]
    %v5848 = vld [vmem:[#allocation10 + $0x120] sm:$0xff]
    %v5849 = vld [vmem:[#allocation10 + $0x128] sm:$0xff]
    %v5850 = vld [vmem:[#allocation10 + $0x130] sm:$0xff]
    %v5851 = vld [vmem:[#allocation10 + $0x138] sm:$0xff]
    %v5852 = vld [vmem:[#allocation10 + $0x140] sm:$0xff]
    %v5853 = vld [vmem:[#allocation10 + $0x148] sm:$0xff]
    %v5854 = vld [vmem:[#allocation10 + $0x150] sm:$0xff]
    %v5855 = vld [vmem:[#allocation10 + $0x158] sm:$0xff]
    %v5856 = vld [vmem:[#allocation10 + $0x160] sm:$0xff]
    %v5857 = vld [vmem:[#allocation10 + $0x168] sm:$0xff]
    %v5858 = vld [vmem:[#allocation10 + $0x170] sm:$0xff]
    %v5859 = vld [vmem:[#allocation10 + $0x178] sm:$0xff]
    %v5860 = vld [vmem:[#allocation10 + $0x180] sm:$0xff]
    %v5861 = vld [vmem:[#allocation10 + $0x188] sm:$0xff]
    %v5862 = vld [vmem:[#allocation10 + $0x190] sm:$0xff]
    %v5863 = vld [vmem:[#allocation10 + $0x198] sm:$0xff]
    %v5864 = vld [vmem:[#allocation10 + $0x1a0] sm:$0xff]
    %v5865 = vld [vmem:[#allocation10 + $0x1a8] sm:$0xff]
    %v5866 = vld [vmem:[#allocation10 + $0x1b0] sm:$0xff]
    %v5867 = vld [vmem:[#allocation10 + $0x1b8] sm:$0xff]
    %v5868 = vld [vmem:[#allocation10 + $0x1c0] sm:$0xff]
    %v5869 = vld [vmem:[#allocation10 + $0x1c8] sm:$0xff]
    %v5870 = vld [vmem:[#allocation10 + $0x1d0] sm:$0xff]
    %v5871 = vld [vmem:[#allocation10 + $0x1d8] sm:$0xff]
    %v5872 = vld [vmem:[#allocation10 + $0x1e0] sm:$0xff]
    %v5873 = vld [vmem:[#allocation10 + $0x1e8] sm:$0xff]
    %v5874 = vld [vmem:[#allocation10 + $0x1f0] sm:$0xff]
    %v5875 = vld [vmem:[#allocation10 + $0x1f8] sm:$0xff]
    %v5876 = vld [vmem:[#allocation11] sm:$0x3]
    %v5878 = vperm.slane %v5876, 0
    %v5879 = vperm.slane %v5876, 1
    %v5946 = vunpack.c.l.b16 %v5812
    %v5947 = vunpack.c.h.b16 %v5812
    %v5948 = vunpack.c.l.b16 %v5813
    %v5949 = vunpack.c.h.b16 %v5813
    %v5950 = vunpack.c.l.b16 %v5814
    %v5951 = vunpack.c.h.b16 %v5814
    %v5952 = vunpack.c.l.b16 %v5815
    %v5953 = vunpack.c.h.b16 %v5815
    %v5954 = vunpack.c.l.b16 %v5816
    %v5955 = vunpack.c.h.b16 %v5816
    %v5956 = vunpack.c.l.b16 %v5817
    %v5957 = vunpack.c.h.b16 %v5817
    %v5958 = vunpack.c.l.b16 %v5818
    %v5959 = vunpack.c.h.b16 %v5818
    %v5960 = vunpack.c.l.b16 %v5819
    %v5961 = vunpack.c.h.b16 %v5819
    %v5962 = vunpack.c.l.b16 %v5820
    %v5963 = vunpack.c.h.b16 %v5820
    %v5964 = vunpack.c.l.b16 %v5821
    %v5965 = vunpack.c.h.b16 %v5821
    %v5966 = vunpack.c.l.b16 %v5822
    %v5967 = vunpack.c.h.b16 %v5822
    %v5968 = vunpack.c.l.b16 %v5823
    %v5969 = vunpack.c.h.b16 %v5823
    %v5970 = vunpack.c.l.b16 %v5824
    %v5971 = vunpack.c.h.b16 %v5824
    %v5972 = vunpack.c.l.b16 %v5825
    %v5973 = vunpack.c.h.b16 %v5825
    %v5974 = vunpack.c.l.b16 %v5826
    %v5975 = vunpack.c.h.b16 %v5826
    %v5976 = vunpack.c.l.b16 %v5827
    %v5977 = vunpack.c.h.b16 %v5827
    %v5978 = vunpack.c.l.b16 %v5828
    %v5979 = vunpack.c.h.b16 %v5828
    %v5980 = vunpack.c.l.b16 %v5829
    %v5981 = vunpack.c.h.b16 %v5829
    %v5982 = vunpack.c.l.b16 %v5830
    %v5983 = vunpack.c.h.b16 %v5830
    %v5984 = vunpack.c.l.b16 %v5831
    %v5985 = vunpack.c.h.b16 %v5831
    %v5986 = vunpack.c.l.b16 %v5832
    %v5987 = vunpack.c.h.b16 %v5832
    %v5988 = vunpack.c.l.b16 %v5833
    %v5989 = vunpack.c.h.b16 %v5833
    %v5990 = vunpack.c.l.b16 %v5834
    %v5991 = vunpack.c.h.b16 %v5834
    %v5992 = vunpack.c.l.b16 %v5835
    %v5993 = vunpack.c.h.b16 %v5835
    %v5994 = vunpack.c.l.b16 %v5836
    %v5995 = vunpack.c.h.b16 %v5836
    %v5996 = vunpack.c.l.b16 %v5837
    %v5997 = vunpack.c.h.b16 %v5837
    %v5998 = vunpack.c.l.b16 %v5838
    %v5999 = vunpack.c.h.b16 %v5838
    %v6000 = vunpack.c.l.b16 %v5839
    %v6001 = vunpack.c.h.b16 %v5839
    %v6002 = vunpack.c.l.b16 %v5840
    %v6003 = vunpack.c.h.b16 %v5840
    %v6004 = vunpack.c.l.b16 %v5841
    %v6005 = vunpack.c.h.b16 %v5841
    %v6006 = vunpack.c.l.b16 %v5842
    %v6007 = vunpack.c.h.b16 %v5842
    %v6008 = vunpack.c.l.b16 %v5843
    %v6009 = vunpack.c.h.b16 %v5843
    %v6010 = vunpack.c.l.b16 %v5844
    %v6011 = vunpack.c.h.b16 %v5844
    %v6012 = vunpack.c.l.b16 %v5845
    %v6013 = vunpack.c.h.b16 %v5845
    %v6014 = vunpack.c.l.b16 %v5846
    %v6015 = vunpack.c.h.b16 %v5846
    %v6016 = vunpack.c.l.b16 %v5847
    %v6017 = vunpack.c.h.b16 %v5847
    %v6018 = vunpack.c.l.b16 %v5848
    %v6019 = vunpack.c.h.b16 %v5848
    %v6020 = vunpack.c.l.b16 %v5849
    %v6021 = vunpack.c.h.b16 %v5849
    %v6022 = vunpack.c.l.b16 %v5850
    %v6023 = vunpack.c.h.b16 %v5850
    %v6024 = vunpack.c.l.b16 %v5851
    %v6025 = vunpack.c.h.b16 %v5851
    %v6026 = vunpack.c.l.b16 %v5852
    %v6027 = vunpack.c.h.b16 %v5852
    %v6028 = vunpack.c.l.b16 %v5853
    %v6029 = vunpack.c.h.b16 %v5853
    %v6030 = vunpack.c.l.b16 %v5854
    %v6031 = vunpack.c.h.b16 %v5854
    %v6032 = vunpack.c.l.b16 %v5855
    %v6033 = vunpack.c.h.b16 %v5855
    %v6034 = vunpack.c.l.b16 %v5856
    %v6035 = vunpack.c.h.b16 %v5856
    %v6036 = vunpack.c.l.b16 %v5857
    %v6037 = vunpack.c.h.b16 %v5857
    %v6038 = vunpack.c.l.b16 %v5858
    %v6039 = vunpack.c.h.b16 %v5858
    %v6040 = vunpack.c.l.b16 %v5859
    %v6041 = vunpack.c.h.b16 %v5859
    %v6042 = vunpack.c.l.b16 %v5860
    %v6043 = vunpack.c.h.b16 %v5860
    %v6044 = vunpack.c.l.b16 %v5861
    %v6045 = vunpack.c.h.b16 %v5861
    %v6046 = vunpack.c.l.b16 %v5862
    %v6047 = vunpack.c.h.b16 %v5862
    %v6048 = vunpack.c.l.b16 %v5863
    %v6049 = vunpack.c.h.b16 %v5863
    %v6050 = vunpack.c.l.b16 %v5864
    %v6051 = vunpack.c.h.b16 %v5864
    %v6052 = vunpack.c.l.b16 %v5865
    %v6053 = vunpack.c.h.b16 %v5865
    %v6054 = vunpack.c.l.b16 %v5866
    %v6055 = vunpack.c.h.b16 %v5866
    %v6056 = vunpack.c.l.b16 %v5867
    %v6057 = vunpack.c.h.b16 %v5867
    %v6058 = vunpack.c.l.b16 %v5868
    %v6059 = vunpack.c.h.b16 %v5868
    %v6060 = vunpack.c.l.b16 %v5869
    %v6061 = vunpack.c.h.b16 %v5869
    %v6062 = vunpack.c.l.b16 %v5870
    %v6063 = vunpack.c.h.b16 %v5870
    %v6064 = vunpack.c.l.b16 %v5871
    %v6065 = vunpack.c.h.b16 %v5871
    %v6066 = vunpack.c.l.b16 %v5872
    %v6067 = vunpack.c.h.b16 %v5872
    %v6068 = vunpack.c.l.b16 %v5873
    %v6069 = vunpack.c.h.b16 %v5873
    %v6070 = vunpack.c.l.b16 %v5874
    %v6071 = vunpack.c.h.b16 %v5874
    %v6072 = vunpack.c.l.b16 %v5875
    %v6073 = vunpack.c.h.b16 %v5875
    %v6074 = vpack.c.b16 %v5948, %v5946
    %v6075 = vpack.c.b16 %v5949, %v5947
    %v6076 = vpack.c.b16 %v5952, %v5950
    %v6077 = vpack.c.b16 %v5953, %v5951
    %v6078 = vpack.c.b16 %v5956, %v5954
    %v6079 = vpack.c.b16 %v5957, %v5955
    %v6080 = vpack.c.b16 %v5960, %v5958
    %v6081 = vpack.c.b16 %v5961, %v5959
    %v6082 = vpack.c.b16 %v5964, %v5962
    %v6083 = vpack.c.b16 %v5965, %v5963
    %v6084 = vpack.c.b16 %v5968, %v5966
    %v6085 = vpack.c.b16 %v5969, %v5967
    %v6086 = vpack.c.b16 %v5972, %v5970
    %v6087 = vpack.c.b16 %v5973, %v5971
    %v6088 = vpack.c.b16 %v5976, %v5974
    %v6089 = vpack.c.b16 %v5977, %v5975
    %v6090 = vpack.c.b16 %v5980, %v5978
    %v6091 = vpack.c.b16 %v5981, %v5979
    %v6092 = vpack.c.b16 %v5984, %v5982
    %v6093 = vpack.c.b16 %v5985, %v5983
    %v6094 = vpack.c.b16 %v5988, %v5986
    %v6095 = vpack.c.b16 %v5989, %v5987
    %v6096 = vpack.c.b16 %v5992, %v5990
    %v6097 = vpack.c.b16 %v5993, %v5991
    %v6098 = vpack.c.b16 %v5996, %v5994
    %v6099 = vpack.c.b16 %v5997, %v5995
    %v6100 = vpack.c.b16 %v6000, %v5998
    %v6101 = vpack.c.b16 %v6001, %v5999
    %v6102 = vpack.c.b16 %v6004, %v6002
    %v6103 = vpack.c.b16 %v6005, %v6003
    %v6104 = vpack.c.b16 %v6008, %v6006
    %v6105 = vpack.c.b16 %v6009, %v6007
    %v6106 = vpack.c.b16 %v6012, %v6010
    %v6107 = vpack.c.b16 %v6013, %v6011
    %v6108 = vpack.c.b16 %v6016, %v6014
    %v6109 = vpack.c.b16 %v6017, %v6015
    %v6110 = vpack.c.b16 %v6020, %v6018
    %v6111 = vpack.c.b16 %v6021, %v6019
    %v6112 = vpack.c.b16 %v6024, %v6022
    %v6113 = vpack.c.b16 %v6025, %v6023
    %v6114 = vpack.c.b16 %v6028, %v6026
    %v6115 = vpack.c.b16 %v6029, %v6027
    %v6116 = vpack.c.b16 %v6032, %v6030
    %v6117 = vpack.c.b16 %v6033, %v6031
    %v6118 = vpack.c.b16 %v6036, %v6034
    %v6119 = vpack.c.b16 %v6037, %v6035
    %v6120 = vpack.c.b16 %v6040, %v6038
    %v6121 = vpack.c.b16 %v6041, %v6039
    %v6122 = vpack.c.b16 %v6044, %v6042
    %v6123 = vpack.c.b16 %v6045, %v6043
    %v6124 = vpack.c.b16 %v6048, %v6046
    %v6125 = vpack.c.b16 %v6049, %v6047
    %v6126 = vpack.c.b16 %v6052, %v6050
    %v6127 = vpack.c.b16 %v6053, %v6051
    %v6128 = vpack.c.b16 %v6056, %v6054
    %v6129 = vpack.c.b16 %v6057, %v6055
    %v6130 = vpack.c.b16 %v6060, %v6058
    %v6131 = vpack.c.b16 %v6061, %v6059
    %v6132 = vpack.c.b16 %v6064, %v6062
    %v6133 = vpack.c.b16 %v6065, %v6063
    %v6134 = vpack.c.b16 %v6068, %v6066
    %v6135 = vpack.c.b16 %v6069, %v6067
    %v6136 = vpack.c.b16 %v6072, %v6070
    %v6137 = vpack.c.b16 %v6073, %v6071
    %6202 = vmatpush.bf16.msra.mxu0 %v6088
    %6203 = vmatpush.bf16.msra.mxu0 %v6086
    %6204 = vmatpush.bf16.msra.mxu0 %v6084
    %6205 = vmatpush.bf16.msra.mxu0 %v6082
    %6206 = vmatpush.bf16.msra.mxu0 %v6080
    %6207 = vmatpush.bf16.msra.mxu0 %v6078
    %6208 = vmatpush.bf16.msra.mxu0 %v6076
    %6209 = vmatpush.bf16.msra.mxu0 %v6074
    %6210 = vmatmul.bf16.gmra.mxu0 %v5808
    %v6211 = vpop.f32.mrf.mxu0
    %v6212 = vadd.f32 %v5878, %v6211
    %v6213 = vpop.f32.mrf.mxu0
    %6214 = vdwg.mxu0
    %6215 = vmatpush.bf16.msra.mxu0 %v6104
    %6216 = vmatpush.bf16.msra.mxu0 %v6102
    %6217 = vmatpush.bf16.msra.mxu0 %v6100
    %6218 = vmatpush.bf16.msra.mxu0 %v6098
    %6219 = vmatpush.bf16.msra.mxu0 %v6096
    %6220 = vmatpush.bf16.msra.mxu0 %v6094
    %6221 = vmatpush.bf16.msra.mxu0 %v6092
    %6222 = vmatpush.bf16.msra.mxu0 %v6090
    %6223 = vmatmul.bf16.gmra.mxu0 %v5809
    %v6224 = vpop.f32.mrf.mxu0
    %v6225 = vadd.f32 %v6212, %v6224
    %v6226 = vpop.f32.mrf.mxu0
    %6227 = vdwg.mxu0
    %6228 = vmatpush.bf16.msra.mxu0 %v6120
    %6229 = vmatpush.bf16.msra.mxu0 %v6118
    %6230 = vmatpush.bf16.msra.mxu0 %v6116
    %6231 = vmatpush.bf16.msra.mxu0 %v6114
    %6232 = vmatpush.bf16.msra.mxu0 %v6112
    %6233 = vmatpush.bf16.msra.mxu0 %v6110
    %6234 = vmatpush.bf16.msra.mxu0 %v6108
    %6235 = vmatpush.bf16.msra.mxu0 %v6106
    %6236 = vmatmul.bf16.gmra.mxu0 %v5810
    %v6237 = vpop.f32.mrf.mxu0
    %v6238 = vadd.f32 %v6225, %v6237
    %v6239 = vpop.f32.mrf.mxu0
    %6240 = vdwg.mxu0
    %6241 = vmatpush.bf16.msra.mxu0 %v6136
    %6242 = vmatpush.bf16.msra.mxu0 %v6134
    %6243 = vmatpush.bf16.msra.mxu0 %v6132
    %6244 = vmatpush.bf16.msra.mxu0 %v6130
    %6245 = vmatpush.bf16.msra.mxu0 %v6128
    %6246 = vmatpush.bf16.msra.mxu0 %v6126
    %6247 = vmatpush.bf16.msra.mxu0 %v6124
    %6248 = vmatpush.bf16.msra.mxu0 %v6122
    %6249 = vmatmul.bf16.gmra.mxu0 %v5811
    %v6250 = vpop.f32.mrf.mxu0
    %v6251 = vadd.f32 %v6238, %v6250
    %v6252 = vpop.f32.mrf.mxu0
    %6253 = vdwg.mxu0
    %6254 = vmatpush.bf16.msra.mxu0 %v6089
    %6255 = vmatpush.bf16.msra.mxu0 %v6087
    %6256 = vmatpush.bf16.msra.mxu0 %v6085
    %6257 = vmatpush.bf16.msra.mxu0 %v6083
    %6258 = vmatpush.bf16.msra.mxu0 %v6081
    %6259 = vmatpush.bf16.msra.mxu0 %v6079
    %6260 = vmatpush.bf16.msra.mxu0 %v6077
    %6261 = vmatpush.bf16.msra.mxu0 %v6075
    %6262 = vmatmul.bf16.gmra.mxu0 %v5808
    %v6263 = vpop.f32.mrf.mxu0
    %v6264 = vadd.f32 %v5879, %v6263
    %v6265 = vpop.f32.mrf.mxu0
    %6266 = vdwg.mxu0
    %6267 = vmatpush.bf16.msra.mxu0 %v6105
    %6268 = vmatpush.bf16.msra.mxu0 %v6103
    %6269 = vmatpush.bf16.msra.mxu0 %v6101
    %6270 = vmatpush.bf16.msra.mxu0 %v6099
    %6271 = vmatpush.bf16.msra.mxu0 %v6097
    %6272 = vmatpush.bf16.msra.mxu0 %v6095
    %6273 = vmatpush.bf16.msra.mxu0 %v6093
    %6274 = vmatpush.bf16.msra.mxu0 %v6091
    %6275 = vmatmul.bf16.gmra.mxu0 %v5809
    %v6276 = vpop.f32.mrf.mxu0
    %v6277 = vadd.f32 %v6264, %v6276
    %v6278 = vpop.f32.mrf.mxu0
    %6279 = vdwg.mxu0
    %6280 = vmatpush.bf16.msra.mxu0 %v6121
    %6281 = vmatpush.bf16.msra.mxu0 %v6119
    %6282 = vmatpush.bf16.msra.mxu0 %v6117
    %6283 = vmatpush.bf16.msra.mxu0 %v6115
    %6284 = vmatpush.bf16.msra.mxu0 %v6113
    %6285 = vmatpush.bf16.msra.mxu0 %v6111
    %6286 = vmatpush.bf16.msra.mxu0 %v6109
    %6287 = vmatpush.bf16.msra.mxu0 %v6107
    %6288 = vmatmul.bf16.gmra.mxu0 %v5810
    %v6289 = vpop.f32.mrf.mxu0
    %v6290 = vadd.f32 %v6277, %v6289
    %v6291 = vpop.f32.mrf.mxu0
    %6292 = vdwg.mxu0
    %6293 = vmatpush.bf16.msra.mxu0 %v6137
    %6294 = vmatpush.bf16.msra.mxu0 %v6135
    %6295 = vmatpush.bf16.msra.mxu0 %v6133
    %6296 = vmatpush.bf16.msra.mxu0 %v6131
    %6297 = vmatpush.bf16.msra.mxu0 %v6129
    %6298 = vmatpush.bf16.msra.mxu0 %v6127
    %6299 = vmatpush.bf16.msra.mxu0 %v6125
    %6300 = vmatpush.bf16.msra.mxu0 %v6123
    %6301 = vmatmul.bf16.gmra.mxu0 %v5811
    %v6302 = vpop.f32.mrf.mxu0
    %v6303 = vadd.f32 %v6290, %v6302
    %v6304 = vpop.f32.mrf.mxu0
    %6305 = vdwg.mxu0
    %v6306 = vmul.f32 %v6251, 0.2
    %v6307 = vmul.f32 %v6303, 0.2
    %v6308 = vmax.f32 %v6251, %v6306
    %v6309 = vmax.f32 %v6303, %v6307
    %v6310 = vadd.s32 %v3666, 3
    %v6311 = vadd.s32 %v3667, 3
    %v6312 = vshrl.u32 %v6310, 16
    %v6313 = vshrl.u32 %v6311, 16
    %v6314 = vxor.u32 %v6310, %v6312
    %v6315 = vxor.u32 %v6311, %v6313
    %v6316 = vmul.u32 %v6314, 2246822507
    %v6317 = vmul.u32 %v6315, 2246822507
    %v6318 = vshrl.u32 %v6316, 13
    %v6319 = vshrl.u32 %v6317, 13
    %v6320 = vxor.u32 %v6316, %v6318
    %v6321 = vxor.u32 %v6317, %v6319
    %v6322 = vmul.u32 %v6320, 3266489909
    %v6323 = vmul.u32 %v6321, 3266489909
    %v6324 = vshrl.u32 %v6322, 16
    %v6325 = vshrl.u32 %v6323, 16
    %v6326 = vxor.u32 %v6322, %v6324
    %v6327 = vxor.u32 %v6323, %v6325
    %v6328 = vshrl.u32 %v6326, 8
    %v6329 = vshrl.u32 %v6327, 8
    %vm6330 = vcmp.ge.s32.totalorder %v6328, 5033164
    %vm6331 = vcmp.ge.s32.totalorder %v6329, 5033164
    %v6332 = vmul.f32 %v6308, 1.4285715
    %v6333 = vmul.f32 %v6309, 1.4285715
    %v6334 = vsel %vm6330, %v6332, 0.0
    %v6335 = vsel %vm6331, %v6333, 0.0
    %v6336 = vpack.c.bf16 %v6334, %v6334
    %v6337 = vpack.c.bf16 %v6335, %v6335
    %v6338 = vld [vmem:[#allocation13] sm:$0xf]
    %v6339 = vld [vmem:[#allocation13 + $0x4] sm:$0xf]
    %v6340 = vld [vmem:[#allocation13 + $0x8] sm:$0xf]
    %v6341 = vld [vmem:[#allocation13 + $0xc] sm:$0xf]
    %v6342 = vld [vmem:[#allocation13 + $0x10] sm:$0xf]
    %v6343 = vld [vmem:[#allocation13 + $0x14] sm:$0xf]
    %v6344 = vld [vmem:[#allocation13 + $0x18] sm:$0xf]
    %v6345 = vld [vmem:[#allocation13 + $0x1c] sm:$0xf]
    %v6346 = vld [vmem:[#allocation13 + $0x20] sm:$0xf]
    %v6347 = vld [vmem:[#allocation13 + $0x24] sm:$0xf]
    %v6348 = vld [vmem:[#allocation13 + $0x28] sm:$0xf]
    %v6349 = vld [vmem:[#allocation13 + $0x2c] sm:$0xf]
    %v6350 = vld [vmem:[#allocation13 + $0x30] sm:$0xf]
    %v6351 = vld [vmem:[#allocation13 + $0x34] sm:$0xf]
    %v6352 = vld [vmem:[#allocation13 + $0x38] sm:$0xf]
    %v6353 = vld [vmem:[#allocation13 + $0x3c] sm:$0xf]
    %v6354 = vld [vmem:[#allocation13 + $0x40] sm:$0xf]
    %v6355 = vld [vmem:[#allocation13 + $0x44] sm:$0xf]
    %v6356 = vld [vmem:[#allocation13 + $0x48] sm:$0xf]
    %v6357 = vld [vmem:[#allocation13 + $0x4c] sm:$0xf]
    %v6358 = vld [vmem:[#allocation13 + $0x50] sm:$0xf]
    %v6359 = vld [vmem:[#allocation13 + $0x54] sm:$0xf]
    %v6360 = vld [vmem:[#allocation13 + $0x58] sm:$0xf]
    %v6361 = vld [vmem:[#allocation13 + $0x5c] sm:$0xf]
    %v6362 = vld [vmem:[#allocation13 + $0x60] sm:$0xf]
    %v6363 = vld [vmem:[#allocation13 + $0x64] sm:$0xf]
    %v6364 = vld [vmem:[#allocation13 + $0x68] sm:$0xf]
    %v6365 = vld [vmem:[#allocation13 + $0x6c] sm:$0xf]
    %v6366 = vld [vmem:[#allocation13 + $0x70] sm:$0xf]
    %v6367 = vld [vmem:[#allocation13 + $0x74] sm:$0xf]
    %v6368 = vld [vmem:[#allocation13 + $0x78] sm:$0xf]
    %v6369 = vld [vmem:[#allocation13 + $0x7c] sm:$0xf]
    %v6370 = vld [vmem:[#allocation14] sm:$0x1]
    %v6372 = vperm.slane %v6370, 0
    %v6406 = vunpack.c.l.b16 %v6338
    %v6407 = vunpack.c.l.b16 %v6339
    %v6408 = vunpack.c.l.b16 %v6340
    %v6409 = vunpack.c.l.b16 %v6341
    %v6410 = vunpack.c.l.b16 %v6342
    %v6411 = vunpack.c.l.b16 %v6343
    %v6412 = vunpack.c.l.b16 %v6344
    %v6413 = vunpack.c.l.b16 %v6345
    %v6414 = vunpack.c.l.b16 %v6346
    %v6415 = vunpack.c.l.b16 %v6347
    %v6416 = vunpack.c.l.b16 %v6348
    %v6417 = vunpack.c.l.b16 %v6349
    %v6418 = vunpack.c.l.b16 %v6350
    %v6419 = vunpack.c.l.b16 %v6351
    %v6420 = vunpack.c.l.b16 %v6352
    %v6421 = vunpack.c.l.b16 %v6353
    %v6422 = vunpack.c.l.b16 %v6354
    %v6423 = vunpack.c.l.b16 %v6355
    %v6424 = vunpack.c.l.b16 %v6356
    %v6425 = vunpack.c.l.b16 %v6357
    %v6426 = vunpack.c.l.b16 %v6358
    %v6427 = vunpack.c.l.b16 %v6359
    %v6428 = vunpack.c.l.b16 %v6360
    %v6429 = vunpack.c.l.b16 %v6361
    %v6430 = vunpack.c.l.b16 %v6362
    %v6431 = vunpack.c.l.b16 %v6363
    %v6432 = vunpack.c.l.b16 %v6364
    %v6433 = vunpack.c.l.b16 %v6365
    %v6434 = vunpack.c.l.b16 %v6366
    %v6435 = vunpack.c.l.b16 %v6367
    %v6436 = vunpack.c.l.b16 %v6368
    %v6437 = vunpack.c.l.b16 %v6369
    %v6438 = vpack.c.b16 %v6407, %v6406
    %v6439 = vpack.c.b16 %v6409, %v6408
    %v6440 = vpack.c.b16 %v6411, %v6410
    %v6441 = vpack.c.b16 %v6413, %v6412
    %v6442 = vpack.c.b16 %v6415, %v6414
    %v6443 = vpack.c.b16 %v6417, %v6416
    %v6444 = vpack.c.b16 %v6419, %v6418
    %v6445 = vpack.c.b16 %v6421, %v6420
    %v6446 = vpack.c.b16 %v6423, %v6422
    %v6447 = vpack.c.b16 %v6425, %v6424
    %v6448 = vpack.c.b16 %v6427, %v6426
    %v6449 = vpack.c.b16 %v6429, %v6428
    %v6450 = vpack.c.b16 %v6431, %v6430
    %v6451 = vpack.c.b16 %v6433, %v6432
    %v6452 = vpack.c.b16 %v6435, %v6434
    %v6453 = vpack.c.b16 %v6437, %v6436
    %6470 = vmatpush.bf16.msra.mxu0 %v6445
    %6471 = vmatpush.bf16.msra.mxu0 %v6444
    %6472 = vmatpush.bf16.msra.mxu0 %v6443
    %6473 = vmatpush.bf16.msra.mxu0 %v6442
    %6474 = vmatpush.bf16.msra.mxu0 %v6441
    %6475 = vmatpush.bf16.msra.mxu0 %v6440
    %6476 = vmatpush.bf16.msra.mxu0 %v6439
    %6477 = vmatpush.bf16.msra.mxu0 %v6438
    %6478 = vmatmul.bf16.gmra.mxu0 %v6336
    %v6479 = vpop.f32.mrf.mxu0
    %v6480 = vadd.f32 %v6372, %v6479
    %v6481 = vpop.f32.mrf.mxu0
    %6482 = vdwg.mxu0
    %6483 = vmatpush.bf16.msra.mxu0 %v6453
    %6484 = vmatpush.bf16.msra.mxu0 %v6452
    %6485 = vmatpush.bf16.msra.mxu0 %v6451
    %6486 = vmatpush.bf16.msra.mxu0 %v6450
    %6487 = vmatpush.bf16.msra.mxu0 %v6449
    %6488 = vmatpush.bf16.msra.mxu0 %v6448
    %6489 = vmatpush.bf16.msra.mxu0 %v6447
    %6490 = vmatpush.bf16.msra.mxu0 %v6446
    %6491 = vmatmul.bf16.gmra.mxu0 %v6337
    %v6492 = vpop.f32.mrf.mxu0
    %v6493 = vadd.f32 %v6480, %v6492
    %v6494 = vpop.f32.mrf.mxu0
    %6495 = vdwg.mxu0
    %6496 = vst [vmem:[%s10] sm:$0xff] %v6493
    // Predicated region
    $region74: #{discriminator_forward.1} parent=1 // pred_check
      _
    $region75: #{discriminator_forward.1} parent=1 // pred_check_branch
      %6498 = sbr.rel (0) target = $region77
    $region76: #{discriminator_forward.1} parent=1 // pred_region
      _
    $region77: #{discriminator_forward.1} parent=1 // pred_fallthru
      _
    // Predicated region
    $region78: #{discriminator_forward.1} parent=1 // pred_check
      _
    $region79: #{discriminator_forward.1} parent=1 // pred_check_branch
      %6500 = sbr.rel (0) target = $region81
    $region80: #{discriminator_forward.1} parent=1 // pred_region
      _
    $region81: #{discriminator_forward.1} parent=1 // pred_fallthru
      _
    %6501 = vsyncpa [#allocation4], 1
    %6502 = vsyncpa [#allocation6], 1
    %6503 = vsyncpa [#allocation9], 1
    %6504 = vsyncpa [#allocation12], 1
    %6505 = vsyncpa [#allocation15], 1

</llo_original>
